<compile_context>
chip_gen: v6e
topology: v6e:2x2x1
jax: 0.10.0
libtpu: 0.0.40
codegen_flags: <defaults>
</compile_context>

<pallas_src>
import numpy as np
import jax
import jax.numpy as jnp
from jax.experimental import pallas as pl
from jax.experimental.pallas import tpu as pltpu

# ---------------------------------------------------------------------------
# Model dimensions (implied by VAE/VAE.py): input (N, 1, 23) -> encoder gives
# 64 ch x 12 = 768 features (fc_mu/fc_log_var expect 768); decoder ends with
# Cropping1D(23) -> reconstruction (N, 1, 23).
# ---------------------------------------------------------------------------
IN_LEN = 23            # input sequence length
LATENT = 3             # latent dimension
ENC_L2 = 12            # length after the stride-2 encoder conv
ENC_CH = 64            # channels after the last encoder conv
ENC_FLAT = ENC_CH * ENC_L2    # 768
CROP = 23              # Cropping1D(23)
HEAD_PAD = 128         # lane-dense width of the [mu | logvar | 0...] output slab
OUT_PAD = 128          # lane-dense width of the reconstruction output slab
DEFAULT_BATCH_BLOCK = 256     # MXU-filling batch tile (sweep 128 on v5e)


# ---------------------------------------------------------------------------
# Offline weight folding: conv / conv-transpose  ->  dense block-Toeplitz matmul
# (flattening follows PyTorch order: flat index = channel * length + position)
# ---------------------------------------------------------------------------
def _conv1d_as_matrix(w, b, l_in, stride, pad):
    """conv1d(x).flatten() == x.flatten() @ M + bias  (per batch row)."""
    cout, cin, ksz = w.shape
    l_out = (l_in + 2 * pad - ksz) // stride + 1
    m = np.zeros((cin * l_in, cout * l_out), dtype=np.float64)
    t_out = np.arange(l_out)
    for k in range(ksz):
        t_in = stride * t_out + k - pad
        ok = (t_in >= 0) & (t_in < l_in)
        ti, to = t_in[ok], t_out[ok]
        for ci in range(cin):
            for co in range(cout):
                m[ci * l_in + ti, co * l_out + to] = w[co, ci, k]
    bias = np.repeat(b.astype(np.float64), l_out)[None, :]
    return m, bias, l_out


def _convT1d_as_matrix(w, b, l_in, stride):
    """convT1d(x).flatten() == x.flatten() @ M + bias  (padding=0)."""
    cin, cout, ksz = w.shape
    l_out = (l_in - 1) * stride + ksz
    m = np.zeros((cin * l_in, cout * l_out), dtype=np.float64)
    t_in = np.arange(l_in)
    for k in range(ksz):
        t_out = stride * t_in + k
        for ci in range(cin):
            for co in range(cout):
                m[ci * l_in + t_in, co * l_out + t_out] = w[ci, co, k]
    bias = np.repeat(b.astype(np.float64), l_out)[None, :]
    return m, bias, l_out


def pack_vae_params(p):
    """Torch-layout params -> 14 dense operands (bf16 weights, f32 biases)."""
    (w1, b1), (w2, b2), (w3, b3) = p["conv1"], p["conv2"], p["conv3"]
    m1, c1, l1 = _conv1d_as_matrix(w1, b1, IN_LEN, stride=1, pad=1)   # (23, 368)
    m2, c2, l2 = _conv1d_as_matrix(w2, b2, l1, stride=2, pad=1)       # (368, 384)
    m3, c3, l3 = _conv1d_as_matrix(w3, b3, l2, stride=1, pad=1)       # (384, 768)
    assert l2 == ENC_L2 and l3 == ENC_L2 and m3.shape[1] == ENC_FLAT

    # fc_mu / fc_log_var concatenated into one lane-padded head matrix.
    wmu, bmu = p["fc_mu"]
    wlv, blv = p["fc_log_var"]
    whead = np.zeros((ENC_FLAT, HEAD_PAD), dtype=np.float64)
    whead[:, 0:LATENT] = wmu.T
    whead[:, LATENT:2 * LATENT] = wlv.T
    bhead = np.zeros((1, HEAD_PAD), dtype=np.float64)
    bhead[0, 0:LATENT] = bmu
    bhead[0, LATENT:2 * LATENT] = blv

    wd, bd = p["decoder_input"]
    (tw1, tb1), (tw2, tb2), (tw3, tb3) = p["convT1"], p["convT2"], p["convT3"]
    t1, d1, lt1 = _convT1d_as_matrix(tw1, tb1, ENC_L2, stride=1)      # (768, 768)
    t2, d2b, lt2 = _convT1d_as_matrix(tw2, tb2, lt1, stride=2)        # (768, 736)
    t3, d3b, lt3 = _convT1d_as_matrix(tw3, tb3, lt2, stride=1)        # (736, 24)
    assert lt3 == CROP + 1

    # decoder_input (Linear 3->768) has no nonlinearity before convT1:
    # fold offline.  (z @ wd.T + bd) @ t1 + d1 == z @ (wd.T @ t1) + (bd @ t1 + d1)
    wdt1 = wd.T.astype(np.float64) @ t1                               # (3, 768)
    bdt1 = bd[None, :].astype(np.float64) @ t1 + d1                   # (1, 768)

    # Cropping1D(23) + lane padding folded into the last matrix: the final
    # matmul directly produces a lane-dense (bn, 128) slab (cols 0:23 valid).
    t3p = np.zeros((t3.shape[0], OUT_PAD), dtype=np.float64)
    t3p[:, :CROP] = t3[:, :CROP]
    d3p = np.zeros((1, OUT_PAD), dtype=np.float64)
    d3p[0, :CROP] = d3b[0, :CROP]

    pairs = [(m1, c1), (m2, c2), (m3, c3), (whead, bhead),
             (wdt1, bdt1), (t2, d2b), (t3p, d3p)]
    packed = []
    for w, b in pairs:
        packed.append(jnp.asarray(w, dtype=jnp.bfloat16))   # MXU operand
        packed.append(jnp.asarray(b, dtype=jnp.float32))    # f32 bias/accum
    return packed


# ---------------------------------------------------------------------------
# Fused Pallas kernel: whole VAE forward for one batch tile.
# ---------------------------------------------------------------------------
def _vae_fused_kernel(x_ref, eps_ref,
                      m1, c1, m2, c2, m3, c3,
                      whead, bhead, wdt1, bdt1, t2, d2b, t3p, d3p,
                      recon_ref, head_ref):
    def dense(h, w_ref, b_ref, relu):
        y = jnp.dot(h.astype(jnp.bfloat16), w_ref[...],
                    preferred_element_type=jnp.float32) + b_ref[...]
        return jnp.maximum(y, 0.0) if relu else y

    h = x_ref[...]                           # (bn, 23) == x viewed as (N, 1*23)
    # ---- encoder ---------------------------------------------------------
    h = dense(h, m1, c1, True)               # Conv1d(1,16,3,s1,p1)+ReLU  -> (bn, 368)
    h = dense(h, m2, c2, True)               # Conv1d(16,32,3,s2,p1)+ReLU -> (bn, 384)
    h = dense(h, m3, c3, True)               # Conv1d(32,64,3,s1,p1)+ReLU -> (bn, 768)
    # nn.Flatten() already satisfied: column order is channel*12 + position.
    head = dense(h, whead, bhead, False)     # [fc_mu | fc_log_var | 0] -> (bn, 128)
    mu = head[:, 0:LATENT]
    logvar = head[:, LATENT:2 * LATENT]
    # ---- SamplingLayer: z = mu + eps * exp(0.5 * log_var)  (f32) ---------
    z = mu + eps_ref[...] * jnp.exp(0.5 * logvar)
    # ---- decoder ----------------------------------------------------------
    # ReshapeLayer((-1, 64, 12)) is a pure view; decoder_input + ConvT1d(64,64,1,1)
    # are folded into one (3,768) matrix offline, then the ReLU is applied here.
    d = dense(z, wdt1, bdt1, True)           # Linear(3,768)+ConvT1+ReLU -> (bn, 768)
    d = dense(d, t2, d2b, True)              # ConvT1d(64,32,1,s2)+ReLU  -> (bn, 736)
    recon = dense(d, t3p, d3p, False)        # ConvT1d(32,1,2,s1)+crop   -> (bn, 128)

    recon_ref[...] = recon                   # lane-dense full-block store
    head_ref[...] = head                     # lane-dense full-block store


def vae_forward(packed, x, eps, *, block_n=DEFAULT_BATCH_BLOCK):
    """Returns (reconstruction (N,1,23), mu (N,3), log_var (N,3))."""
    n = x.shape[0]
    assert x.shape[1:] == (1, IN_LEN) and eps.shape == (n, LATENT)

    x_flat = x.reshape(n, IN_LEN)            # metadata-only view
    # Batch tile: MXU-filling (default 256), clamped for tiny batches so the
    # demo does not compute hundreds of padded rows.
    bn = max(8, min(block_n, ((n + 7) // 8) * 8))
    n_p = ((n + bn - 1) // bn) * bn
    if n_p != n:
        x_flat = jnp.pad(x_flat, ((0, n_p - n), (0, 0)))
        eps = jnp.pad(eps, ((0, n_p - n), (0, 0)))
    grid = (n_p // bn,)

    def row_spec(d):                         # per-batch-tile blocks
        return pl.BlockSpec((bn, d), lambda i: (i, 0))

    def weight_spec(a):                      # full array, constant index ->
        return pl.BlockSpec(a.shape, lambda i: (0, 0),        # fetched once,
                            pipeline_mode=pl.Buffered(1))     # single-buffered

    in_specs = [row_spec(IN_LEN), row_spec(LATENT)] + [weight_spec(a) for a in packed]
    out_specs = (row_spec(OUT_PAD), row_spec(HEAD_PAD))
    out_shape = (jax.ShapeDtypeStruct((n_p, OUT_PAD), jnp.float32),
                 jax.ShapeDtypeStruct((n_p, HEAD_PAD), jnp.float32))

    recon_pad, head = pl.pallas_call(
        _vae_fused_kernel,
        out_shape=out_shape,
        grid_spec=pltpu.PrefetchScalarGridSpec(
            num_scalar_prefetch=0,
            grid=grid,
            in_specs=in_specs,
            out_specs=out_specs,
        ),
        compiler_params=pltpu.CompilerParams(
            dimension_semantics=("parallel",),   # batch tiles -> 2 TCs on v7x
            vmem_limit_bytes=40 * 1024 * 1024,   # bf16 weights ~2.4 MB + tiles
        ),
    )(x_flat, eps, *packed)

    # Drop batch padding / lane padding; reshape to (N, 1, 23) is metadata only.
    recon = recon_pad[:n, :CROP].reshape(n, 1, CROP)
    mu = head[:n, 0:LATENT]
    logvar = head[:n, LATENT:2 * LATENT]
    return recon, mu, logvar


# ---------------------------------------------------------------------------
# Parameter init (torch layout) and a pure-numpy reference for validation.
# ---------------------------------------------------------------------------
def init_vae_params(key):
    ks = jax.random.split(key, 18)

    def u(k, shape, fan_in):
        bound = 1.0 / np.sqrt(fan_in)
        return np.asarray(jax.random.uniform(k, shape, dtype=jnp.float32,
                                             minval=-bound, maxval=bound))

    p = {}
    p["conv1"] = (u(ks[0], (16, 1, 3), 3), u(ks[1], (16,), 3))
    p["conv2"] = (u(ks[2], (32, 16, 3), 48), u(ks[3], (32,), 48))
    p["conv3"] = (u(ks[4], (64, 32, 3), 96), u(ks[5], (64,), 96))
    p["fc_mu"] = (u(ks[6], (LATENT, ENC_FLAT), ENC_FLAT), u(ks[7], (LATENT,), ENC_FLAT))
    p["fc_log_var"] = (u(ks[8], (LATENT, ENC_FLAT), ENC_FLAT), u(ks[9], (LATENT,), ENC_FLAT))
    p["decoder_input"] = (u(ks[10], (ENC_FLAT, LATENT), LATENT), u(ks[11], (ENC_FLAT,), LATENT))
    p["convT1"] = (u(ks[12], (64, 64, 1), 64), u(ks[13], (64,), 64))
    p["convT2"] = (u(ks[14], (64, 32, 1), 64), u(ks[15], (32,), 64))
    p["convT3"] = (u(ks[16], (32, 1, 2), 64), u(ks[17], (1,), 64))
    return p


def _np_conv1d(x, w, b, stride, pad):
    n, cin, l_in = x.shape
    cout, _, ksz = w.shape
    l_out = (l_in + 2 * pad - ksz) // stride + 1
    xp = np.zeros((n, cin, l_in + 2 * pad), dtype=np.float64)
    xp[:, :, pad:pad + l_in] = x
    out = np.zeros((n, cout, l_out), dtype=np.float64)
    for t in range(l_out):
        win = xp[:, :, t * stride:t * stride + ksz]
        out[:, :, t] = np.einsum("nck,ock->no", win, w) + b[None, :]
    return out


def _np_convT1d(x, w, b, stride):
    n, cin, l_in = x.shape
    _, cout, ksz = w.shape
    l_out = (l_in - 1) * stride + ksz
    out = np.zeros((n, cout, l_out), dtype=np.float64)
    for t in range(l_in):
        out[:, :, t * stride:t * stride + ksz] += np.einsum("nc,cok->nok", x[:, :, t], w)
    return out + b[None, :, None]


def vae_reference(p, x, eps):
    relu = lambda a: np.maximum(a, 0.0)
    (w1, b1), (w2, b2), (w3, b3) = p["conv1"], p["conv2"], p["conv3"]
    wmu, bmu = p["fc_mu"]
    wlv, blv = p["fc_log_var"]
    wd, bd = p["decoder_input"]
    (tw1, tb1), (tw2, tb2), (tw3, tb3) = p["convT1"], p["convT2"], p["convT3"]

    h = relu(_np_conv1d(x, w1, b1, 1, 1))
    h = relu(_np_conv1d(h, w2, b2, 2, 1))
    h = relu(_np_conv1d(h, w3, b3, 1, 1))
    flat = h.reshape(x.shape[0], -1)                          # nn.Flatten()
    mu = flat @ wmu.T + bmu
    logvar = flat @ wlv.T + blv
    z = mu + eps * np.exp(0.5 * logvar)                       # SamplingLayer
    d = (z @ wd.T + bd).reshape(x.shape[0], ENC_CH, ENC_L2)   # ReshapeLayer
    d = relu(_np_convT1d(d, tw1, tb1, 1))
    d = relu(_np_convT1d(d, tw2, tb2, 2))
    d = _np_convT1d(d, tw3, tb3, 1)
    return d[:, :, :CROP], mu, logvar                         # Cropping1D(23)


if __name__ == "__main__":
    key = jax.random.PRNGKey(0)
    k_x, k_eps, k_params = jax.random.split(key, 3)

    n = 2
    x = jax.random.normal(k_x, (n, 1, IN_LEN), dtype=jnp.float32)
    # torch.randn_like(std) in SamplingLayer: drawn here with JAX's PRNG, fed in.
    eps = jax.random.normal(k_eps, (n, LATENT), dtype=jnp.float32)

    params = init_vae_params(k_params)
    packed = pack_vae_params(params)

    recon, mu, logvar = vae_forward(packed, x, eps)
    recon, mu, logvar = jax.block_until_ready((recon, mu, logvar))

    assert recon.shape == (n, 1, CROP) and recon.dtype == jnp.float32
    assert mu.shape == (n, LATENT) and logvar.shape == (n, LATENT)

    r_recon, r_mu, r_logvar = vae_reference(params,
                                            np.asarray(x, np.float64),
                                            np.asarray(eps, np.float64))
    np.testing.assert_allclose(np.asarray(mu), r_mu, rtol=5e-2, atol=5e-2)
    np.testing.assert_allclose(np.asarray(logvar), r_logvar, rtol=5e-2, atol=5e-2)
    np.testing.assert_allclose(np.asarray(recon), r_recon, rtol=5e-2, atol=5e-2)

    print("KERNEL_OK")
</pallas_src>

<mosaic_0001>
module attributes {stable_mosaic.version = 11 : i64} {
  func.func @_vae_fused_kernel(%arg0: i32, %arg1: memref<8x23xf32, #tpu.memory_space<vmem>>, %arg2: memref<8x3xf32, #tpu.memory_space<vmem>>, %arg3: memref<23x368xbf16, #tpu.memory_space<vmem>>, %arg4: memref<1x368xf32, #tpu.memory_space<vmem>>, %arg5: memref<368x384xbf16, #tpu.memory_space<vmem>>, %arg6: memref<1x384xf32, #tpu.memory_space<vmem>>, %arg7: memref<384x768xbf16, #tpu.memory_space<vmem>>, %arg8: memref<1x768xf32, #tpu.memory_space<vmem>>, %arg9: memref<768x128xbf16, #tpu.memory_space<vmem>>, %arg10: memref<1x128xf32, #tpu.memory_space<vmem>>, %arg11: memref<3x768xbf16, #tpu.memory_space<vmem>>, %arg12: memref<1x768xf32, #tpu.memory_space<vmem>>, %arg13: memref<768x736xbf16, #tpu.memory_space<vmem>>, %arg14: memref<1x736xf32, #tpu.memory_space<vmem>>, %arg15: memref<736x128xbf16, #tpu.memory_space<vmem>>, %arg16: memref<1x128xf32, #tpu.memory_space<vmem>>, %arg17: memref<8x128xf32, #tpu.memory_space<vmem>>, %arg18: memref<8x128xf32, #tpu.memory_space<vmem>>) attributes {dimension_semantics = [#tpu.dimension_semantics<parallel>], iteration_bounds = array<i64: 1>, scalar_prefetch = 0 : i64, scratch_operands = 0 : i64, tpu.core_type = #tpu.core_type<tc>, window_params = [{transform_indices = @transform_0, window_bounds = array<i64: 8, 23>}, {transform_indices = @transform_1, window_bounds = array<i64: 8, 3>}, {pipeline_mode = #tpu.pipeline_mode<synchronous>, transform_indices = @transform_2, window_bounds = array<i64: 23, 368>}, {pipeline_mode = #tpu.pipeline_mode<synchronous>, transform_indices = @transform_3, window_bounds = array<i64: 1, 368>}, {pipeline_mode = #tpu.pipeline_mode<synchronous>, transform_indices = @transform_4, window_bounds = array<i64: 368, 384>}, {pipeline_mode = #tpu.pipeline_mode<synchronous>, transform_indices = @transform_5, window_bounds = array<i64: 1, 384>}, {pipeline_mode = #tpu.pipeline_mode<synchronous>, transform_indices = @transform_6, window_bounds = array<i64: 384, 768>}, {pipeline_mode = #tpu.pipeline_mode<synchronous>, transform_indices = @transform_7, window_bounds = array<i64: 1, 768>}, {pipeline_mode = #tpu.pipeline_mode<synchronous>, transform_indices = @transform_8, window_bounds = array<i64: 768, 128>}, {pipeline_mode = #tpu.pipeline_mode<synchronous>, transform_indices = @transform_9, window_bounds = array<i64: 1, 128>}, {pipeline_mode = #tpu.pipeline_mode<synchronous>, transform_indices = @transform_10, window_bounds = array<i64: 3, 768>}, {pipeline_mode = #tpu.pipeline_mode<synchronous>, transform_indices = @transform_11, window_bounds = array<i64: 1, 768>}, {pipeline_mode = #tpu.pipeline_mode<synchronous>, transform_indices = @transform_12, window_bounds = array<i64: 768, 736>}, {pipeline_mode = #tpu.pipeline_mode<synchronous>, transform_indices = @transform_13, window_bounds = array<i64: 1, 736>}, {pipeline_mode = #tpu.pipeline_mode<synchronous>, transform_indices = @transform_14, window_bounds = array<i64: 736, 128>}, {pipeline_mode = #tpu.pipeline_mode<synchronous>, transform_indices = @transform_15, window_bounds = array<i64: 1, 128>}, {transform_indices = @transform_16, window_bounds = array<i64: 8, 128>}, {transform_indices = @transform_17, window_bounds = array<i64: 8, 128>}]} {
    %c0 = arith.constant 0 : index
    %c0_0 = arith.constant 0 : index
    %0 = vector.load %arg1[%c0, %c0_0] : memref<8x23xf32, #tpu.memory_space<vmem>>, vector<8x23xf32>
    %1 = arith.truncf %0 : vector<8x23xf32> to vector<8x23xbf16>
    %c0_1 = arith.constant 0 : index
    %c0_2 = arith.constant 0 : index
    %2 = vector.load %arg3[%c0_1, %c0_2] : memref<23x368xbf16, #tpu.memory_space<vmem>>, vector<23x368xbf16>
    %cst = arith.constant dense<0.000000e+00> : vector<8x368xf32>
    %3 = tpu.matmul %1, %2, %cst {dimension_numbers = #tpu.dot_dimension_numbers<[1], [0], [0], [1], [0, 0, 1, 1], [], []>} : vector<8x23xbf16>, vector<23x368xbf16>, vector<8x368xf32> -> vector<8x368xf32>
    %c0_3 = arith.constant 0 : index
    %c0_4 = arith.constant 0 : index
    %4 = vector.load %arg4[%c0_3, %c0_4] : memref<1x368xf32, #tpu.memory_space<vmem>>, vector<1x368xf32>
    %5 = vector.broadcast %4 : vector<1x368xf32> to vector<8x368xf32>
    %6 = arith.addf %3, %5 : vector<8x368xf32>
    %cst_5 = arith.constant 0.000000e+00 : f32
    %7 = vector.broadcast %cst_5 : f32 to vector<8x368xf32>
    %8 = arith.maximumf %6, %7 : vector<8x368xf32>
    %9 = arith.truncf %8 : vector<8x368xf32> to vector<8x368xbf16>
    %c0_6 = arith.constant 0 : index
    %c0_7 = arith.constant 0 : index
    %10 = vector.load %arg5[%c0_6, %c0_7] : memref<368x384xbf16, #tpu.memory_space<vmem>>, vector<368x384xbf16>
    %cst_8 = arith.constant dense<0.000000e+00> : vector<8x384xf32>
    %11 = tpu.matmul %9, %10, %cst_8 {dimension_numbers = #tpu.dot_dimension_numbers<[1], [0], [0], [1], [0, 0, 1, 1], [], []>} : vector<8x368xbf16>, vector<368x384xbf16>, vector<8x384xf32> -> vector<8x384xf32>
    %c0_9 = arith.constant 0 : index
    %c0_10 = arith.constant 0 : index
    %12 = vector.load %arg6[%c0_9, %c0_10] : memref<1x384xf32, #tpu.memory_space<vmem>>, vector<1x384xf32>
    %13 = vector.broadcast %12 : vector<1x384xf32> to vector<8x384xf32>
    %14 = arith.addf %11, %13 : vector<8x384xf32>
    %cst_11 = arith.constant 0.000000e+00 : f32
    %15 = vector.broadcast %cst_11 : f32 to vector<8x384xf32>
    %16 = arith.maximumf %14, %15 : vector<8x384xf32>
    %17 = arith.truncf %16 : vector<8x384xf32> to vector<8x384xbf16>
    %c0_12 = arith.constant 0 : index
    %c0_13 = arith.constant 0 : index
    %18 = vector.load %arg7[%c0_12, %c0_13] : memref<384x768xbf16, #tpu.memory_space<vmem>>, vector<384x768xbf16>
    %cst_14 = arith.constant dense<0.000000e+00> : vector<8x768xf32>
    %19 = tpu.matmul %17, %18, %cst_14 {dimension_numbers = #tpu.dot_dimension_numbers<[1], [0], [0], [1], [0, 0, 1, 1], [], []>} : vector<8x384xbf16>, vector<384x768xbf16>, vector<8x768xf32> -> vector<8x768xf32>
    %c0_15 = arith.constant 0 : index
    %c0_16 = arith.constant 0 : index
    %20 = vector.load %arg8[%c0_15, %c0_16] : memref<1x768xf32, #tpu.memory_space<vmem>>, vector<1x768xf32>
    %21 = vector.broadcast %20 : vector<1x768xf32> to vector<8x768xf32>
    %22 = arith.addf %19, %21 : vector<8x768xf32>
    %cst_17 = arith.constant 0.000000e+00 : f32
    %23 = vector.broadcast %cst_17 : f32 to vector<8x768xf32>
    %24 = arith.maximumf %22, %23 : vector<8x768xf32>
    %25 = arith.truncf %24 : vector<8x768xf32> to vector<8x768xbf16>
    %c0_18 = arith.constant 0 : index
    %c0_19 = arith.constant 0 : index
    %26 = vector.load %arg9[%c0_18, %c0_19] : memref<768x128xbf16, #tpu.memory_space<vmem>>, vector<768x128xbf16>
    %cst_20 = arith.constant dense<0.000000e+00> : vector<8x128xf32>
    %27 = tpu.matmul %25, %26, %cst_20 {dimension_numbers = #tpu.dot_dimension_numbers<[1], [0], [0], [1], [0, 0, 1, 1], [], []>} : vector<8x768xbf16>, vector<768x128xbf16>, vector<8x128xf32> -> vector<8x128xf32>
    %c0_21 = arith.constant 0 : index
    %c0_22 = arith.constant 0 : index
    %28 = vector.load %arg10[%c0_21, %c0_22] : memref<1x128xf32, #tpu.memory_space<vmem>>, vector<1x128xf32>
    %29 = vector.broadcast %28 : vector<1x128xf32> to vector<8x128xf32>
    %30 = arith.addf %27, %29 : vector<8x128xf32>
    %31 = vector.extract_strided_slice %30 {offsets = [0, 0], sizes = [8, 3], strides = [1, 1]} : vector<8x128xf32> to vector<8x3xf32>
    %32 = vector.extract_strided_slice %30 {offsets = [0, 3], sizes = [8, 3], strides = [1, 1]} : vector<8x128xf32> to vector<8x3xf32>
    %c0_23 = arith.constant 0 : index
    %c0_24 = arith.constant 0 : index
    %33 = vector.load %arg2[%c0_23, %c0_24] : memref<8x3xf32, #tpu.memory_space<vmem>>, vector<8x3xf32>
    %cst_25 = arith.constant 5.000000e-01 : f32
    %34 = vector.broadcast %cst_25 : f32 to vector<8x3xf32>
    %35 = arith.mulf %34, %32 : vector<8x3xf32>
    %36 = math.exp %35 : vector<8x3xf32>
    %37 = arith.mulf %33, %36 : vector<8x3xf32>
    %38 = arith.addf %31, %37 : vector<8x3xf32>
    %39 = arith.truncf %38 : vector<8x3xf32> to vector<8x3xbf16>
    %c0_26 = arith.constant 0 : index
    %c0_27 = arith.constant 0 : index
    %40 = vector.load %arg11[%c0_26, %c0_27] : memref<3x768xbf16, #tpu.memory_space<vmem>>, vector<3x768xbf16>
    %cst_28 = arith.constant dense<0.000000e+00> : vector<8x768xf32>
    %41 = tpu.matmul %39, %40, %cst_28 {dimension_numbers = #tpu.dot_dimension_numbers<[1], [0], [0], [1], [0, 0, 1, 1], [], []>} : vector<8x3xbf16>, vector<3x768xbf16>, vector<8x768xf32> -> vector<8x768xf32>
    %c0_29 = arith.constant 0 : index
    %c0_30 = arith.constant 0 : index
    %42 = vector.load %arg12[%c0_29, %c0_30] : memref<1x768xf32, #tpu.memory_space<vmem>>, vector<1x768xf32>
    %43 = vector.broadcast %42 : vector<1x768xf32> to vector<8x768xf32>
    %44 = arith.addf %41, %43 : vector<8x768xf32>
    %cst_31 = arith.constant 0.000000e+00 : f32
    %45 = vector.broadcast %cst_31 : f32 to vector<8x768xf32>
    %46 = arith.maximumf %44, %45 : vector<8x768xf32>
    %47 = arith.truncf %46 : vector<8x768xf32> to vector<8x768xbf16>
    %c0_32 = arith.constant 0 : index
    %c0_33 = arith.constant 0 : index
    %48 = vector.load %arg13[%c0_32, %c0_33] : memref<768x736xbf16, #tpu.memory_space<vmem>>, vector<768x736xbf16>
    %cst_34 = arith.constant dense<0.000000e+00> : vector<8x736xf32>
    %49 = tpu.matmul %47, %48, %cst_34 {dimension_numbers = #tpu.dot_dimension_numbers<[1], [0], [0], [1], [0, 0, 1, 1], [], []>} : vector<8x768xbf16>, vector<768x736xbf16>, vector<8x736xf32> -> vector<8x736xf32>
    %c0_35 = arith.constant 0 : index
    %c0_36 = arith.constant 0 : index
    %50 = vector.load %arg14[%c0_35, %c0_36] : memref<1x736xf32, #tpu.memory_space<vmem>>, vector<1x736xf32>
    %51 = vector.broadcast %50 : vector<1x736xf32> to vector<8x736xf32>
    %52 = arith.addf %49, %51 : vector<8x736xf32>
    %cst_37 = arith.constant 0.000000e+00 : f32
    %53 = vector.broadcast %cst_37 : f32 to vector<8x736xf32>
    %54 = arith.maximumf %52, %53 : vector<8x736xf32>
    %55 = arith.truncf %54 : vector<8x736xf32> to vector<8x736xbf16>
    %c0_38 = arith.constant 0 : index
    %c0_39 = arith.constant 0 : index
    %56 = vector.load %arg15[%c0_38, %c0_39] : memref<736x128xbf16, #tpu.memory_space<vmem>>, vector<736x128xbf16>
    %cst_40 = arith.constant dense<0.000000e+00> : vector<8x128xf32>
    %57 = tpu.matmul %55, %56, %cst_40 {dimension_numbers = #tpu.dot_dimension_numbers<[1], [0], [0], [1], [0, 0, 1, 1], [], []>} : vector<8x736xbf16>, vector<736x128xbf16>, vector<8x128xf32> -> vector<8x128xf32>
    %c0_41 = arith.constant 0 : index
    %c0_42 = arith.constant 0 : index
    %58 = vector.load %arg16[%c0_41, %c0_42] : memref<1x128xf32, #tpu.memory_space<vmem>>, vector<1x128xf32>
    %59 = vector.broadcast %58 : vector<1x128xf32> to vector<8x128xf32>
    %60 = arith.addf %57, %59 : vector<8x128xf32>
    %c0_43 = arith.constant 0 : index
    %c0_44 = arith.constant 0 : index
    %61 = vector.load %arg17[%c0_43, %c0_44] : memref<8x128xf32, #tpu.memory_space<vmem>>, vector<8x128xf32>
    tpu.vector_store %arg17[%c0_43, %c0_44], %60 {strides = array<i32>} : memref<8x128xf32, #tpu.memory_space<vmem>>, vector<8x128xf32>,
    %c0_45 = arith.constant 0 : index
    %c0_46 = arith.constant 0 : index
    %62 = vector.load %arg18[%c0_45, %c0_46] : memref<8x128xf32, #tpu.memory_space<vmem>>, vector<8x128xf32>
    tpu.vector_store %arg18[%c0_45, %c0_46], %30 {strides = array<i32>} : memref<8x128xf32, #tpu.memory_space<vmem>>, vector<8x128xf32>,
    return
  }
  func.func @transform_0(%arg0: i32) -> (i32, i32) {
    %c0_i32 = arith.constant 0 : i32
    %c0_i32_0 = arith.constant 0 : i32
    return %arg0, %c0_i32 : i32, i32
  }
  func.func @transform_1(%arg0: i32) -> (i32, i32) {
    %c0_i32 = arith.constant 0 : i32
    %c0_i32_0 = arith.constant 0 : i32
    return %arg0, %c0_i32 : i32, i32
  }
  func.func @transform_2(%arg0: i32) -> (i32, i32) {
    %c0_i32 = arith.constant 0 : i32
    %c0_i32_0 = arith.constant 0 : i32
    %c0_i32_1 = arith.constant 0 : i32
    return %c0_i32, %c0_i32_0 : i32, i32
  }
  func.func @transform_3(%arg0: i32) -> (i32, i32) {
    %c0_i32 = arith.constant 0 : i32
    %c0_i32_0 = arith.constant 0 : i32
    %c0_i32_1 = arith.constant 0 : i32
    return %c0_i32, %c0_i32_0 : i32, i32
  }
  func.func @transform_4(%arg0: i32) -> (i32, i32) {
    %c0_i32 = arith.constant 0 : i32
    %c0_i32_0 = arith.constant 0 : i32
    %c0_i32_1 = arith.constant 0 : i32
    return %c0_i32, %c0_i32_0 : i32, i32
  }
  func.func @transform_5(%arg0: i32) -> (i32, i32) {
    %c0_i32 = arith.constant 0 : i32
    %c0_i32_0 = arith.constant 0 : i32
    %c0_i32_1 = arith.constant 0 : i32
    return %c0_i32, %c0_i32_0 : i32, i32
  }
  func.func @transform_6(%arg0: i32) -> (i32, i32) {
    %c0_i32 = arith.constant 0 : i32
    %c0_i32_0 = arith.constant 0 : i32
    %c0_i32_1 = arith.constant 0 : i32
    return %c0_i32, %c0_i32_0 : i32, i32
  }
  func.func @transform_7(%arg0: i32) -> (i32, i32) {
    %c0_i32 = arith.constant 0 : i32
    %c0_i32_0 = arith.constant 0 : i32
    %c0_i32_1 = arith.constant 0 : i32
    return %c0_i32, %c0_i32_0 : i32, i32
  }
  func.func @transform_8(%arg0: i32) -> (i32, i32) {
    %c0_i32 = arith.constant 0 : i32
    %c0_i32_0 = arith.constant 0 : i32
    %c0_i32_1 = arith.constant 0 : i32
    return %c0_i32, %c0_i32_0 : i32, i32
  }
  func.func @transform_9(%arg0: i32) -> (i32, i32) {
    %c0_i32 = arith.constant 0 : i32
    %c0_i32_0 = arith.constant 0 : i32
    %c0_i32_1 = arith.constant 0 : i32
    return %c0_i32, %c0_i32_0 : i32, i32
  }
  func.func @transform_10(%arg0: i32) -> (i32, i32) {
    %c0_i32 = arith.constant 0 : i32
    %c0_i32_0 = arith.constant 0 : i32
    %c0_i32_1 = arith.constant 0 : i32
    return %c0_i32, %c0_i32_0 : i32, i32
  }
  func.func @transform_11(%arg0: i32) -> (i32, i32) {
    %c0_i32 = arith.constant 0 : i32
    %c0_i32_0 = arith.constant 0 : i32
    %c0_i32_1 = arith.constant 0 : i32
    return %c0_i32, %c0_i32_0 : i32, i32
  }
  func.func @transform_12(%arg0: i32) -> (i32, i32) {
    %c0_i32 = arith.constant 0 : i32
    %c0_i32_0 = arith.constant 0 : i32
    %c0_i32_1 = arith.constant 0 : i32
    return %c0_i32, %c0_i32_0 : i32, i32
  }
  func.func @transform_13(%arg0: i32) -> (i32, i32) {
    %c0_i32 = arith.constant 0 : i32
    %c0_i32_0 = arith.constant 0 : i32
    %c0_i32_1 = arith.constant 0 : i32
    return %c0_i32, %c0_i32_0 : i32, i32
  }
  func.func @transform_14(%arg0: i32) -> (i32, i32) {
    %c0_i32 = arith.constant 0 : i32
    %c0_i32_0 = arith.constant 0 : i32
    %c0_i32_1 = arith.constant 0 : i32
    return %c0_i32, %c0_i32_0 : i32, i32
  }
  func.func @transform_15(%arg0: i32) -> (i32, i32) {
    %c0_i32 = arith.constant 0 : i32
    %c0_i32_0 = arith.constant 0 : i32
    %c0_i32_1 = arith.constant 0 : i32
    return %c0_i32, %c0_i32_0 : i32, i32
  }
  func.func @transform_16(%arg0: i32) -> (i32, i32) {
    %c0_i32 = arith.constant 0 : i32
    %c0_i32_0 = arith.constant 0 : i32
    return %arg0, %c0_i32 : i32, i32
  }
  func.func @transform_17(%arg0: i32) -> (i32, i32) {
    %c0_i32 = arith.constant 0 : i32
    %c0_i32_0 = arith.constant 0 : i32
    return %arg0, %c0_i32 : i32, i32
  }
}

</mosaic_0001>

<llo_original>
// kernel: tpu_custom_call.1
$region0: #{tpu_custom_call.1}
  #allocation0 [shape = 'u32[]', space=smem, size = 0x4, offset = 0x4, fixed_abs, tag = 'smem constant byte address 0x4 - core index']
  #allocation1 [shape = 'u32[144,128]{1,0:T(1,128)}', space=vmem, size = 0x12000, scoped, tag = 'internal scratch']
  %s0 = inlined_call_operand.vmem [shape: f32[8,23], index: 0, kind: input, shape index: {}]
  %s1 = inlined_call_operand.vmem [shape: f32[8,3], index: 1, kind: input, shape index: {}]
  %s2 = inlined_call_operand.vmem [shape: bf16[23,368], index: 2, kind: input, shape index: {}]
  %s3 = inlined_call_operand.vmem [shape: f32[1,368], index: 3, kind: input, shape index: {}]
  %s4 = inlined_call_operand.vmem [shape: bf16[368,384], index: 4, kind: input, shape index: {}]
  %s5 = inlined_call_operand.vmem [shape: f32[1,384], index: 5, kind: input, shape index: {}]
  %s6 = inlined_call_operand.vmem [shape: bf16[384,768], index: 6, kind: input, shape index: {}]
  %s7 = inlined_call_operand.vmem [shape: f32[1,768], index: 7, kind: input, shape index: {}]
  %s8 = inlined_call_operand.vmem [shape: bf16[768,128], index: 8, kind: input, shape index: {}]
  %s9 = inlined_call_operand.vmem [shape: f32[1,128], index: 9, kind: input, shape index: {}]
  %s10 = inlined_call_operand.vmem [shape: bf16[3,768], index: 10, kind: input, shape index: {}]
  %s11 = inlined_call_operand.vmem [shape: f32[1,768], index: 11, kind: input, shape index: {}]
  %s12 = inlined_call_operand.vmem [shape: bf16[768,736], index: 12, kind: input, shape index: {}]
  %s13 = inlined_call_operand.vmem [shape: f32[1,736], index: 13, kind: input, shape index: {}]
  %s14 = inlined_call_operand.vmem [shape: bf16[736,128], index: 14, kind: input, shape index: {}]
  %s15 = inlined_call_operand.vmem [shape: f32[1,128], index: 15, kind: input, shape index: {}]
  %s16 = inlined_call_operand.hbm [shape: f32[8,128], index: 16, kind: output, shape index: {0}]
  %s17 = inlined_call_operand.hbm [shape: f32[8,128], index: 17, kind: output, shape index: {1}]
  %18 = xla_tuple %s16, %s17
  %s19 = sld [smem:[#allocation0]]
  $region82: #{tpu_custom_call.1} parent=0
    _
  %s21 = ssub.s32 1, %s19
  %s22 = scalar_select 0, %s21, %s19
  $region1: #{tpu_custom_call.1} parent=0
    #allocation2 [shape = 'u8[4096]{0}', space=vmem, size = 0x1000, scoped, tag = 'output window, operand 0, single buffered']
    #allocation3 [shape = 's32[1]{0}', space=sflag, size = 0x4, scoped, tag = 'scoped memory for tpu_custom_call.1']
    #allocation4 [shape = 'u8[4096]{0}', space=vmem, size = 0x1000, scoped, tag = 'output window, operand 1, single buffered']
    #allocation5 [shape = 's32[1]{0}', space=sflag, size = 0x4, scoped, tag = 'scoped memory for tpu_custom_call.1']
    %23 = vsyncpa [#allocation3], 0
    %24 = vsyncpa [#allocation5], 0
    // Predicated region
    $region2: #{tpu_custom_call.1} parent=1 // pred_check
      _
    $region3: #{tpu_custom_call.1} parent=1 // pred_check_branch
      %26 = sbr.rel (0) target = $region5
    $region4: #{tpu_custom_call.1} parent=1 // pred_region
      _
    $region5: #{tpu_custom_call.1} parent=1 // pred_fallthru
      _
    // Predicated region
    $region6: #{tpu_custom_call.1} parent=1 // pred_check
      _
    $region7: #{tpu_custom_call.1} parent=1 // pred_check_branch
      %28 = sbr.rel (0) target = $region9
    $region8: #{tpu_custom_call.1} parent=1 // pred_region
      _
    $region9: #{tpu_custom_call.1} parent=1 // pred_fallthru
      _
    // Predicated region
    $region10: #{tpu_custom_call.1} parent=1 // pred_check
      _
    $region11: #{tpu_custom_call.1} parent=1 // pred_check_branch
      %30 = sbr.rel (0) target = $region13
    $region12: #{tpu_custom_call.1} parent=1 // pred_region
      _
    $region13: #{tpu_custom_call.1} parent=1 // pred_fallthru
      _
    // Predicated region
    $region14: #{tpu_custom_call.1} parent=1 // pred_check
      _
    $region15: #{tpu_custom_call.1} parent=1 // pred_check_branch
      %32 = sbr.rel (0) target = $region17
    $region16: #{tpu_custom_call.1} parent=1 // pred_region
      _
    $region17: #{tpu_custom_call.1} parent=1 // pred_fallthru
      _
    // Predicated region
    $region18: #{tpu_custom_call.1} parent=1 // pred_check
      _
    $region19: #{tpu_custom_call.1} parent=1 // pred_check_branch
      %34 = sbr.rel (0) target = $region21
    $region20: #{tpu_custom_call.1} parent=1 // pred_region
      _
    $region21: #{tpu_custom_call.1} parent=1 // pred_fallthru
      _
    // Predicated region
    $region22: #{tpu_custom_call.1} parent=1 // pred_check
      _
    $region23: #{tpu_custom_call.1} parent=1 // pred_check_branch
      %36 = sbr.rel (0) target = $region25
    $region24: #{tpu_custom_call.1} parent=1 // pred_region
      _
    $region25: #{tpu_custom_call.1} parent=1 // pred_fallthru
      _
    // Predicated region
    $region26: #{tpu_custom_call.1} parent=1 // pred_check
      _
    $region27: #{tpu_custom_call.1} parent=1 // pred_check_branch
      %38 = sbr.rel (0) target = $region29
    $region28: #{tpu_custom_call.1} parent=1 // pred_region
      _
    $region29: #{tpu_custom_call.1} parent=1 // pred_fallthru
      _
    // Predicated region
    $region30: #{tpu_custom_call.1} parent=1 // pred_check
      _
    $region31: #{tpu_custom_call.1} parent=1 // pred_check_branch
      %40 = sbr.rel (0) target = $region33
    $region32: #{tpu_custom_call.1} parent=1 // pred_region
      _
    $region33: #{tpu_custom_call.1} parent=1 // pred_fallthru
      _
    // Predicated region
    $region34: #{tpu_custom_call.1} parent=1 // pred_check
      _
    $region35: #{tpu_custom_call.1} parent=1 // pred_check_branch
      %42 = sbr.rel (0) target = $region37
    $region36: #{tpu_custom_call.1} parent=1 // pred_region
      _
    $region37: #{tpu_custom_call.1} parent=1 // pred_fallthru
      _
    // Predicated region
    $region38: #{tpu_custom_call.1} parent=1 // pred_check
      _
    $region39: #{tpu_custom_call.1} parent=1 // pred_check_branch
      %44 = sbr.rel (0) target = $region41
    $region40: #{tpu_custom_call.1} parent=1 // pred_region
      _
    $region41: #{tpu_custom_call.1} parent=1 // pred_fallthru
      _
    // Predicated region
    $region42: #{tpu_custom_call.1} parent=1 // pred_check
      _
    $region43: #{tpu_custom_call.1} parent=1 // pred_check_branch
      %46 = sbr.rel (0) target = $region45
    $region44: #{tpu_custom_call.1} parent=1 // pred_region
      _
    $region45: #{tpu_custom_call.1} parent=1 // pred_fallthru
      _
    // Predicated region
    $region46: #{tpu_custom_call.1} parent=1 // pred_check
      _
    $region47: #{tpu_custom_call.1} parent=1 // pred_check_branch
      %48 = sbr.rel (0) target = $region49
    $region48: #{tpu_custom_call.1} parent=1 // pred_region
      _
    $region49: #{tpu_custom_call.1} parent=1 // pred_fallthru
      _
    // Predicated region
    $region50: #{tpu_custom_call.1} parent=1 // pred_check
      _
    $region51: #{tpu_custom_call.1} parent=1 // pred_check_branch
      %50 = sbr.rel (0) target = $region53
    $region52: #{tpu_custom_call.1} parent=1 // pred_region
      _
    $region53: #{tpu_custom_call.1} parent=1 // pred_fallthru
      _
    // Predicated region
    $region54: #{tpu_custom_call.1} parent=1 // pred_check
      _
    $region55: #{tpu_custom_call.1} parent=1 // pred_check_branch
      %52 = sbr.rel (0) target = $region57
    $region56: #{tpu_custom_call.1} parent=1 // pred_region
      _
    $region57: #{tpu_custom_call.1} parent=1 // pred_fallthru
      _
    // Predicated region
    $region58: #{tpu_custom_call.1} parent=1 // pred_check
      _
    $region59: #{tpu_custom_call.1} parent=1 // pred_check_branch
      %54 = sbr.rel (0) target = $region61
    $region60: #{tpu_custom_call.1} parent=1 // pred_region
      _
    $region61: #{tpu_custom_call.1} parent=1 // pred_fallthru
      _
    // Predicated region
    $region62: #{tpu_custom_call.1} parent=1 // pred_check
      _
    $region63: #{tpu_custom_call.1} parent=1 // pred_check_branch
      %56 = sbr.rel (0) target = $region65
    $region64: #{tpu_custom_call.1} parent=1 // pred_region
      _
    $region65: #{tpu_custom_call.1} parent=1 // pred_fallthru
      _
    %v58 = vld [vmem:[%s0] sm:$0xff]
    %v59 = vpack.c.bf16 %v58, %v58
    %v60 = vld [vmem:[%s2] sm:$0xff]
    %v61 = vld [vmem:[%s2 + $0x8] sm:$0xf]
    %v62 = vld [vmem:[%s2 + $0xc] sm:$0xff]
    %v63 = vld [vmem:[%s2 + $0x14] sm:$0xf]
    %v64 = vld [vmem:[%s2 + $0x18] sm:$0xff]
    %v65 = vld [vmem:[%s2 + $0x20] sm:$0xf]
    %v66 = vld [vmem:[%s3] sm:$0x7]
    %v68 = vlaneseq
    %v69 = vshrl.u32 %v68, 7
    %v70 = vsub.s32 0, %v69
    %v71 = vrot.slane %v66, %v70
    %v72 = vlaneseq
    %v73 = vshrl.u32 %v72, 7
    %v74 = vsub.s32 1, %v73
    %v75 = vrot.slane %v66, %v74
    %v76 = vlaneseq
    %v77 = vshrl.u32 %v76, 7
    %v78 = vsub.s32 2, %v77
    %v79 = vrot.slane %v66, %v78
    %v89 = vunpack.c.l.b16 %v60
    %v90 = vunpack.c.h.b16 %v60
    %v91 = vunpack.c.l.b16 %v61
    %v92 = vunpack.c.l.b16 %v62
    %v93 = vunpack.c.h.b16 %v62
    %v94 = vunpack.c.l.b16 %v63
    %v95 = vunpack.c.l.b16 %v64
    %v96 = vunpack.c.h.b16 %v64
    %v97 = vunpack.c.l.b16 %v65
    %v98 = vpack.c.b16 %v92, %v89
    %v99 = vpack.c.b16 %v93, %v90
    %v100 = vpack.c.b16 %v94, %v91
    %v101 = vpack.c.b16 %v95, %v95
    %v102 = vpack.c.b16 %v96, %v96
    %v103 = vpack.c.b16 %v97, %v97
    %vm107 = vcmask 187392
    %v109 = vsel %vm107, %v59, 0
    %vm111 = vcmask 1042432
    %vm112 = vcmask 1043456
    %v113 = vsel %vm111, 4294967295, 65535
    %v114 = vsel %vm112, %v113, 0
    %v116 = vand.u32 %v101, %v114
    %v119 = vand.u32 %v102, %v114
    %v122 = vand.u32 %v103, %v114
    %124 = vmatprep.subr.bf16.mxu0 0
    %125 = vmatpush1.bf16.msra.mxu0 0
    %126 = vmatprep.subr.bf16.mxu0 0
    %127 = vmatpush1.bf16.msra.mxu0 0
    %128 = vmatprep.subr.bf16.mxu0 0
    %129 = vmatpush1.bf16.msra.mxu0 0
    %130 = vmatprep.subr.bf16.mxu0 0
    %131 = vmatpush1.bf16.msra.mxu0 0
    %132 = vmatprep.subr.bf16.mxu0 0
    %133 = vmatpush1.bf16.msra.mxu0 0
    %134 = vmatprep.subr.bf16.mxu0 0
    %135 = vmatpush1.bf16.msra.mxu0 0
    %136 = vmatprep.subr.bf16.mxu0 %v119
    %137 = vmatpush1.bf16.msra.mxu0 %v116
    %138 = vmatprep.subr.bf16.mxu0 %v99
    %139 = vmatpush1.bf16.msra.mxu0 %v98
    %140 = vmatprep.subr.bf16.mxu0 0
    %141 = vmatpush2.bf16.msra.mxu0 0
    %142 = vmatprep.subr.bf16.mxu0 0
    %143 = vmatpush2.bf16.msra.mxu0 0
    %144 = vmatprep.subr.bf16.mxu0 0
    %145 = vmatpush2.bf16.msra.mxu0 0
    %146 = vmatprep.subr.bf16.mxu0 0
    %147 = vmatpush2.bf16.msra.mxu0 0
    %148 = vmatprep.subr.bf16.mxu0 0
    %149 = vmatpush2.bf16.msra.mxu0 0
    %150 = vmatprep.subr.bf16.mxu0 0
    %151 = vmatpush2.bf16.msra.mxu0 0
    %152 = vmatprep.subr.bf16.mxu0 0
    %153 = vmatpush2.bf16.msra.mxu0 0
    %154 = vmatprep.subr.bf16.mxu0 0
    %155 = vmatpush2.bf16.msra.mxu0 0
    %156 = vmatprep.mubr.bf16.mxu0 0
    %157 = vmatmul.mubr.bf16.gmra.mxu0 %v109
    %v158 = vpop.f32.mrf.mxu0
    %v159 = vadd.f32 %v71, %v158
    %v160 = vpop.f32.mrf.mxu0
    %v161 = vadd.f32 %v75, %v160
    %v162 = vpop.f32.mrf.mxu0
    %v163 = vpop.f32.mrf.mxu0
    %164 = vdwg.mxu0
    %165 = vmatprep.subr.bf16.mxu0 0
    %166 = vmatpush1.bf16.msra.mxu0 0
    %167 = vmatprep.subr.bf16.mxu0 0
    %168 = vmatpush1.bf16.msra.mxu0 0
    %169 = vmatprep.subr.bf16.mxu0 0
    %170 = vmatpush1.bf16.msra.mxu0 0
    %171 = vmatprep.subr.bf16.mxu0 0
    %172 = vmatpush1.bf16.msra.mxu0 0
    %173 = vmatprep.subr.bf16.mxu0 0
    %174 = vmatpush1.bf16.msra.mxu0 0
    %175 = vmatprep.subr.bf16.mxu0 0
    %176 = vmatpush1.bf16.msra.mxu0 0
    %177 = vmatprep.subr.bf16.mxu0 0
    %178 = vmatpush1.bf16.msra.mxu0 %v122
    %179 = vmatprep.subr.bf16.mxu0 0
    %180 = vmatpush1.bf16.msra.mxu0 %v100
    %181 = vmatprep.subr.bf16.mxu0 0
    %182 = vmatpush2.bf16.msra.mxu0 0
    %183 = vmatprep.subr.bf16.mxu0 0
    %184 = vmatpush2.bf16.msra.mxu0 0
    %185 = vmatprep.subr.bf16.mxu0 0
    %186 = vmatpush2.bf16.msra.mxu0 0
    %187 = vmatprep.subr.bf16.mxu0 0
    %188 = vmatpush2.bf16.msra.mxu0 0
    %189 = vmatprep.subr.bf16.mxu0 0
    %190 = vmatpush2.bf16.msra.mxu0 0
    %191 = vmatprep.subr.bf16.mxu0 0
    %192 = vmatpush2.bf16.msra.mxu0 0
    %193 = vmatprep.subr.bf16.mxu0 0
    %194 = vmatpush2.bf16.msra.mxu0 0
    %195 = vmatprep.subr.bf16.mxu0 0
    %196 = vmatpush2.bf16.msra.mxu0 0
    %197 = vmatprep.mubr.bf16.mxu0 0
    %198 = vmatmul.mubr.bf16.gmra.mxu0 %v109
    %v199 = vpop.f32.mrf.mxu0
    %v200 = vadd.f32 %v79, %v199
    %v201 = vpop.f32.mrf.mxu0
    %v202 = vpop.f32.mrf.mxu0
    %v203 = vpop.f32.mrf.mxu0
    %204 = vdwg.mxu0
    %v205 = vmax.f32 %v159, 0.0
    %v206 = vmax.f32 %v161, 0.0
    %v207 = vmax.f32 %v200, 0.0
    %v208 = vpack.c.bf16 %v205, %v205
    %v209 = vpack.c.bf16 %v206, %v206
    %v210 = vpack.c.bf16 %v207, %v207
    %v211 = vld [vmem:[%s4] sm:$0xff]
    %v212 = vld [vmem:[%s4 + $0x8] sm:$0xf]
    %v213 = vld [vmem:[%s4 + $0xc] sm:$0xff]
    %v214 = vld [vmem:[%s4 + $0x14] sm:$0xf]
    %v215 = vld [vmem:[%s4 + $0x18] sm:$0xff]
    %v216 = vld [vmem:[%s4 + $0x20] sm:$0xf]
    %v217 = vld [vmem:[%s4 + $0x24] sm:$0xff]
    %v218 = vld [vmem:[%s4 + $0x2c] sm:$0xf]
    %v219 = vld [vmem:[%s4 + $0x30] sm:$0xff]
    %v220 = vld [vmem:[%s4 + $0x38] sm:$0xf]
    %v221 = vld [vmem:[%s4 + $0x3c] sm:$0xff]
    %v222 = vld [vmem:[%s4 + $0x44] sm:$0xf]
    %v223 = vld [vmem:[%s4 + $0x48] sm:$0xff]
    %v224 = vld [vmem:[%s4 + $0x50] sm:$0xf]
    %v225 = vld [vmem:[%s4 + $0x54] sm:$0xff]
    %v226 = vld [vmem:[%s4 + $0x5c] sm:$0xf]
    %v227 = vld [vmem:[%s4 + $0x60] sm:$0xff]
    %v228 = vld [vmem:[%s4 + $0x68] sm:$0xf]
    %v229 = vld [vmem:[%s4 + $0x6c] sm:$0xff]
    %v230 = vld [vmem:[%s4 + $0x74] sm:$0xf]
    %v231 = vld [vmem:[%s4 + $0x78] sm:$0xff]
    %v232 = vld [vmem:[%s4 + $0x80] sm:$0xf]
    %v233 = vld [vmem:[%s4 + $0x84] sm:$0xff]
    %v234 = vld [vmem:[%s4 + $0x8c] sm:$0xf]
    %v235 = vld [vmem:[%s4 + $0x90] sm:$0xff]
    %v236 = vld [vmem:[%s4 + $0x98] sm:$0xf]
    %v237 = vld [vmem:[%s4 + $0x9c] sm:$0xff]
    %v238 = vld [vmem:[%s4 + $0xa4] sm:$0xf]
    %v239 = vld [vmem:[%s4 + $0xa8] sm:$0xff]
    %v240 = vld [vmem:[%s4 + $0xb0] sm:$0xf]
    %v241 = vld [vmem:[%s4 + $0xb4] sm:$0xff]
    %v242 = vld [vmem:[%s4 + $0xbc] sm:$0xf]
    %v243 = vld [vmem:[%s4 + $0xc0] sm:$0xff]
    %v244 = vld [vmem:[%s4 + $0xc8] sm:$0xf]
    %v245 = vld [vmem:[%s4 + $0xcc] sm:$0xff]
    %v246 = vld [vmem:[%s4 + $0xd4] sm:$0xf]
    %v247 = vld [vmem:[%s4 + $0xd8] sm:$0xff]
    %v248 = vld [vmem:[%s4 + $0xe0] sm:$0xf]
    %v249 = vld [vmem:[%s4 + $0xe4] sm:$0xff]
    %v250 = vld [vmem:[%s4 + $0xec] sm:$0xf]
    %v251 = vld [vmem:[%s4 + $0xf0] sm:$0xff]
    %v252 = vld [vmem:[%s4 + $0xf8] sm:$0xf]
    %v253 = vld [vmem:[%s4 + $0xfc] sm:$0xff]
    %v254 = vld [vmem:[%s4 + $0x104] sm:$0xf]
    %v255 = vld [vmem:[%s4 + $0x108] sm:$0xff]
    %v256 = vld [vmem:[%s4 + $0x110] sm:$0xf]
    %v257 = vld [vmem:[%s4 + $0x114] sm:$0xff]
    %v258 = vld [vmem:[%s4 + $0x11c] sm:$0xf]
    %v259 = vld [vmem:[%s4 + $0x120] sm:$0xff]
    %v260 = vld [vmem:[%s4 + $0x128] sm:$0xf]
    %v261 = vld [vmem:[%s4 + $0x12c] sm:$0xff]
    %v262 = vld [vmem:[%s4 + $0x134] sm:$0xf]
    %v263 = vld [vmem:[%s4 + $0x138] sm:$0xff]
    %v264 = vld [vmem:[%s4 + $0x140] sm:$0xf]
    %v265 = vld [vmem:[%s4 + $0x144] sm:$0xff]
    %v266 = vld [vmem:[%s4 + $0x14c] sm:$0xf]
    %v267 = vld [vmem:[%s4 + $0x150] sm:$0xff]
    %v268 = vld [vmem:[%s4 + $0x158] sm:$0xf]
    %v269 = vld [vmem:[%s4 + $0x15c] sm:$0xff]
    %v270 = vld [vmem:[%s4 + $0x164] sm:$0xf]
    %v271 = vld [vmem:[%s4 + $0x168] sm:$0xff]
    %v272 = vld [vmem:[%s4 + $0x170] sm:$0xf]
    %v273 = vld [vmem:[%s4 + $0x174] sm:$0xff]
    %v274 = vld [vmem:[%s4 + $0x17c] sm:$0xf]
    %v275 = vld [vmem:[%s4 + $0x180] sm:$0xff]
    %v276 = vld [vmem:[%s4 + $0x188] sm:$0xf]
    %v277 = vld [vmem:[%s4 + $0x18c] sm:$0xff]
    %v278 = vld [vmem:[%s4 + $0x194] sm:$0xf]
    %v279 = vld [vmem:[%s4 + $0x198] sm:$0xff]
    %v280 = vld [vmem:[%s4 + $0x1a0] sm:$0xf]
    %v281 = vld [vmem:[%s4 + $0x1a4] sm:$0xff]
    %v282 = vld [vmem:[%s4 + $0x1ac] sm:$0xf]
    %v283 = vld [vmem:[%s4 + $0x1b0] sm:$0xff]
    %v284 = vld [vmem:[%s4 + $0x1b8] sm:$0xf]
    %v285 = vld [vmem:[%s4 + $0x1bc] sm:$0xff]
    %v286 = vld [vmem:[%s4 + $0x1c4] sm:$0xf]
    %v287 = vld [vmem:[%s4 + $0x1c8] sm:$0xff]
    %v288 = vld [vmem:[%s4 + $0x1d0] sm:$0xf]
    %v289 = vld [vmem:[%s4 + $0x1d4] sm:$0xff]
    %v290 = vld [vmem:[%s4 + $0x1dc] sm:$0xf]
    %v291 = vld [vmem:[%s4 + $0x1e0] sm:$0xff]
    %v292 = vld [vmem:[%s4 + $0x1e8] sm:$0xf]
    %v293 = vld [vmem:[%s4 + $0x1ec] sm:$0xff]
    %v294 = vld [vmem:[%s4 + $0x1f4] sm:$0xf]
    %v295 = vld [vmem:[%s4 + $0x1f8] sm:$0xff]
    %v296 = vld [vmem:[%s4 + $0x200] sm:$0xf]
    %v297 = vld [vmem:[%s4 + $0x204] sm:$0xff]
    %v298 = vld [vmem:[%s4 + $0x20c] sm:$0xf]
    %v299 = vld [vmem:[%s4 + $0x210] sm:$0xff]
    %v300 = vld [vmem:[%s4 + $0x218] sm:$0xf]
    %v301 = vld [vmem:[%s4 + $0x21c] sm:$0xff]
    %v302 = vld [vmem:[%s4 + $0x224] sm:$0xf]
    %v303 = vld [vmem:[%s5] sm:$0x7]
    %v305 = vlaneseq
    %v306 = vshrl.u32 %v305, 7
    %v307 = vsub.s32 0, %v306
    %v308 = vrot.slane %v303, %v307
    %v309 = vlaneseq
    %v310 = vshrl.u32 %v309, 7
    %v311 = vsub.s32 1, %v310
    %v312 = vrot.slane %v303, %v311
    %v313 = vlaneseq
    %v314 = vshrl.u32 %v313, 7
    %v315 = vsub.s32 2, %v314
    %v316 = vrot.slane %v303, %v315
    %v412 = vunpack.c.l.b16 %v211
    %v413 = vunpack.c.h.b16 %v211
    %v414 = vunpack.c.l.b16 %v212
    %v415 = vunpack.c.l.b16 %v213
    %v416 = vunpack.c.h.b16 %v213
    %v417 = vunpack.c.l.b16 %v214
    %v418 = vunpack.c.l.b16 %v215
    %v419 = vunpack.c.h.b16 %v215
    %v420 = vunpack.c.l.b16 %v216
    %v421 = vunpack.c.l.b16 %v217
    %v422 = vunpack.c.h.b16 %v217
    %v423 = vunpack.c.l.b16 %v218
    %v424 = vunpack.c.l.b16 %v219
    %v425 = vunpack.c.h.b16 %v219
    %v426 = vunpack.c.l.b16 %v220
    %v427 = vunpack.c.l.b16 %v221
    %v428 = vunpack.c.h.b16 %v221
    %v429 = vunpack.c.l.b16 %v222
    %v430 = vunpack.c.l.b16 %v223
    %v431 = vunpack.c.h.b16 %v223
    %v432 = vunpack.c.l.b16 %v224
    %v433 = vunpack.c.l.b16 %v225
    %v434 = vunpack.c.h.b16 %v225
    %v435 = vunpack.c.l.b16 %v226
    %v436 = vunpack.c.l.b16 %v227
    %v437 = vunpack.c.h.b16 %v227
    %v438 = vunpack.c.l.b16 %v228
    %v439 = vunpack.c.l.b16 %v229
    %v440 = vunpack.c.h.b16 %v229
    %v441 = vunpack.c.l.b16 %v230
    %v442 = vunpack.c.l.b16 %v231
    %v443 = vunpack.c.h.b16 %v231
    %v444 = vunpack.c.l.b16 %v232
    %v445 = vunpack.c.l.b16 %v233
    %v446 = vunpack.c.h.b16 %v233
    %v447 = vunpack.c.l.b16 %v234
    %v448 = vunpack.c.l.b16 %v235
    %v449 = vunpack.c.h.b16 %v235
    %v450 = vunpack.c.l.b16 %v236
    %v451 = vunpack.c.l.b16 %v237
    %v452 = vunpack.c.h.b16 %v237
    %v453 = vunpack.c.l.b16 %v238
    %v454 = vunpack.c.l.b16 %v239
    %v455 = vunpack.c.h.b16 %v239
    %v456 = vunpack.c.l.b16 %v240
    %v457 = vunpack.c.l.b16 %v241
    %v458 = vunpack.c.h.b16 %v241
    %v459 = vunpack.c.l.b16 %v242
    %v460 = vunpack.c.l.b16 %v243
    %v461 = vunpack.c.h.b16 %v243
    %v462 = vunpack.c.l.b16 %v244
    %v463 = vunpack.c.l.b16 %v245
    %v464 = vunpack.c.h.b16 %v245
    %v465 = vunpack.c.l.b16 %v246
    %v466 = vunpack.c.l.b16 %v247
    %v467 = vunpack.c.h.b16 %v247
    %v468 = vunpack.c.l.b16 %v248
    %v469 = vunpack.c.l.b16 %v249
    %v470 = vunpack.c.h.b16 %v249
    %v471 = vunpack.c.l.b16 %v250
    %v472 = vunpack.c.l.b16 %v251
    %v473 = vunpack.c.h.b16 %v251
    %v474 = vunpack.c.l.b16 %v252
    %v475 = vunpack.c.l.b16 %v253
    %v476 = vunpack.c.h.b16 %v253
    %v477 = vunpack.c.l.b16 %v254
    %v478 = vunpack.c.l.b16 %v255
    %v479 = vunpack.c.h.b16 %v255
    %v480 = vunpack.c.l.b16 %v256
    %v481 = vunpack.c.l.b16 %v257
    %v482 = vunpack.c.h.b16 %v257
    %v483 = vunpack.c.l.b16 %v258
    %v484 = vunpack.c.l.b16 %v259
    %v485 = vunpack.c.h.b16 %v259
    %v486 = vunpack.c.l.b16 %v260
    %v487 = vunpack.c.l.b16 %v261
    %v488 = vunpack.c.h.b16 %v261
    %v489 = vunpack.c.l.b16 %v262
    %v490 = vunpack.c.l.b16 %v263
    %v491 = vunpack.c.h.b16 %v263
    %v492 = vunpack.c.l.b16 %v264
    %v493 = vunpack.c.l.b16 %v265
    %v494 = vunpack.c.h.b16 %v265
    %v495 = vunpack.c.l.b16 %v266
    %v496 = vunpack.c.l.b16 %v267
    %v497 = vunpack.c.h.b16 %v267
    %v498 = vunpack.c.l.b16 %v268
    %v499 = vunpack.c.l.b16 %v269
    %v500 = vunpack.c.h.b16 %v269
    %v501 = vunpack.c.l.b16 %v270
    %v502 = vunpack.c.l.b16 %v271
    %v503 = vunpack.c.h.b16 %v271
    %v504 = vunpack.c.l.b16 %v272
    %v505 = vunpack.c.l.b16 %v273
    %v506 = vunpack.c.h.b16 %v273
    %v507 = vunpack.c.l.b16 %v274
    %v508 = vunpack.c.l.b16 %v275
    %v509 = vunpack.c.h.b16 %v275
    %v510 = vunpack.c.l.b16 %v276
    %v511 = vunpack.c.l.b16 %v277
    %v512 = vunpack.c.h.b16 %v277
    %v513 = vunpack.c.l.b16 %v278
    %v514 = vunpack.c.l.b16 %v279
    %v515 = vunpack.c.h.b16 %v279
    %v516 = vunpack.c.l.b16 %v280
    %v517 = vunpack.c.l.b16 %v281
    %v518 = vunpack.c.h.b16 %v281
    %v519 = vunpack.c.l.b16 %v282
    %v520 = vunpack.c.l.b16 %v283
    %v521 = vunpack.c.h.b16 %v283
    %v522 = vunpack.c.l.b16 %v284
    %v523 = vunpack.c.l.b16 %v285
    %v524 = vunpack.c.h.b16 %v285
    %v525 = vunpack.c.l.b16 %v286
    %v526 = vunpack.c.l.b16 %v287
    %v527 = vunpack.c.h.b16 %v287
    %v528 = vunpack.c.l.b16 %v288
    %v529 = vunpack.c.l.b16 %v289
    %v530 = vunpack.c.h.b16 %v289
    %v531 = vunpack.c.l.b16 %v290
    %v532 = vunpack.c.l.b16 %v291
    %v533 = vunpack.c.h.b16 %v291
    %v534 = vunpack.c.l.b16 %v292
    %v535 = vunpack.c.l.b16 %v293
    %v536 = vunpack.c.h.b16 %v293
    %v537 = vunpack.c.l.b16 %v294
    %v538 = vunpack.c.l.b16 %v295
    %v539 = vunpack.c.h.b16 %v295
    %v540 = vunpack.c.l.b16 %v296
    %v541 = vunpack.c.l.b16 %v297
    %v542 = vunpack.c.h.b16 %v297
    %v543 = vunpack.c.l.b16 %v298
    %v544 = vunpack.c.l.b16 %v299
    %v545 = vunpack.c.h.b16 %v299
    %v546 = vunpack.c.l.b16 %v300
    %v547 = vunpack.c.l.b16 %v301
    %v548 = vunpack.c.h.b16 %v301
    %v549 = vunpack.c.l.b16 %v302
    %v550 = vpack.c.b16 %v415, %v412
    %v551 = vpack.c.b16 %v416, %v413
    %v552 = vpack.c.b16 %v417, %v414
    %v553 = vpack.c.b16 %v421, %v418
    %v554 = vpack.c.b16 %v422, %v419
    %v555 = vpack.c.b16 %v423, %v420
    %v556 = vpack.c.b16 %v427, %v424
    %v557 = vpack.c.b16 %v428, %v425
    %v558 = vpack.c.b16 %v429, %v426
    %v559 = vpack.c.b16 %v433, %v430
    %v560 = vpack.c.b16 %v434, %v431
    %v561 = vpack.c.b16 %v435, %v432
    %v562 = vpack.c.b16 %v439, %v436
    %v563 = vpack.c.b16 %v440, %v437
    %v564 = vpack.c.b16 %v441, %v438
    %v565 = vpack.c.b16 %v445, %v442
    %v566 = vpack.c.b16 %v446, %v443
    %v567 = vpack.c.b16 %v447, %v444
    %v568 = vpack.c.b16 %v451, %v448
    %v569 = vpack.c.b16 %v452, %v449
    %v570 = vpack.c.b16 %v453, %v450
    %v571 = vpack.c.b16 %v457, %v454
    %v572 = vpack.c.b16 %v458, %v455
    %v573 = vpack.c.b16 %v459, %v456
    %v574 = vpack.c.b16 %v463, %v460
    %v575 = vpack.c.b16 %v464, %v461
    %v576 = vpack.c.b16 %v465, %v462
    %v577 = vpack.c.b16 %v469, %v466
    %v578 = vpack.c.b16 %v470, %v467
    %v579 = vpack.c.b16 %v471, %v468
    %v580 = vpack.c.b16 %v475, %v472
    %v581 = vpack.c.b16 %v476, %v473
    %v582 = vpack.c.b16 %v477, %v474
    %v583 = vpack.c.b16 %v481, %v478
    %v584 = vpack.c.b16 %v482, %v479
    %v585 = vpack.c.b16 %v483, %v480
    %v586 = vpack.c.b16 %v487, %v484
    %v587 = vpack.c.b16 %v488, %v485
    %v588 = vpack.c.b16 %v489, %v486
    %v589 = vpack.c.b16 %v493, %v490
    %v590 = vpack.c.b16 %v494, %v491
    %v591 = vpack.c.b16 %v495, %v492
    %v592 = vpack.c.b16 %v499, %v496
    %v593 = vpack.c.b16 %v500, %v497
    %v594 = vpack.c.b16 %v501, %v498
    %v595 = vpack.c.b16 %v505, %v502
    %v596 = vpack.c.b16 %v506, %v503
    %v597 = vpack.c.b16 %v507, %v504
    %v598 = vpack.c.b16 %v511, %v508
    %v599 = vpack.c.b16 %v512, %v509
    %v600 = vpack.c.b16 %v513, %v510
    %v601 = vpack.c.b16 %v517, %v514
    %v602 = vpack.c.b16 %v518, %v515
    %v603 = vpack.c.b16 %v519, %v516
    %v604 = vpack.c.b16 %v523, %v520
    %v605 = vpack.c.b16 %v524, %v521
    %v606 = vpack.c.b16 %v525, %v522
    %v607 = vpack.c.b16 %v529, %v526
    %v608 = vpack.c.b16 %v530, %v527
    %v609 = vpack.c.b16 %v531, %v528
    %v610 = vpack.c.b16 %v535, %v532
    %v611 = vpack.c.b16 %v536, %v533
    %v612 = vpack.c.b16 %v537, %v534
    %v613 = vpack.c.b16 %v541, %v538
    %v614 = vpack.c.b16 %v542, %v539
    %v615 = vpack.c.b16 %v543, %v540
    %v616 = vpack.c.b16 %v547, %v544
    %v617 = vpack.c.b16 %v548, %v545
    %v618 = vpack.c.b16 %v549, %v546
    %vm688 = vcmask 916480
    %v690 = vsel %vm688, %v210, 0
    %692 = vmatprep.subr.bf16.mxu0 %v572
    %693 = vmatpush1.bf16.msra.mxu0 %v571
    %694 = vmatprep.subr.bf16.mxu0 %v569
    %695 = vmatpush1.bf16.msra.mxu0 %v568
    %696 = vmatprep.subr.bf16.mxu0 %v566
    %697 = vmatpush1.bf16.msra.mxu0 %v565
    %698 = vmatprep.subr.bf16.mxu0 %v563
    %699 = vmatpush1.bf16.msra.mxu0 %v562
    %700 = vmatprep.subr.bf16.mxu0 %v560
    %701 = vmatpush1.bf16.msra.mxu0 %v559
    %702 = vmatprep.subr.bf16.mxu0 %v557
    %703 = vmatpush1.bf16.msra.mxu0 %v556
    %704 = vmatprep.subr.bf16.mxu0 %v554
    %705 = vmatpush1.bf16.msra.mxu0 %v553
    %706 = vmatprep.subr.bf16.mxu0 %v551
    %707 = vmatpush1.bf16.msra.mxu0 %v550
    %708 = vmatprep.subr.bf16.mxu0 %v596
    %709 = vmatpush2.bf16.msra.mxu0 %v595
    %710 = vmatprep.subr.bf16.mxu0 %v593
    %711 = vmatpush2.bf16.msra.mxu0 %v592
    %712 = vmatprep.subr.bf16.mxu0 %v590
    %713 = vmatpush2.bf16.msra.mxu0 %v589
    %714 = vmatprep.subr.bf16.mxu0 %v587
    %715 = vmatpush2.bf16.msra.mxu0 %v586
    %716 = vmatprep.subr.bf16.mxu0 %v584
    %717 = vmatpush2.bf16.msra.mxu0 %v583
    %718 = vmatprep.subr.bf16.mxu0 %v581
    %719 = vmatpush2.bf16.msra.mxu0 %v580
    %720 = vmatprep.subr.bf16.mxu0 %v578
    %721 = vmatpush2.bf16.msra.mxu0 %v577
    %722 = vmatprep.subr.bf16.mxu0 %v575
    %723 = vmatpush2.bf16.msra.mxu0 %v574
    %724 = vmatprep.mubr.bf16.mxu0 %v209
    %725 = vmatmul.mubr.bf16.gmra.mxu0 %v208
    %v726 = vpop.f32.mrf.mxu0
    %v727 = vadd.f32 %v308, %v726
    %v728 = vpop.f32.mrf.mxu0
    %v729 = vadd.f32 %v312, %v728
    %v730 = vpop.f32.mrf.mxu0
    %v731 = vpop.f32.mrf.mxu0
    %732 = vdwg.mxu0
    %733 = vmatprep.subr.bf16.mxu0 0
    %734 = vmatpush1.bf16.msra.mxu0 0
    %735 = vmatprep.subr.bf16.mxu0 %v617
    %736 = vmatpush1.bf16.msra.mxu0 %v616
    %737 = vmatprep.subr.bf16.mxu0 %v614
    %738 = vmatpush1.bf16.msra.mxu0 %v613
    %739 = vmatprep.subr.bf16.mxu0 %v611
    %740 = vmatpush1.bf16.msra.mxu0 %v610
    %741 = vmatprep.subr.bf16.mxu0 %v608
    %742 = vmatpush1.bf16.msra.mxu0 %v607
    %743 = vmatprep.subr.bf16.mxu0 %v605
    %744 = vmatpush1.bf16.msra.mxu0 %v604
    %745 = vmatprep.subr.bf16.mxu0 %v602
    %746 = vmatpush1.bf16.msra.mxu0 %v601
    %747 = vmatprep.subr.bf16.mxu0 %v599
    %748 = vmatpush1.bf16.msra.mxu0 %v598
    %749 = vmatprep.subr.bf16.mxu0 0
    %750 = vmatpush2.bf16.msra.mxu0 0
    %751 = vmatprep.subr.bf16.mxu0 0
    %752 = vmatpush2.bf16.msra.mxu0 0
    %753 = vmatprep.subr.bf16.mxu0 0
    %754 = vmatpush2.bf16.msra.mxu0 0
    %755 = vmatprep.subr.bf16.mxu0 0
    %756 = vmatpush2.bf16.msra.mxu0 0
    %757 = vmatprep.subr.bf16.mxu0 0
    %758 = vmatpush2.bf16.msra.mxu0 0
    %759 = vmatprep.subr.bf16.mxu0 0
    %760 = vmatpush2.bf16.msra.mxu0 0
    %761 = vmatprep.subr.bf16.mxu0 0
    %762 = vmatpush2.bf16.msra.mxu0 0
    %763 = vmatprep.subr.bf16.mxu0 0
    %764 = vmatpush2.bf16.msra.mxu0 0
    %765 = vmatprep.mubr.bf16.mxu0 0
    %766 = vmatmul.mubr.bf16.gmra.mxu0 %v690
    %v767 = vpop.f32.mrf.mxu0
    %v768 = vadd.f32 %v727, %v767
    %v769 = vpop.f32.mrf.mxu0
    %v770 = vadd.f32 %v729, %v769
    %v771 = vpop.f32.mrf.mxu0
    %v772 = vpop.f32.mrf.mxu0
    %773 = vdwg.mxu0
    %774 = vmatprep.subr.bf16.mxu0 0
    %775 = vmatpush1.bf16.msra.mxu0 %v573
    %776 = vmatprep.subr.bf16.mxu0 0
    %777 = vmatpush1.bf16.msra.mxu0 %v570
    %778 = vmatprep.subr.bf16.mxu0 0
    %779 = vmatpush1.bf16.msra.mxu0 %v567
    %780 = vmatprep.subr.bf16.mxu0 0
    %781 = vmatpush1.bf16.msra.mxu0 %v564
    %782 = vmatprep.subr.bf16.mxu0 0
    %783 = vmatpush1.bf16.msra.mxu0 %v561
    %784 = vmatprep.subr.bf16.mxu0 0
    %785 = vmatpush1.bf16.msra.mxu0 %v558
    %786 = vmatprep.subr.bf16.mxu0 0
    %787 = vmatpush1.bf16.msra.mxu0 %v555
    %788 = vmatprep.subr.bf16.mxu0 0
    %789 = vmatpush1.bf16.msra.mxu0 %v552
    %790 = vmatprep.subr.bf16.mxu0 0
    %791 = vmatpush2.bf16.msra.mxu0 %v597
    %792 = vmatprep.subr.bf16.mxu0 0
    %793 = vmatpush2.bf16.msra.mxu0 %v594
    %794 = vmatprep.subr.bf16.mxu0 0
    %795 = vmatpush2.bf16.msra.mxu0 %v591
    %796 = vmatprep.subr.bf16.mxu0 0
    %797 = vmatpush2.bf16.msra.mxu0 %v588
    %798 = vmatprep.subr.bf16.mxu0 0
    %799 = vmatpush2.bf16.msra.mxu0 %v585
    %800 = vmatprep.subr.bf16.mxu0 0
    %801 = vmatpush2.bf16.msra.mxu0 %v582
    %802 = vmatprep.subr.bf16.mxu0 0
    %803 = vmatpush2.bf16.msra.mxu0 %v579
    %804 = vmatprep.subr.bf16.mxu0 0
    %805 = vmatpush2.bf16.msra.mxu0 %v576
    %806 = vmatprep.mubr.bf16.mxu0 %v209
    %807 = vmatmul.mubr.bf16.gmra.mxu0 %v208
    %v808 = vpop.f32.mrf.mxu0
    %v809 = vadd.f32 %v316, %v808
    %v810 = vpop.f32.mrf.mxu0
    %v811 = vpop.f32.mrf.mxu0
    %v812 = vpop.f32.mrf.mxu0
    %813 = vdwg.mxu0
    %814 = vmatprep.subr.bf16.mxu0 0
    %815 = vmatpush1.bf16.msra.mxu0 0
    %816 = vmatprep.subr.bf16.mxu0 0
    %817 = vmatpush1.bf16.msra.mxu0 %v618
    %818 = vmatprep.subr.bf16.mxu0 0
    %819 = vmatpush1.bf16.msra.mxu0 %v615
    %820 = vmatprep.subr.bf16.mxu0 0
    %821 = vmatpush1.bf16.msra.mxu0 %v612
    %822 = vmatprep.subr.bf16.mxu0 0
    %823 = vmatpush1.bf16.msra.mxu0 %v609
    %824 = vmatprep.subr.bf16.mxu0 0
    %825 = vmatpush1.bf16.msra.mxu0 %v606
    %826 = vmatprep.subr.bf16.mxu0 0
    %827 = vmatpush1.bf16.msra.mxu0 %v603
    %828 = vmatprep.subr.bf16.mxu0 0
    %829 = vmatpush1.bf16.msra.mxu0 %v600
    %830 = vmatprep.subr.bf16.mxu0 0
    %831 = vmatpush2.bf16.msra.mxu0 0
    %832 = vmatprep.subr.bf16.mxu0 0
    %833 = vmatpush2.bf16.msra.mxu0 0
    %834 = vmatprep.subr.bf16.mxu0 0
    %835 = vmatpush2.bf16.msra.mxu0 0
    %836 = vmatprep.subr.bf16.mxu0 0
    %837 = vmatpush2.bf16.msra.mxu0 0
    %838 = vmatprep.subr.bf16.mxu0 0
    %839 = vmatpush2.bf16.msra.mxu0 0
    %840 = vmatprep.subr.bf16.mxu0 0
    %841 = vmatpush2.bf16.msra.mxu0 0
    %842 = vmatprep.subr.bf16.mxu0 0
    %843 = vmatpush2.bf16.msra.mxu0 0
    %844 = vmatprep.subr.bf16.mxu0 0
    %845 = vmatpush2.bf16.msra.mxu0 0
    %846 = vmatprep.mubr.bf16.mxu0 0
    %847 = vmatmul.mubr.bf16.gmra.mxu0 %v690
    %v848 = vpop.f32.mrf.mxu0
    %v849 = vadd.f32 %v809, %v848
    %v850 = vpop.f32.mrf.mxu0
    %v851 = vpop.f32.mrf.mxu0
    %v852 = vpop.f32.mrf.mxu0
    %853 = vdwg.mxu0
    %v854 = vmax.f32 %v768, 0.0
    %v855 = vmax.f32 %v770, 0.0
    %v856 = vmax.f32 %v849, 0.0
    %v857 = vpack.c.bf16 %v854, %v854
    %v858 = vpack.c.bf16 %v855, %v855
    %v859 = vpack.c.bf16 %v856, %v856
    %v860 = vld [vmem:[%s6] sm:$0xff]
    %v861 = vld [vmem:[%s6 + $0x8] sm:$0xff]
    %v862 = vld [vmem:[%s6 + $0x10] sm:$0xff]
    %v863 = vld [vmem:[%s6 + $0x18] sm:$0xff]
    %v864 = vld [vmem:[%s6 + $0x20] sm:$0xff]
    %v865 = vld [vmem:[%s6 + $0x28] sm:$0xff]
    %v866 = vld [vmem:[%s6 + $0x30] sm:$0xff]
    %v867 = vld [vmem:[%s6 + $0x38] sm:$0xff]
    %v868 = vld [vmem:[%s6 + $0x40] sm:$0xff]
    %v869 = vld [vmem:[%s6 + $0x48] sm:$0xff]
    %v870 = vld [vmem:[%s6 + $0x50] sm:$0xff]
    %v871 = vld [vmem:[%s6 + $0x58] sm:$0xff]
    %v872 = vld [vmem:[%s6 + $0x60] sm:$0xff]
    %v873 = vld [vmem:[%s6 + $0x68] sm:$0xff]
    %v874 = vld [vmem:[%s6 + $0x70] sm:$0xff]
    %v875 = vld [vmem:[%s6 + $0x78] sm:$0xff]
    %v876 = vld [vmem:[%s6 + $0x80] sm:$0xff]
    %v877 = vld [vmem:[%s6 + $0x88] sm:$0xff]
    %v878 = vld [vmem:[%s6 + $0x90] sm:$0xff]
    %v879 = vld [vmem:[%s6 + $0x98] sm:$0xff]
    %v880 = vld [vmem:[%s6 + $0xa0] sm:$0xff]
    %v881 = vld [vmem:[%s6 + $0xa8] sm:$0xff]
    %v882 = vld [vmem:[%s6 + $0xb0] sm:$0xff]
    %v883 = vld [vmem:[%s6 + $0xb8] sm:$0xff]
    %v884 = vld [vmem:[%s6 + $0xc0] sm:$0xff]
    %v885 = vld [vmem:[%s6 + $0xc8] sm:$0xff]
    %v886 = vld [vmem:[%s6 + $0xd0] sm:$0xff]
    %v887 = vld [vmem:[%s6 + $0xd8] sm:$0xff]
    %v888 = vld [vmem:[%s6 + $0xe0] sm:$0xff]
    %v889 = vld [vmem:[%s6 + $0xe8] sm:$0xff]
    %v890 = vld [vmem:[%s6 + $0xf0] sm:$0xff]
    %v891 = vld [vmem:[%s6 + $0xf8] sm:$0xff]
    %v892 = vld [vmem:[%s6 + $0x100] sm:$0xff]
    %v893 = vld [vmem:[%s6 + $0x108] sm:$0xff]
    %v894 = vld [vmem:[%s6 + $0x110] sm:$0xff]
    %v895 = vld [vmem:[%s6 + $0x118] sm:$0xff]
    %v896 = vld [vmem:[%s6 + $0x120] sm:$0xff]
    %v897 = vld [vmem:[%s6 + $0x128] sm:$0xff]
    %v898 = vld [vmem:[%s6 + $0x130] sm:$0xff]
    %v899 = vld [vmem:[%s6 + $0x138] sm:$0xff]
    %v900 = vld [vmem:[%s6 + $0x140] sm:$0xff]
    %v901 = vld [vmem:[%s6 + $0x148] sm:$0xff]
    %v902 = vld [vmem:[%s6 + $0x150] sm:$0xff]
    %v903 = vld [vmem:[%s6 + $0x158] sm:$0xff]
    %v904 = vld [vmem:[%s6 + $0x160] sm:$0xff]
    %v905 = vld [vmem:[%s6 + $0x168] sm:$0xff]
    %v906 = vld [vmem:[%s6 + $0x170] sm:$0xff]
    %v907 = vld [vmem:[%s6 + $0x178] sm:$0xff]
    %v908 = vld [vmem:[%s6 + $0x180] sm:$0xff]
    %v909 = vld [vmem:[%s6 + $0x188] sm:$0xff]
    %v910 = vld [vmem:[%s6 + $0x190] sm:$0xff]
    %v911 = vld [vmem:[%s6 + $0x198] sm:$0xff]
    %v912 = vld [vmem:[%s6 + $0x1a0] sm:$0xff]
    %v913 = vld [vmem:[%s6 + $0x1a8] sm:$0xff]
    %v914 = vld [vmem:[%s6 + $0x1b0] sm:$0xff]
    %v915 = vld [vmem:[%s6 + $0x1b8] sm:$0xff]
    %v916 = vld [vmem:[%s6 + $0x1c0] sm:$0xff]
    %v917 = vld [vmem:[%s6 + $0x1c8] sm:$0xff]
    %v918 = vld [vmem:[%s6 + $0x1d0] sm:$0xff]
    %v919 = vld [vmem:[%s6 + $0x1d8] sm:$0xff]
    %v920 = vld [vmem:[%s6 + $0x1e0] sm:$0xff]
    %v921 = vld [vmem:[%s6 + $0x1e8] sm:$0xff]
    %v922 = vld [vmem:[%s6 + $0x1f0] sm:$0xff]
    %v923 = vld [vmem:[%s6 + $0x1f8] sm:$0xff]
    %v924 = vld [vmem:[%s6 + $0x200] sm:$0xff]
    %v925 = vld [vmem:[%s6 + $0x208] sm:$0xff]
    %v926 = vld [vmem:[%s6 + $0x210] sm:$0xff]
    %v927 = vld [vmem:[%s6 + $0x218] sm:$0xff]
    %v928 = vld [vmem:[%s6 + $0x220] sm:$0xff]
    %v929 = vld [vmem:[%s6 + $0x228] sm:$0xff]
    %v930 = vld [vmem:[%s6 + $0x230] sm:$0xff]
    %v931 = vld [vmem:[%s6 + $0x238] sm:$0xff]
    %v932 = vld [vmem:[%s6 + $0x240] sm:$0xff]
    %v933 = vld [vmem:[%s6 + $0x248] sm:$0xff]
    %v934 = vld [vmem:[%s6 + $0x250] sm:$0xff]
    %v935 = vld [vmem:[%s6 + $0x258] sm:$0xff]
    %v936 = vld [vmem:[%s6 + $0x260] sm:$0xff]
    %v937 = vld [vmem:[%s6 + $0x268] sm:$0xff]
    %v938 = vld [vmem:[%s6 + $0x270] sm:$0xff]
    %v939 = vld [vmem:[%s6 + $0x278] sm:$0xff]
    %v940 = vld [vmem:[%s6 + $0x280] sm:$0xff]
    %v941 = vld [vmem:[%s6 + $0x288] sm:$0xff]
    %v942 = vld [vmem:[%s6 + $0x290] sm:$0xff]
    %v943 = vld [vmem:[%s6 + $0x298] sm:$0xff]
    %v944 = vld [vmem:[%s6 + $0x2a0] sm:$0xff]
    %v945 = vld [vmem:[%s6 + $0x2a8] sm:$0xff]
    %v946 = vld [vmem:[%s6 + $0x2b0] sm:$0xff]
    %v947 = vld [vmem:[%s6 + $0x2b8] sm:$0xff]
    %v948 = vld [vmem:[%s6 + $0x2c0] sm:$0xff]
    %v949 = vld [vmem:[%s6 + $0x2c8] sm:$0xff]
    %v950 = vld [vmem:[%s6 + $0x2d0] sm:$0xff]
    %v951 = vld [vmem:[%s6 + $0x2d8] sm:$0xff]
    %v952 = vld [vmem:[%s6 + $0x2e0] sm:$0xff]
    %v953 = vld [vmem:[%s6 + $0x2e8] sm:$0xff]
    %v954 = vld [vmem:[%s6 + $0x2f0] sm:$0xff]
    %v955 = vld [vmem:[%s6 + $0x2f8] sm:$0xff]
    %v956 = vld [vmem:[%s6 + $0x300] sm:$0xff]
    %v957 = vld [vmem:[%s6 + $0x308] sm:$0xff]
    %v958 = vld [vmem:[%s6 + $0x310] sm:$0xff]
    %v959 = vld [vmem:[%s6 + $0x318] sm:$0xff]
    %v960 = vld [vmem:[%s6 + $0x320] sm:$0xff]
    %v961 = vld [vmem:[%s6 + $0x328] sm:$0xff]
    %v962 = vld [vmem:[%s6 + $0x330] sm:$0xff]
    %v963 = vld [vmem:[%s6 + $0x338] sm:$0xff]
    %v964 = vld [vmem:[%s6 + $0x340] sm:$0xff]
    %v965 = vld [vmem:[%s6 + $0x348] sm:$0xff]
    %v966 = vld [vmem:[%s6 + $0x350] sm:$0xff]
    %v967 = vld [vmem:[%s6 + $0x358] sm:$0xff]
    %v968 = vld [vmem:[%s6 + $0x360] sm:$0xff]
    %v969 = vld [vmem:[%s6 + $0x368] sm:$0xff]
    %v970 = vld [vmem:[%s6 + $0x370] sm:$0xff]
    %v971 = vld [vmem:[%s6 + $0x378] sm:$0xff]
    %v972 = vld [vmem:[%s6 + $0x380] sm:$0xff]
    %v973 = vld [vmem:[%s6 + $0x388] sm:$0xff]
    %v974 = vld [vmem:[%s6 + $0x390] sm:$0xff]
    %v975 = vld [vmem:[%s6 + $0x398] sm:$0xff]
    %v976 = vld [vmem:[%s6 + $0x3a0] sm:$0xff]
    %v977 = vld [vmem:[%s6 + $0x3a8] sm:$0xff]
    %v978 = vld [vmem:[%s6 + $0x3b0] sm:$0xff]
    %v979 = vld [vmem:[%s6 + $0x3b8] sm:$0xff]
    %v980 = vld [vmem:[%s6 + $0x3c0] sm:$0xff]
    %v981 = vld [vmem:[%s6 + $0x3c8] sm:$0xff]
    %v982 = vld [vmem:[%s6 + $0x3d0] sm:$0xff]
    %v983 = vld [vmem:[%s6 + $0x3d8] sm:$0xff]
    %v984 = vld [vmem:[%s6 + $0x3e0] sm:$0xff]
    %v985 = vld [vmem:[%s6 + $0x3e8] sm:$0xff]
    %v986 = vld [vmem:[%s6 + $0x3f0] sm:$0xff]
    %v987 = vld [vmem:[%s6 + $0x3f8] sm:$0xff]
    %v988 = vld [vmem:[%s6 + $0x400] sm:$0xff]
    %v989 = vld [vmem:[%s6 + $0x408] sm:$0xff]
    %v990 = vld [vmem:[%s6 + $0x410] sm:$0xff]
    %v991 = vld [vmem:[%s6 + $0x418] sm:$0xff]
    %v992 = vld [vmem:[%s6 + $0x420] sm:$0xff]
    %v993 = vld [vmem:[%s6 + $0x428] sm:$0xff]
    %v994 = vld [vmem:[%s6 + $0x430] sm:$0xff]
    %v995 = vld [vmem:[%s6 + $0x438] sm:$0xff]
    %v996 = vld [vmem:[%s6 + $0x440] sm:$0xff]
    %v997 = vld [vmem:[%s6 + $0x448] sm:$0xff]
    %v998 = vld [vmem:[%s6 + $0x450] sm:$0xff]
    %v999 = vld [vmem:[%s6 + $0x458] sm:$0xff]
    %v1000 = vld [vmem:[%s6 + $0x460] sm:$0xff]
    %v1001 = vld [vmem:[%s6 + $0x468] sm:$0xff]
    %v1002 = vld [vmem:[%s6 + $0x470] sm:$0xff]
    %v1003 = vld [vmem:[%s6 + $0x478] sm:$0xff]
    %v1004 = vld [vmem:[%s7] sm:$0x3f]
    %v1006 = vlaneseq
    %v1007 = vshrl.u32 %v1006, 7
    %v1008 = vsub.s32 0, %v1007
    %v1009 = vrot.slane %v1004, %v1008
    %v1010 = vlaneseq
    %v1011 = vshrl.u32 %v1010, 7
    %v1012 = vsub.s32 1, %v1011
    %v1013 = vrot.slane %v1004, %v1012
    %v1014 = vlaneseq
    %v1015 = vshrl.u32 %v1014, 7
    %v1016 = vsub.s32 2, %v1015
    %v1017 = vrot.slane %v1004, %v1016
    %v1018 = vlaneseq
    %v1019 = vshrl.u32 %v1018, 7
    %v1020 = vsub.s32 3, %v1019
    %v1021 = vrot.slane %v1004, %v1020
    %v1022 = vlaneseq
    %v1023 = vshrl.u32 %v1022, 7
    %v1024 = vsub.s32 4, %v1023
    %v1025 = vrot.slane %v1004, %v1024
    %v1026 = vlaneseq
    %v1027 = vshrl.u32 %v1026, 7
    %v1028 = vsub.s32 5, %v1027
    %v1029 = vrot.slane %v1004, %v1028
    %v1180 = vunpack.c.l.b16 %v860
    %v1181 = vunpack.c.h.b16 %v860
    %v1182 = vunpack.c.l.b16 %v861
    %v1183 = vunpack.c.h.b16 %v861
    %v1184 = vunpack.c.l.b16 %v862
    %v1185 = vunpack.c.h.b16 %v862
    %v1186 = vunpack.c.l.b16 %v863
    %v1187 = vunpack.c.h.b16 %v863
    %v1188 = vunpack.c.l.b16 %v864
    %v1189 = vunpack.c.h.b16 %v864
    %v1190 = vunpack.c.l.b16 %v865
    %v1191 = vunpack.c.h.b16 %v865
    %v1192 = vunpack.c.l.b16 %v866
    %v1193 = vunpack.c.h.b16 %v866
    %v1194 = vunpack.c.l.b16 %v867
    %v1195 = vunpack.c.h.b16 %v867
    %v1196 = vunpack.c.l.b16 %v868
    %v1197 = vunpack.c.h.b16 %v868
    %v1198 = vunpack.c.l.b16 %v869
    %v1199 = vunpack.c.h.b16 %v869
    %v1200 = vunpack.c.l.b16 %v870
    %v1201 = vunpack.c.h.b16 %v870
    %v1202 = vunpack.c.l.b16 %v871
    %v1203 = vunpack.c.h.b16 %v871
    %v1204 = vunpack.c.l.b16 %v872
    %v1205 = vunpack.c.h.b16 %v872
    %v1206 = vunpack.c.l.b16 %v873
    %v1207 = vunpack.c.h.b16 %v873
    %v1208 = vunpack.c.l.b16 %v874
    %v1209 = vunpack.c.h.b16 %v874
    %v1210 = vunpack.c.l.b16 %v875
    %v1211 = vunpack.c.h.b16 %v875
    %v1212 = vunpack.c.l.b16 %v876
    %v1213 = vunpack.c.h.b16 %v876
    %v1214 = vunpack.c.l.b16 %v877
    %v1215 = vunpack.c.h.b16 %v877
    %v1216 = vunpack.c.l.b16 %v878
    %v1217 = vunpack.c.h.b16 %v878
    %v1218 = vunpack.c.l.b16 %v879
    %v1219 = vunpack.c.h.b16 %v879
    %v1220 = vunpack.c.l.b16 %v880
    %v1221 = vunpack.c.h.b16 %v880
    %v1222 = vunpack.c.l.b16 %v881
    %v1223 = vunpack.c.h.b16 %v881
    %v1224 = vunpack.c.l.b16 %v882
    %v1225 = vunpack.c.h.b16 %v882
    %v1226 = vunpack.c.l.b16 %v883
    %v1227 = vunpack.c.h.b16 %v883
    %v1228 = vunpack.c.l.b16 %v884
    %v1229 = vunpack.c.h.b16 %v884
    %v1230 = vunpack.c.l.b16 %v885
    %v1231 = vunpack.c.h.b16 %v885
    %v1232 = vunpack.c.l.b16 %v886
    %v1233 = vunpack.c.h.b16 %v886
    %v1234 = vunpack.c.l.b16 %v887
    %v1235 = vunpack.c.h.b16 %v887
    %v1236 = vunpack.c.l.b16 %v888
    %v1237 = vunpack.c.h.b16 %v888
    %v1238 = vunpack.c.l.b16 %v889
    %v1239 = vunpack.c.h.b16 %v889
    %v1240 = vunpack.c.l.b16 %v890
    %v1241 = vunpack.c.h.b16 %v890
    %v1242 = vunpack.c.l.b16 %v891
    %v1243 = vunpack.c.h.b16 %v891
    %v1244 = vunpack.c.l.b16 %v892
    %v1245 = vunpack.c.h.b16 %v892
    %v1246 = vunpack.c.l.b16 %v893
    %v1247 = vunpack.c.h.b16 %v893
    %v1248 = vunpack.c.l.b16 %v894
    %v1249 = vunpack.c.h.b16 %v894
    %v1250 = vunpack.c.l.b16 %v895
    %v1251 = vunpack.c.h.b16 %v895
    %v1252 = vunpack.c.l.b16 %v896
    %v1253 = vunpack.c.h.b16 %v896
    %v1254 = vunpack.c.l.b16 %v897
    %v1255 = vunpack.c.h.b16 %v897
    %v1256 = vunpack.c.l.b16 %v898
    %v1257 = vunpack.c.h.b16 %v898
    %v1258 = vunpack.c.l.b16 %v899
    %v1259 = vunpack.c.h.b16 %v899
    %v1260 = vunpack.c.l.b16 %v900
    %v1261 = vunpack.c.h.b16 %v900
    %v1262 = vunpack.c.l.b16 %v901
    %v1263 = vunpack.c.h.b16 %v901
    %v1264 = vunpack.c.l.b16 %v902
    %v1265 = vunpack.c.h.b16 %v902
    %v1266 = vunpack.c.l.b16 %v903
    %v1267 = vunpack.c.h.b16 %v903
    %v1268 = vunpack.c.l.b16 %v904
    %v1269 = vunpack.c.h.b16 %v904
    %v1270 = vunpack.c.l.b16 %v905
    %v1271 = vunpack.c.h.b16 %v905
    %v1272 = vunpack.c.l.b16 %v906
    %v1273 = vunpack.c.h.b16 %v906
    %v1274 = vunpack.c.l.b16 %v907
    %v1275 = vunpack.c.h.b16 %v907
    %v1276 = vunpack.c.l.b16 %v908
    %v1277 = vunpack.c.h.b16 %v908
    %v1278 = vunpack.c.l.b16 %v909
    %v1279 = vunpack.c.h.b16 %v909
    %v1280 = vunpack.c.l.b16 %v910
    %v1281 = vunpack.c.h.b16 %v910
    %v1282 = vunpack.c.l.b16 %v911
    %v1283 = vunpack.c.h.b16 %v911
    %v1284 = vunpack.c.l.b16 %v912
    %v1285 = vunpack.c.h.b16 %v912
    %v1286 = vunpack.c.l.b16 %v913
    %v1287 = vunpack.c.h.b16 %v913
    %v1288 = vunpack.c.l.b16 %v914
    %v1289 = vunpack.c.h.b16 %v914
    %v1290 = vunpack.c.l.b16 %v915
    %v1291 = vunpack.c.h.b16 %v915
    %v1292 = vunpack.c.l.b16 %v916
    %v1293 = vunpack.c.h.b16 %v916
    %v1294 = vunpack.c.l.b16 %v917
    %v1295 = vunpack.c.h.b16 %v917
    %v1296 = vunpack.c.l.b16 %v918
    %v1297 = vunpack.c.h.b16 %v918
    %v1298 = vunpack.c.l.b16 %v919
    %v1299 = vunpack.c.h.b16 %v919
    %v1300 = vunpack.c.l.b16 %v920
    %v1301 = vunpack.c.h.b16 %v920
    %v1302 = vunpack.c.l.b16 %v921
    %v1303 = vunpack.c.h.b16 %v921
    %v1304 = vunpack.c.l.b16 %v922
    %v1305 = vunpack.c.h.b16 %v922
    %v1306 = vunpack.c.l.b16 %v923
    %v1307 = vunpack.c.h.b16 %v923
    %v1308 = vunpack.c.l.b16 %v924
    %v1309 = vunpack.c.h.b16 %v924
    %v1310 = vunpack.c.l.b16 %v925
    %v1311 = vunpack.c.h.b16 %v925
    %v1312 = vunpack.c.l.b16 %v926
    %v1313 = vunpack.c.h.b16 %v926
    %v1314 = vunpack.c.l.b16 %v927
    %v1315 = vunpack.c.h.b16 %v927
    %v1316 = vunpack.c.l.b16 %v928
    %v1317 = vunpack.c.h.b16 %v928
    %v1318 = vunpack.c.l.b16 %v929
    %v1319 = vunpack.c.h.b16 %v929
    %v1320 = vunpack.c.l.b16 %v930
    %v1321 = vunpack.c.h.b16 %v930
    %v1322 = vunpack.c.l.b16 %v931
    %v1323 = vunpack.c.h.b16 %v931
    %v1324 = vunpack.c.l.b16 %v932
    %v1325 = vunpack.c.h.b16 %v932
    %v1326 = vunpack.c.l.b16 %v933
    %v1327 = vunpack.c.h.b16 %v933
    %v1328 = vunpack.c.l.b16 %v934
    %v1329 = vunpack.c.h.b16 %v934
    %v1330 = vunpack.c.l.b16 %v935
    %v1331 = vunpack.c.h.b16 %v935
    %v1332 = vunpack.c.l.b16 %v936
    %v1333 = vunpack.c.h.b16 %v936
    %v1334 = vunpack.c.l.b16 %v937
    %v1335 = vunpack.c.h.b16 %v937
    %v1336 = vunpack.c.l.b16 %v938
    %v1337 = vunpack.c.h.b16 %v938
    %v1338 = vunpack.c.l.b16 %v939
    %v1339 = vunpack.c.h.b16 %v939
    %v1340 = vunpack.c.l.b16 %v940
    %v1341 = vunpack.c.h.b16 %v940
    %v1342 = vunpack.c.l.b16 %v941
    %v1343 = vunpack.c.h.b16 %v941
    %v1344 = vunpack.c.l.b16 %v942
    %v1345 = vunpack.c.h.b16 %v942
    %v1346 = vunpack.c.l.b16 %v943
    %v1347 = vunpack.c.h.b16 %v943
    %v1348 = vunpack.c.l.b16 %v944
    %v1349 = vunpack.c.h.b16 %v944
    %v1350 = vunpack.c.l.b16 %v945
    %v1351 = vunpack.c.h.b16 %v945
    %v1352 = vunpack.c.l.b16 %v946
    %v1353 = vunpack.c.h.b16 %v946
    %v1354 = vunpack.c.l.b16 %v947
    %v1355 = vunpack.c.h.b16 %v947
    %v1356 = vunpack.c.l.b16 %v948
    %v1357 = vunpack.c.h.b16 %v948
    %v1358 = vunpack.c.l.b16 %v949
    %v1359 = vunpack.c.h.b16 %v949
    %v1360 = vunpack.c.l.b16 %v950
    %v1361 = vunpack.c.h.b16 %v950
    %v1362 = vunpack.c.l.b16 %v951
    %v1363 = vunpack.c.h.b16 %v951
    %v1364 = vunpack.c.l.b16 %v952
    %v1365 = vunpack.c.h.b16 %v952
    %v1366 = vunpack.c.l.b16 %v953
    %v1367 = vunpack.c.h.b16 %v953
    %v1368 = vunpack.c.l.b16 %v954
    %v1369 = vunpack.c.h.b16 %v954
    %v1370 = vunpack.c.l.b16 %v955
    %v1371 = vunpack.c.h.b16 %v955
    %v1372 = vunpack.c.l.b16 %v956
    %v1373 = vunpack.c.h.b16 %v956
    %v1374 = vunpack.c.l.b16 %v957
    %v1375 = vunpack.c.h.b16 %v957
    %v1376 = vunpack.c.l.b16 %v958
    %v1377 = vunpack.c.h.b16 %v958
    %v1378 = vunpack.c.l.b16 %v959
    %v1379 = vunpack.c.h.b16 %v959
    %v1380 = vunpack.c.l.b16 %v960
    %v1381 = vunpack.c.h.b16 %v960
    %v1382 = vunpack.c.l.b16 %v961
    %v1383 = vunpack.c.h.b16 %v961
    %v1384 = vunpack.c.l.b16 %v962
    %v1385 = vunpack.c.h.b16 %v962
    %v1386 = vunpack.c.l.b16 %v963
    %v1387 = vunpack.c.h.b16 %v963
    %v1388 = vunpack.c.l.b16 %v964
    %v1389 = vunpack.c.h.b16 %v964
    %v1390 = vunpack.c.l.b16 %v965
    %v1391 = vunpack.c.h.b16 %v965
    %v1392 = vunpack.c.l.b16 %v966
    %v1393 = vunpack.c.h.b16 %v966
    %v1394 = vunpack.c.l.b16 %v967
    %v1395 = vunpack.c.h.b16 %v967
    %v1396 = vunpack.c.l.b16 %v968
    %v1397 = vunpack.c.h.b16 %v968
    %v1398 = vunpack.c.l.b16 %v969
    %v1399 = vunpack.c.h.b16 %v969
    %v1400 = vunpack.c.l.b16 %v970
    %v1401 = vunpack.c.h.b16 %v970
    %v1402 = vunpack.c.l.b16 %v971
    %v1403 = vunpack.c.h.b16 %v971
    %v1404 = vunpack.c.l.b16 %v972
    %v1405 = vunpack.c.h.b16 %v972
    %v1406 = vunpack.c.l.b16 %v973
    %v1407 = vunpack.c.h.b16 %v973
    %v1408 = vunpack.c.l.b16 %v974
    %v1409 = vunpack.c.h.b16 %v974
    %v1410 = vunpack.c.l.b16 %v975
    %v1411 = vunpack.c.h.b16 %v975
    %v1412 = vunpack.c.l.b16 %v976
    %v1413 = vunpack.c.h.b16 %v976
    %v1414 = vunpack.c.l.b16 %v977
    %v1415 = vunpack.c.h.b16 %v977
    %v1416 = vunpack.c.l.b16 %v978
    %v1417 = vunpack.c.h.b16 %v978
    %v1418 = vunpack.c.l.b16 %v979
    %v1419 = vunpack.c.h.b16 %v979
    %v1420 = vunpack.c.l.b16 %v980
    %v1421 = vunpack.c.h.b16 %v980
    %v1422 = vunpack.c.l.b16 %v981
    %v1423 = vunpack.c.h.b16 %v981
    %v1424 = vunpack.c.l.b16 %v982
    %v1425 = vunpack.c.h.b16 %v982
    %v1426 = vunpack.c.l.b16 %v983
    %v1427 = vunpack.c.h.b16 %v983
    %v1428 = vunpack.c.l.b16 %v984
    %v1429 = vunpack.c.h.b16 %v984
    %v1430 = vunpack.c.l.b16 %v985
    %v1431 = vunpack.c.h.b16 %v985
    %v1432 = vunpack.c.l.b16 %v986
    %v1433 = vunpack.c.h.b16 %v986
    %v1434 = vunpack.c.l.b16 %v987
    %v1435 = vunpack.c.h.b16 %v987
    %v1436 = vunpack.c.l.b16 %v988
    %v1437 = vunpack.c.h.b16 %v988
    %v1438 = vunpack.c.l.b16 %v989
    %v1439 = vunpack.c.h.b16 %v989
    %v1440 = vunpack.c.l.b16 %v990
    %v1441 = vunpack.c.h.b16 %v990
    %v1442 = vunpack.c.l.b16 %v991
    %v1443 = vunpack.c.h.b16 %v991
    %v1444 = vunpack.c.l.b16 %v992
    %v1445 = vunpack.c.h.b16 %v992
    %v1446 = vunpack.c.l.b16 %v993
    %v1447 = vunpack.c.h.b16 %v993
    %v1448 = vunpack.c.l.b16 %v994
    %v1449 = vunpack.c.h.b16 %v994
    %v1450 = vunpack.c.l.b16 %v995
    %v1451 = vunpack.c.h.b16 %v995
    %v1452 = vunpack.c.l.b16 %v996
    %v1453 = vunpack.c.h.b16 %v996
    %v1454 = vunpack.c.l.b16 %v997
    %v1455 = vunpack.c.h.b16 %v997
    %v1456 = vunpack.c.l.b16 %v998
    %v1457 = vunpack.c.h.b16 %v998
    %v1458 = vunpack.c.l.b16 %v999
    %v1459 = vunpack.c.h.b16 %v999
    %v1460 = vunpack.c.l.b16 %v1000
    %v1461 = vunpack.c.h.b16 %v1000
    %v1462 = vunpack.c.l.b16 %v1001
    %v1463 = vunpack.c.h.b16 %v1001
    %v1464 = vunpack.c.l.b16 %v1002
    %v1465 = vunpack.c.h.b16 %v1002
    %v1466 = vunpack.c.l.b16 %v1003
    %v1467 = vunpack.c.h.b16 %v1003
    %v1468 = vpack.c.b16 %v1186, %v1180
    %v1469 = vpack.c.b16 %v1187, %v1181
    %v1470 = vpack.c.b16 %v1188, %v1182
    %v1471 = vpack.c.b16 %v1189, %v1183
    %v1472 = vpack.c.b16 %v1190, %v1184
    %v1473 = vpack.c.b16 %v1191, %v1185
    %v1474 = vpack.c.b16 %v1198, %v1192
    %v1475 = vpack.c.b16 %v1199, %v1193
    %v1476 = vpack.c.b16 %v1200, %v1194
    %v1477 = vpack.c.b16 %v1201, %v1195
    %v1478 = vpack.c.b16 %v1202, %v1196
    %v1479 = vpack.c.b16 %v1203, %v1197
    %v1480 = vpack.c.b16 %v1210, %v1204
    %v1481 = vpack.c.b16 %v1211, %v1205
    %v1482 = vpack.c.b16 %v1212, %v1206
    %v1483 = vpack.c.b16 %v1213, %v1207
    %v1484 = vpack.c.b16 %v1214, %v1208
    %v1485 = vpack.c.b16 %v1215, %v1209
    %v1486 = vpack.c.b16 %v1222, %v1216
    %v1487 = vpack.c.b16 %v1223, %v1217
    %v1488 = vpack.c.b16 %v1224, %v1218
    %v1489 = vpack.c.b16 %v1225, %v1219
    %v1490 = vpack.c.b16 %v1226, %v1220
    %v1491 = vpack.c.b16 %v1227, %v1221
    %v1492 = vpack.c.b16 %v1234, %v1228
    %v1493 = vpack.c.b16 %v1235, %v1229
    %v1494 = vpack.c.b16 %v1236, %v1230
    %v1495 = vpack.c.b16 %v1237, %v1231
    %v1496 = vpack.c.b16 %v1238, %v1232
    %v1497 = vpack.c.b16 %v1239, %v1233
    %v1498 = vpack.c.b16 %v1246, %v1240
    %v1499 = vpack.c.b16 %v1247, %v1241
    %v1500 = vpack.c.b16 %v1248, %v1242
    %v1501 = vpack.c.b16 %v1249, %v1243
    %v1502 = vpack.c.b16 %v1250, %v1244
    %v1503 = vpack.c.b16 %v1251, %v1245
    %v1504 = vpack.c.b16 %v1258, %v1252
    %v1505 = vpack.c.b16 %v1259, %v1253
    %v1506 = vpack.c.b16 %v1260, %v1254
    %v1507 = vpack.c.b16 %v1261, %v1255
    %v1508 = vpack.c.b16 %v1262, %v1256
    %v1509 = vpack.c.b16 %v1263, %v1257
    %v1510 = vpack.c.b16 %v1270, %v1264
    %v1511 = vpack.c.b16 %v1271, %v1265
    %v1512 = vpack.c.b16 %v1272, %v1266
    %v1513 = vpack.c.b16 %v1273, %v1267
    %v1514 = vpack.c.b16 %v1274, %v1268
    %v1515 = vpack.c.b16 %v1275, %v1269
    %v1516 = vpack.c.b16 %v1282, %v1276
    %v1517 = vpack.c.b16 %v1283, %v1277
    %v1518 = vpack.c.b16 %v1284, %v1278
    %v1519 = vpack.c.b16 %v1285, %v1279
    %v1520 = vpack.c.b16 %v1286, %v1280
    %v1521 = vpack.c.b16 %v1287, %v1281
    %v1522 = vpack.c.b16 %v1294, %v1288
    %v1523 = vpack.c.b16 %v1295, %v1289
    %v1524 = vpack.c.b16 %v1296, %v1290
    %v1525 = vpack.c.b16 %v1297, %v1291
    %v1526 = vpack.c.b16 %v1298, %v1292
    %v1527 = vpack.c.b16 %v1299, %v1293
    %v1528 = vpack.c.b16 %v1306, %v1300
    %v1529 = vpack.c.b16 %v1307, %v1301
    %v1530 = vpack.c.b16 %v1308, %v1302
    %v1531 = vpack.c.b16 %v1309, %v1303
    %v1532 = vpack.c.b16 %v1310, %v1304
    %v1533 = vpack.c.b16 %v1311, %v1305
    %v1534 = vpack.c.b16 %v1318, %v1312
    %v1535 = vpack.c.b16 %v1319, %v1313
    %v1536 = vpack.c.b16 %v1320, %v1314
    %v1537 = vpack.c.b16 %v1321, %v1315
    %v1538 = vpack.c.b16 %v1322, %v1316
    %v1539 = vpack.c.b16 %v1323, %v1317
    %v1540 = vpack.c.b16 %v1330, %v1324
    %v1541 = vpack.c.b16 %v1331, %v1325
    %v1542 = vpack.c.b16 %v1332, %v1326
    %v1543 = vpack.c.b16 %v1333, %v1327
    %v1544 = vpack.c.b16 %v1334, %v1328
    %v1545 = vpack.c.b16 %v1335, %v1329
    %v1546 = vpack.c.b16 %v1342, %v1336
    %v1547 = vpack.c.b16 %v1343, %v1337
    %v1548 = vpack.c.b16 %v1344, %v1338
    %v1549 = vpack.c.b16 %v1345, %v1339
    %v1550 = vpack.c.b16 %v1346, %v1340
    %v1551 = vpack.c.b16 %v1347, %v1341
    %v1552 = vpack.c.b16 %v1354, %v1348
    %v1553 = vpack.c.b16 %v1355, %v1349
    %v1554 = vpack.c.b16 %v1356, %v1350
    %v1555 = vpack.c.b16 %v1357, %v1351
    %v1556 = vpack.c.b16 %v1358, %v1352
    %v1557 = vpack.c.b16 %v1359, %v1353
    %v1558 = vpack.c.b16 %v1366, %v1360
    %v1559 = vpack.c.b16 %v1367, %v1361
    %v1560 = vpack.c.b16 %v1368, %v1362
    %v1561 = vpack.c.b16 %v1369, %v1363
    %v1562 = vpack.c.b16 %v1370, %v1364
    %v1563 = vpack.c.b16 %v1371, %v1365
    %v1564 = vpack.c.b16 %v1378, %v1372
    %v1565 = vpack.c.b16 %v1379, %v1373
    %v1566 = vpack.c.b16 %v1380, %v1374
    %v1567 = vpack.c.b16 %v1381, %v1375
    %v1568 = vpack.c.b16 %v1382, %v1376
    %v1569 = vpack.c.b16 %v1383, %v1377
    %v1570 = vpack.c.b16 %v1390, %v1384
    %v1571 = vpack.c.b16 %v1391, %v1385
    %v1572 = vpack.c.b16 %v1392, %v1386
    %v1573 = vpack.c.b16 %v1393, %v1387
    %v1574 = vpack.c.b16 %v1394, %v1388
    %v1575 = vpack.c.b16 %v1395, %v1389
    %v1576 = vpack.c.b16 %v1402, %v1396
    %v1577 = vpack.c.b16 %v1403, %v1397
    %v1578 = vpack.c.b16 %v1404, %v1398
    %v1579 = vpack.c.b16 %v1405, %v1399
    %v1580 = vpack.c.b16 %v1406, %v1400
    %v1581 = vpack.c.b16 %v1407, %v1401
    %v1582 = vpack.c.b16 %v1414, %v1408
    %v1583 = vpack.c.b16 %v1415, %v1409
    %v1584 = vpack.c.b16 %v1416, %v1410
    %v1585 = vpack.c.b16 %v1417, %v1411
    %v1586 = vpack.c.b16 %v1418, %v1412
    %v1587 = vpack.c.b16 %v1419, %v1413
    %v1588 = vpack.c.b16 %v1426, %v1420
    %v1589 = vpack.c.b16 %v1427, %v1421
    %v1590 = vpack.c.b16 %v1428, %v1422
    %v1591 = vpack.c.b16 %v1429, %v1423
    %v1592 = vpack.c.b16 %v1430, %v1424
    %v1593 = vpack.c.b16 %v1431, %v1425
    %v1594 = vpack.c.b16 %v1438, %v1432
    %v1595 = vpack.c.b16 %v1439, %v1433
    %v1596 = vpack.c.b16 %v1440, %v1434
    %v1597 = vpack.c.b16 %v1441, %v1435
    %v1598 = vpack.c.b16 %v1442, %v1436
    %v1599 = vpack.c.b16 %v1443, %v1437
    %v1600 = vpack.c.b16 %v1450, %v1444
    %v1601 = vpack.c.b16 %v1451, %v1445
    %v1602 = vpack.c.b16 %v1452, %v1446
    %v1603 = vpack.c.b16 %v1453, %v1447
    %v1604 = vpack.c.b16 %v1454, %v1448
    %v1605 = vpack.c.b16 %v1455, %v1449
    %v1606 = vpack.c.b16 %v1462, %v1456
    %v1607 = vpack.c.b16 %v1463, %v1457
    %v1608 = vpack.c.b16 %v1464, %v1458
    %v1609 = vpack.c.b16 %v1465, %v1459
    %v1610 = vpack.c.b16 %v1466, %v1460
    %v1611 = vpack.c.b16 %v1467, %v1461
    %1756 = vmatprep.subr.bf16.mxu0 %v1511
    %1757 = vmatpush1.bf16.msra.mxu0 %v1510
    %1758 = vmatprep.subr.bf16.mxu0 %v1505
    %1759 = vmatpush1.bf16.msra.mxu0 %v1504
    %1760 = vmatprep.subr.bf16.mxu0 %v1499
    %1761 = vmatpush1.bf16.msra.mxu0 %v1498
    %1762 = vmatprep.subr.bf16.mxu0 %v1493
    %1763 = vmatpush1.bf16.msra.mxu0 %v1492
    %1764 = vmatprep.subr.bf16.mxu0 %v1487
    %1765 = vmatpush1.bf16.msra.mxu0 %v1486
    %1766 = vmatprep.subr.bf16.mxu0 %v1481
    %1767 = vmatpush1.bf16.msra.mxu0 %v1480
    %1768 = vmatprep.subr.bf16.mxu0 %v1475
    %1769 = vmatpush1.bf16.msra.mxu0 %v1474
    %1770 = vmatprep.subr.bf16.mxu0 %v1469
    %1771 = vmatpush1.bf16.msra.mxu0 %v1468
    %1772 = vmatprep.subr.bf16.mxu0 %v1559
    %1773 = vmatpush2.bf16.msra.mxu0 %v1558
    %1774 = vmatprep.subr.bf16.mxu0 %v1553
    %1775 = vmatpush2.bf16.msra.mxu0 %v1552
    %1776 = vmatprep.subr.bf16.mxu0 %v1547
    %1777 = vmatpush2.bf16.msra.mxu0 %v1546
    %1778 = vmatprep.subr.bf16.mxu0 %v1541
    %1779 = vmatpush2.bf16.msra.mxu0 %v1540
    %1780 = vmatprep.subr.bf16.mxu0 %v1535
    %1781 = vmatpush2.bf16.msra.mxu0 %v1534
    %1782 = vmatprep.subr.bf16.mxu0 %v1529
    %1783 = vmatpush2.bf16.msra.mxu0 %v1528
    %1784 = vmatprep.subr.bf16.mxu0 %v1523
    %1785 = vmatpush2.bf16.msra.mxu0 %v1522
    %1786 = vmatprep.subr.bf16.mxu0 %v1517
    %1787 = vmatpush2.bf16.msra.mxu0 %v1516
    %1788 = vmatprep.mubr.bf16.mxu0 %v858
    %1789 = vmatmul.mubr.bf16.gmra.mxu0 %v857
    %v1790 = vpop.f32.mrf.mxu0
    %v1791 = vadd.f32 %v1009, %v1790
    %v1792 = vpop.f32.mrf.mxu0
    %v1793 = vadd.f32 %v1013, %v1792
    %v1794 = vpop.f32.mrf.mxu0
    %v1795 = vpop.f32.mrf.mxu0
    %1796 = vdwg.mxu0
    %1797 = vmatprep.subr.bf16.mxu0 %v1607
    %1798 = vmatpush1.bf16.msra.mxu0 %v1606
    %1799 = vmatprep.subr.bf16.mxu0 %v1601
    %1800 = vmatpush1.bf16.msra.mxu0 %v1600
    %1801 = vmatprep.subr.bf16.mxu0 %v1595
    %1802 = vmatpush1.bf16.msra.mxu0 %v1594
    %1803 = vmatprep.subr.bf16.mxu0 %v1589
    %1804 = vmatpush1.bf16.msra.mxu0 %v1588
    %1805 = vmatprep.subr.bf16.mxu0 %v1583
    %1806 = vmatpush1.bf16.msra.mxu0 %v1582
    %1807 = vmatprep.subr.bf16.mxu0 %v1577
    %1808 = vmatpush1.bf16.msra.mxu0 %v1576
    %1809 = vmatprep.subr.bf16.mxu0 %v1571
    %1810 = vmatpush1.bf16.msra.mxu0 %v1570
    %1811 = vmatprep.subr.bf16.mxu0 %v1565
    %1812 = vmatpush1.bf16.msra.mxu0 %v1564
    %1813 = vmatprep.subr.bf16.mxu0 0
    %1814 = vmatpush2.bf16.msra.mxu0 0
    %1815 = vmatprep.subr.bf16.mxu0 0
    %1816 = vmatpush2.bf16.msra.mxu0 0
    %1817 = vmatprep.subr.bf16.mxu0 0
    %1818 = vmatpush2.bf16.msra.mxu0 0
    %1819 = vmatprep.subr.bf16.mxu0 0
    %1820 = vmatpush2.bf16.msra.mxu0 0
    %1821 = vmatprep.subr.bf16.mxu0 0
    %1822 = vmatpush2.bf16.msra.mxu0 0
    %1823 = vmatprep.subr.bf16.mxu0 0
    %1824 = vmatpush2.bf16.msra.mxu0 0
    %1825 = vmatprep.subr.bf16.mxu0 0
    %1826 = vmatpush2.bf16.msra.mxu0 0
    %1827 = vmatprep.subr.bf16.mxu0 0
    %1828 = vmatpush2.bf16.msra.mxu0 0
    %1829 = vmatprep.mubr.bf16.mxu0 0
    %1830 = vmatmul.mubr.bf16.gmra.mxu0 %v859
    %v1831 = vpop.f32.mrf.mxu0
    %v1832 = vadd.f32 %v1791, %v1831
    %v1833 = vpop.f32.mrf.mxu0
    %v1834 = vadd.f32 %v1793, %v1833
    %v1835 = vpop.f32.mrf.mxu0
    %v1836 = vpop.f32.mrf.mxu0
    %1837 = vdwg.mxu0
    %1838 = vmatprep.subr.bf16.mxu0 %v1513
    %1839 = vmatpush1.bf16.msra.mxu0 %v1512
    %1840 = vmatprep.subr.bf16.mxu0 %v1507
    %1841 = vmatpush1.bf16.msra.mxu0 %v1506
    %1842 = vmatprep.subr.bf16.mxu0 %v1501
    %1843 = vmatpush1.bf16.msra.mxu0 %v1500
    %1844 = vmatprep.subr.bf16.mxu0 %v1495
    %1845 = vmatpush1.bf16.msra.mxu0 %v1494
    %1846 = vmatprep.subr.bf16.mxu0 %v1489
    %1847 = vmatpush1.bf16.msra.mxu0 %v1488
    %1848 = vmatprep.subr.bf16.mxu0 %v1483
    %1849 = vmatpush1.bf16.msra.mxu0 %v1482
    %1850 = vmatprep.subr.bf16.mxu0 %v1477
    %1851 = vmatpush1.bf16.msra.mxu0 %v1476
    %1852 = vmatprep.subr.bf16.mxu0 %v1471
    %1853 = vmatpush1.bf16.msra.mxu0 %v1470
    %1854 = vmatprep.subr.bf16.mxu0 %v1561
    %1855 = vmatpush2.bf16.msra.mxu0 %v1560
    %1856 = vmatprep.subr.bf16.mxu0 %v1555
    %1857 = vmatpush2.bf16.msra.mxu0 %v1554
    %1858 = vmatprep.subr.bf16.mxu0 %v1549
    %1859 = vmatpush2.bf16.msra.mxu0 %v1548
    %1860 = vmatprep.subr.bf16.mxu0 %v1543
    %1861 = vmatpush2.bf16.msra.mxu0 %v1542
    %1862 = vmatprep.subr.bf16.mxu0 %v1537
    %1863 = vmatpush2.bf16.msra.mxu0 %v1536
    %1864 = vmatprep.subr.bf16.mxu0 %v1531
    %1865 = vmatpush2.bf16.msra.mxu0 %v1530
    %1866 = vmatprep.subr.bf16.mxu0 %v1525
    %1867 = vmatpush2.bf16.msra.mxu0 %v1524
    %1868 = vmatprep.subr.bf16.mxu0 %v1519
    %1869 = vmatpush2.bf16.msra.mxu0 %v1518
    %1870 = vmatprep.mubr.bf16.mxu0 %v858
    %1871 = vmatmul.mubr.bf16.gmra.mxu0 %v857
    %v1872 = vpop.f32.mrf.mxu0
    %v1873 = vadd.f32 %v1017, %v1872
    %v1874 = vpop.f32.mrf.mxu0
    %v1875 = vadd.f32 %v1021, %v1874
    %v1876 = vpop.f32.mrf.mxu0
    %v1877 = vpop.f32.mrf.mxu0
    %1878 = vdwg.mxu0
    %1879 = vmatprep.subr.bf16.mxu0 %v1609
    %1880 = vmatpush1.bf16.msra.mxu0 %v1608
    %1881 = vmatprep.subr.bf16.mxu0 %v1603
    %1882 = vmatpush1.bf16.msra.mxu0 %v1602
    %1883 = vmatprep.subr.bf16.mxu0 %v1597
    %1884 = vmatpush1.bf16.msra.mxu0 %v1596
    %1885 = vmatprep.subr.bf16.mxu0 %v1591
    %1886 = vmatpush1.bf16.msra.mxu0 %v1590
    %1887 = vmatprep.subr.bf16.mxu0 %v1585
    %1888 = vmatpush1.bf16.msra.mxu0 %v1584
    %1889 = vmatprep.subr.bf16.mxu0 %v1579
    %1890 = vmatpush1.bf16.msra.mxu0 %v1578
    %1891 = vmatprep.subr.bf16.mxu0 %v1573
    %1892 = vmatpush1.bf16.msra.mxu0 %v1572
    %1893 = vmatprep.subr.bf16.mxu0 %v1567
    %1894 = vmatpush1.bf16.msra.mxu0 %v1566
    %1895 = vmatprep.subr.bf16.mxu0 0
    %1896 = vmatpush2.bf16.msra.mxu0 0
    %1897 = vmatprep.subr.bf16.mxu0 0
    %1898 = vmatpush2.bf16.msra.mxu0 0
    %1899 = vmatprep.subr.bf16.mxu0 0
    %1900 = vmatpush2.bf16.msra.mxu0 0
    %1901 = vmatprep.subr.bf16.mxu0 0
    %1902 = vmatpush2.bf16.msra.mxu0 0
    %1903 = vmatprep.subr.bf16.mxu0 0
    %1904 = vmatpush2.bf16.msra.mxu0 0
    %1905 = vmatprep.subr.bf16.mxu0 0
    %1906 = vmatpush2.bf16.msra.mxu0 0
    %1907 = vmatprep.subr.bf16.mxu0 0
    %1908 = vmatpush2.bf16.msra.mxu0 0
    %1909 = vmatprep.subr.bf16.mxu0 0
    %1910 = vmatpush2.bf16.msra.mxu0 0
    %1911 = vmatprep.mubr.bf16.mxu0 0
    %1912 = vmatmul.mubr.bf16.gmra.mxu0 %v859
    %v1913 = vpop.f32.mrf.mxu0
    %v1914 = vadd.f32 %v1873, %v1913
    %v1915 = vpop.f32.mrf.mxu0
    %v1916 = vadd.f32 %v1875, %v1915
    %v1917 = vpop.f32.mrf.mxu0
    %v1918 = vpop.f32.mrf.mxu0
    %1919 = vdwg.mxu0
    %1920 = vmatprep.subr.bf16.mxu0 %v1515
    %1921 = vmatpush1.bf16.msra.mxu0 %v1514
    %1922 = vmatprep.subr.bf16.mxu0 %v1509
    %1923 = vmatpush1.bf16.msra.mxu0 %v1508
    %1924 = vmatprep.subr.bf16.mxu0 %v1503
    %1925 = vmatpush1.bf16.msra.mxu0 %v1502
    %1926 = vmatprep.subr.bf16.mxu0 %v1497
    %1927 = vmatpush1.bf16.msra.mxu0 %v1496
    %1928 = vmatprep.subr.bf16.mxu0 %v1491
    %1929 = vmatpush1.bf16.msra.mxu0 %v1490
    %1930 = vmatprep.subr.bf16.mxu0 %v1485
    %1931 = vmatpush1.bf16.msra.mxu0 %v1484
    %1932 = vmatprep.subr.bf16.mxu0 %v1479
    %1933 = vmatpush1.bf16.msra.mxu0 %v1478
    %1934 = vmatprep.subr.bf16.mxu0 %v1473
    %1935 = vmatpush1.bf16.msra.mxu0 %v1472
    %1936 = vmatprep.subr.bf16.mxu0 %v1563
    %1937 = vmatpush2.bf16.msra.mxu0 %v1562
    %1938 = vmatprep.subr.bf16.mxu0 %v1557
    %1939 = vmatpush2.bf16.msra.mxu0 %v1556
    %1940 = vmatprep.subr.bf16.mxu0 %v1551
    %1941 = vmatpush2.bf16.msra.mxu0 %v1550
    %1942 = vmatprep.subr.bf16.mxu0 %v1545
    %1943 = vmatpush2.bf16.msra.mxu0 %v1544
    %1944 = vmatprep.subr.bf16.mxu0 %v1539
    %1945 = vmatpush2.bf16.msra.mxu0 %v1538
    %1946 = vmatprep.subr.bf16.mxu0 %v1533
    %1947 = vmatpush2.bf16.msra.mxu0 %v1532
    %1948 = vmatprep.subr.bf16.mxu0 %v1527
    %1949 = vmatpush2.bf16.msra.mxu0 %v1526
    %1950 = vmatprep.subr.bf16.mxu0 %v1521
    %1951 = vmatpush2.bf16.msra.mxu0 %v1520
    %1952 = vmatprep.mubr.bf16.mxu0 %v858
    %1953 = vmatmul.mubr.bf16.gmra.mxu0 %v857
    %v1954 = vpop.f32.mrf.mxu0
    %v1955 = vadd.f32 %v1025, %v1954
    %v1956 = vpop.f32.mrf.mxu0
    %v1957 = vadd.f32 %v1029, %v1956
    %v1958 = vpop.f32.mrf.mxu0
    %v1959 = vpop.f32.mrf.mxu0
    %1960 = vdwg.mxu0
    %1961 = vmatprep.subr.bf16.mxu0 %v1611
    %1962 = vmatpush1.bf16.msra.mxu0 %v1610
    %1963 = vmatprep.subr.bf16.mxu0 %v1605
    %1964 = vmatpush1.bf16.msra.mxu0 %v1604
    %1965 = vmatprep.subr.bf16.mxu0 %v1599
    %1966 = vmatpush1.bf16.msra.mxu0 %v1598
    %1967 = vmatprep.subr.bf16.mxu0 %v1593
    %1968 = vmatpush1.bf16.msra.mxu0 %v1592
    %1969 = vmatprep.subr.bf16.mxu0 %v1587
    %1970 = vmatpush1.bf16.msra.mxu0 %v1586
    %1971 = vmatprep.subr.bf16.mxu0 %v1581
    %1972 = vmatpush1.bf16.msra.mxu0 %v1580
    %1973 = vmatprep.subr.bf16.mxu0 %v1575
    %1974 = vmatpush1.bf16.msra.mxu0 %v1574
    %1975 = vmatprep.subr.bf16.mxu0 %v1569
    %1976 = vmatpush1.bf16.msra.mxu0 %v1568
    %1977 = vmatprep.subr.bf16.mxu0 0
    %1978 = vmatpush2.bf16.msra.mxu0 0
    %1979 = vmatprep.subr.bf16.mxu0 0
    %1980 = vmatpush2.bf16.msra.mxu0 0
    %1981 = vmatprep.subr.bf16.mxu0 0
    %1982 = vmatpush2.bf16.msra.mxu0 0
    %1983 = vmatprep.subr.bf16.mxu0 0
    %1984 = vmatpush2.bf16.msra.mxu0 0
    %1985 = vmatprep.subr.bf16.mxu0 0
    %1986 = vmatpush2.bf16.msra.mxu0 0
    %1987 = vmatprep.subr.bf16.mxu0 0
    %1988 = vmatpush2.bf16.msra.mxu0 0
    %1989 = vmatprep.subr.bf16.mxu0 0
    %1990 = vmatpush2.bf16.msra.mxu0 0
    %1991 = vmatprep.subr.bf16.mxu0 0
    %1992 = vmatpush2.bf16.msra.mxu0 0
    %1993 = vmatprep.mubr.bf16.mxu0 0
    %1994 = vmatmul.mubr.bf16.gmra.mxu0 %v859
    %v1995 = vpop.f32.mrf.mxu0
    %v1996 = vadd.f32 %v1955, %v1995
    %v1997 = vpop.f32.mrf.mxu0
    %v1998 = vadd.f32 %v1957, %v1997
    %v1999 = vpop.f32.mrf.mxu0
    %v2000 = vpop.f32.mrf.mxu0
    %2001 = vdwg.mxu0
    %v2002 = vmax.f32 %v1832, 0.0
    %v2003 = vmax.f32 %v1834, 0.0
    %v2004 = vmax.f32 %v1914, 0.0
    %v2005 = vmax.f32 %v1916, 0.0
    %v2006 = vmax.f32 %v1996, 0.0
    %v2007 = vmax.f32 %v1998, 0.0
    %v2008 = vpack.c.bf16 %v2002, %v2002
    %v2009 = vpack.c.bf16 %v2003, %v2003
    %v2010 = vpack.c.bf16 %v2004, %v2004
    %v2011 = vpack.c.bf16 %v2005, %v2005
    %v2012 = vpack.c.bf16 %v2006, %v2006
    %v2013 = vpack.c.bf16 %v2007, %v2007
    %v2014 = vld [vmem:[%s8] sm:$0xf]
    %v2015 = vld [vmem:[%s8 + $0x4] sm:$0xf]
    %v2016 = vld [vmem:[%s8 + $0x8] sm:$0xf]
    %v2017 = vld [vmem:[%s8 + $0xc] sm:$0xf]
    %v2018 = vld [vmem:[%s8 + $0x10] sm:$0xf]
    %v2019 = vld [vmem:[%s8 + $0x14] sm:$0xf]
    %v2020 = vld [vmem:[%s8 + $0x18] sm:$0xf]
    %v2021 = vld [vmem:[%s8 + $0x1c] sm:$0xf]
    %v2022 = vld [vmem:[%s8 + $0x20] sm:$0xf]
    %v2023 = vld [vmem:[%s8 + $0x24] sm:$0xf]
    %v2024 = vld [vmem:[%s8 + $0x28] sm:$0xf]
    %v2025 = vld [vmem:[%s8 + $0x2c] sm:$0xf]
    %v2026 = vld [vmem:[%s8 + $0x30] sm:$0xf]
    %v2027 = vld [vmem:[%s8 + $0x34] sm:$0xf]
    %v2028 = vld [vmem:[%s8 + $0x38] sm:$0xf]
    %v2029 = vld [vmem:[%s8 + $0x3c] sm:$0xf]
    %v2030 = vld [vmem:[%s8 + $0x40] sm:$0xf]
    %v2031 = vld [vmem:[%s8 + $0x44] sm:$0xf]
    %v2032 = vld [vmem:[%s8 + $0x48] sm:$0xf]
    %v2033 = vld [vmem:[%s8 + $0x4c] sm:$0xf]
    %v2034 = vld [vmem:[%s8 + $0x50] sm:$0xf]
    %v2035 = vld [vmem:[%s8 + $0x54] sm:$0xf]
    %v2036 = vld [vmem:[%s8 + $0x58] sm:$0xf]
    %v2037 = vld [vmem:[%s8 + $0x5c] sm:$0xf]
    %v2038 = vld [vmem:[%s8 + $0x60] sm:$0xf]
    %v2039 = vld [vmem:[%s8 + $0x64] sm:$0xf]
    %v2040 = vld [vmem:[%s8 + $0x68] sm:$0xf]
    %v2041 = vld [vmem:[%s8 + $0x6c] sm:$0xf]
    %v2042 = vld [vmem:[%s8 + $0x70] sm:$0xf]
    %v2043 = vld [vmem:[%s8 + $0x74] sm:$0xf]
    %v2044 = vld [vmem:[%s8 + $0x78] sm:$0xf]
    %v2045 = vld [vmem:[%s8 + $0x7c] sm:$0xf]
    %v2046 = vld [vmem:[%s8 + $0x80] sm:$0xf]
    %v2047 = vld [vmem:[%s8 + $0x84] sm:$0xf]
    %v2048 = vld [vmem:[%s8 + $0x88] sm:$0xf]
    %v2049 = vld [vmem:[%s8 + $0x8c] sm:$0xf]
    %v2050 = vld [vmem:[%s8 + $0x90] sm:$0xf]
    %v2051 = vld [vmem:[%s8 + $0x94] sm:$0xf]
    %v2052 = vld [vmem:[%s8 + $0x98] sm:$0xf]
    %v2053 = vld [vmem:[%s8 + $0x9c] sm:$0xf]
    %v2054 = vld [vmem:[%s8 + $0xa0] sm:$0xf]
    %v2055 = vld [vmem:[%s8 + $0xa4] sm:$0xf]
    %v2056 = vld [vmem:[%s8 + $0xa8] sm:$0xf]
    %v2057 = vld [vmem:[%s8 + $0xac] sm:$0xf]
    %v2058 = vld [vmem:[%s8 + $0xb0] sm:$0xf]
    %v2059 = vld [vmem:[%s8 + $0xb4] sm:$0xf]
    %v2060 = vld [vmem:[%s8 + $0xb8] sm:$0xf]
    %v2061 = vld [vmem:[%s8 + $0xbc] sm:$0xf]
    %v2062 = vld [vmem:[%s8 + $0xc0] sm:$0xf]
    %v2063 = vld [vmem:[%s8 + $0xc4] sm:$0xf]
    %v2064 = vld [vmem:[%s8 + $0xc8] sm:$0xf]
    %v2065 = vld [vmem:[%s8 + $0xcc] sm:$0xf]
    %v2066 = vld [vmem:[%s8 + $0xd0] sm:$0xf]
    %v2067 = vld [vmem:[%s8 + $0xd4] sm:$0xf]
    %v2068 = vld [vmem:[%s8 + $0xd8] sm:$0xf]
    %v2069 = vld [vmem:[%s8 + $0xdc] sm:$0xf]
    %v2070 = vld [vmem:[%s8 + $0xe0] sm:$0xf]
    %v2071 = vld [vmem:[%s8 + $0xe4] sm:$0xf]
    %v2072 = vld [vmem:[%s8 + $0xe8] sm:$0xf]
    %v2073 = vld [vmem:[%s8 + $0xec] sm:$0xf]
    %v2074 = vld [vmem:[%s8 + $0xf0] sm:$0xf]
    %v2075 = vld [vmem:[%s8 + $0xf4] sm:$0xf]
    %v2076 = vld [vmem:[%s8 + $0xf8] sm:$0xf]
    %v2077 = vld [vmem:[%s8 + $0xfc] sm:$0xf]
    %v2078 = vld [vmem:[%s8 + $0x100] sm:$0xf]
    %v2079 = vld [vmem:[%s8 + $0x104] sm:$0xf]
    %v2080 = vld [vmem:[%s8 + $0x108] sm:$0xf]
    %v2081 = vld [vmem:[%s8 + $0x10c] sm:$0xf]
    %v2082 = vld [vmem:[%s8 + $0x110] sm:$0xf]
    %v2083 = vld [vmem:[%s8 + $0x114] sm:$0xf]
    %v2084 = vld [vmem:[%s8 + $0x118] sm:$0xf]
    %v2085 = vld [vmem:[%s8 + $0x11c] sm:$0xf]
    %v2086 = vld [vmem:[%s8 + $0x120] sm:$0xf]
    %v2087 = vld [vmem:[%s8 + $0x124] sm:$0xf]
    %v2088 = vld [vmem:[%s8 + $0x128] sm:$0xf]
    %v2089 = vld [vmem:[%s8 + $0x12c] sm:$0xf]
    %v2090 = vld [vmem:[%s8 + $0x130] sm:$0xf]
    %v2091 = vld [vmem:[%s8 + $0x134] sm:$0xf]
    %v2092 = vld [vmem:[%s8 + $0x138] sm:$0xf]
    %v2093 = vld [vmem:[%s8 + $0x13c] sm:$0xf]
    %v2094 = vld [vmem:[%s8 + $0x140] sm:$0xf]
    %v2095 = vld [vmem:[%s8 + $0x144] sm:$0xf]
    %v2096 = vld [vmem:[%s8 + $0x148] sm:$0xf]
    %v2097 = vld [vmem:[%s8 + $0x14c] sm:$0xf]
    %v2098 = vld [vmem:[%s8 + $0x150] sm:$0xf]
    %v2099 = vld [vmem:[%s8 + $0x154] sm:$0xf]
    %v2100 = vld [vmem:[%s8 + $0x158] sm:$0xf]
    %v2101 = vld [vmem:[%s8 + $0x15c] sm:$0xf]
    %v2102 = vld [vmem:[%s8 + $0x160] sm:$0xf]
    %v2103 = vld [vmem:[%s8 + $0x164] sm:$0xf]
    %v2104 = vld [vmem:[%s8 + $0x168] sm:$0xf]
    %v2105 = vld [vmem:[%s8 + $0x16c] sm:$0xf]
    %v2106 = vld [vmem:[%s8 + $0x170] sm:$0xf]
    %v2107 = vld [vmem:[%s8 + $0x174] sm:$0xf]
    %v2108 = vld [vmem:[%s8 + $0x178] sm:$0xf]
    %v2109 = vld [vmem:[%s8 + $0x17c] sm:$0xf]
    %v2110 = vld [vmem:[%s9] sm:$0x1]
    %v2112 = vlaneseq
    %v2113 = vshrl.u32 %v2112, 7
    %v2114 = vsub.s32 0, %v2113
    %v2115 = vrot.slane %v2110, %v2114
    %v2213 = vunpack.c.l.b16 %v2014
    %v2214 = vunpack.c.l.b16 %v2015
    %v2215 = vunpack.c.l.b16 %v2016
    %v2216 = vunpack.c.l.b16 %v2017
    %v2217 = vunpack.c.l.b16 %v2018
    %v2218 = vunpack.c.l.b16 %v2019
    %v2219 = vunpack.c.l.b16 %v2020
    %v2220 = vunpack.c.l.b16 %v2021
    %v2221 = vunpack.c.l.b16 %v2022
    %v2222 = vunpack.c.l.b16 %v2023
    %v2223 = vunpack.c.l.b16 %v2024
    %v2224 = vunpack.c.l.b16 %v2025
    %v2225 = vunpack.c.l.b16 %v2026
    %v2226 = vunpack.c.l.b16 %v2027
    %v2227 = vunpack.c.l.b16 %v2028
    %v2228 = vunpack.c.l.b16 %v2029
    %v2229 = vunpack.c.l.b16 %v2030
    %v2230 = vunpack.c.l.b16 %v2031
    %v2231 = vunpack.c.l.b16 %v2032
    %v2232 = vunpack.c.l.b16 %v2033
    %v2233 = vunpack.c.l.b16 %v2034
    %v2234 = vunpack.c.l.b16 %v2035
    %v2235 = vunpack.c.l.b16 %v2036
    %v2236 = vunpack.c.l.b16 %v2037
    %v2237 = vunpack.c.l.b16 %v2038
    %v2238 = vunpack.c.l.b16 %v2039
    %v2239 = vunpack.c.l.b16 %v2040
    %v2240 = vunpack.c.l.b16 %v2041
    %v2241 = vunpack.c.l.b16 %v2042
    %v2242 = vunpack.c.l.b16 %v2043
    %v2243 = vunpack.c.l.b16 %v2044
    %v2244 = vunpack.c.l.b16 %v2045
    %v2245 = vunpack.c.l.b16 %v2046
    %v2246 = vunpack.c.l.b16 %v2047
    %v2247 = vunpack.c.l.b16 %v2048
    %v2248 = vunpack.c.l.b16 %v2049
    %v2249 = vunpack.c.l.b16 %v2050
    %v2250 = vunpack.c.l.b16 %v2051
    %v2251 = vunpack.c.l.b16 %v2052
    %v2252 = vunpack.c.l.b16 %v2053
    %v2253 = vunpack.c.l.b16 %v2054
    %v2254 = vunpack.c.l.b16 %v2055
    %v2255 = vunpack.c.l.b16 %v2056
    %v2256 = vunpack.c.l.b16 %v2057
    %v2257 = vunpack.c.l.b16 %v2058
    %v2258 = vunpack.c.l.b16 %v2059
    %v2259 = vunpack.c.l.b16 %v2060
    %v2260 = vunpack.c.l.b16 %v2061
    %v2261 = vunpack.c.l.b16 %v2062
    %v2262 = vunpack.c.l.b16 %v2063
    %v2263 = vunpack.c.l.b16 %v2064
    %v2264 = vunpack.c.l.b16 %v2065
    %v2265 = vunpack.c.l.b16 %v2066
    %v2266 = vunpack.c.l.b16 %v2067
    %v2267 = vunpack.c.l.b16 %v2068
    %v2268 = vunpack.c.l.b16 %v2069
    %v2269 = vunpack.c.l.b16 %v2070
    %v2270 = vunpack.c.l.b16 %v2071
    %v2271 = vunpack.c.l.b16 %v2072
    %v2272 = vunpack.c.l.b16 %v2073
    %v2273 = vunpack.c.l.b16 %v2074
    %v2274 = vunpack.c.l.b16 %v2075
    %v2275 = vunpack.c.l.b16 %v2076
    %v2276 = vunpack.c.l.b16 %v2077
    %v2277 = vunpack.c.l.b16 %v2078
    %v2278 = vunpack.c.l.b16 %v2079
    %v2279 = vunpack.c.l.b16 %v2080
    %v2280 = vunpack.c.l.b16 %v2081
    %v2281 = vunpack.c.l.b16 %v2082
    %v2282 = vunpack.c.l.b16 %v2083
    %v2283 = vunpack.c.l.b16 %v2084
    %v2284 = vunpack.c.l.b16 %v2085
    %v2285 = vunpack.c.l.b16 %v2086
    %v2286 = vunpack.c.l.b16 %v2087
    %v2287 = vunpack.c.l.b16 %v2088
    %v2288 = vunpack.c.l.b16 %v2089
    %v2289 = vunpack.c.l.b16 %v2090
    %v2290 = vunpack.c.l.b16 %v2091
    %v2291 = vunpack.c.l.b16 %v2092
    %v2292 = vunpack.c.l.b16 %v2093
    %v2293 = vunpack.c.l.b16 %v2094
    %v2294 = vunpack.c.l.b16 %v2095
    %v2295 = vunpack.c.l.b16 %v2096
    %v2296 = vunpack.c.l.b16 %v2097
    %v2297 = vunpack.c.l.b16 %v2098
    %v2298 = vunpack.c.l.b16 %v2099
    %v2299 = vunpack.c.l.b16 %v2100
    %v2300 = vunpack.c.l.b16 %v2101
    %v2301 = vunpack.c.l.b16 %v2102
    %v2302 = vunpack.c.l.b16 %v2103
    %v2303 = vunpack.c.l.b16 %v2104
    %v2304 = vunpack.c.l.b16 %v2105
    %v2305 = vunpack.c.l.b16 %v2106
    %v2306 = vunpack.c.l.b16 %v2107
    %v2307 = vunpack.c.l.b16 %v2108
    %v2308 = vunpack.c.l.b16 %v2109
    %v2309 = vpack.c.b16 %v2214, %v2213
    %v2310 = vpack.c.b16 %v2216, %v2215
    %v2311 = vpack.c.b16 %v2218, %v2217
    %v2312 = vpack.c.b16 %v2220, %v2219
    %v2313 = vpack.c.b16 %v2222, %v2221
    %v2314 = vpack.c.b16 %v2224, %v2223
    %v2315 = vpack.c.b16 %v2226, %v2225
    %v2316 = vpack.c.b16 %v2228, %v2227
    %v2317 = vpack.c.b16 %v2230, %v2229
    %v2318 = vpack.c.b16 %v2232, %v2231
    %v2319 = vpack.c.b16 %v2234, %v2233
    %v2320 = vpack.c.b16 %v2236, %v2235
    %v2321 = vpack.c.b16 %v2238, %v2237
    %v2322 = vpack.c.b16 %v2240, %v2239
    %v2323 = vpack.c.b16 %v2242, %v2241
    %v2324 = vpack.c.b16 %v2244, %v2243
    %v2325 = vpack.c.b16 %v2246, %v2245
    %v2326 = vpack.c.b16 %v2248, %v2247
    %v2327 = vpack.c.b16 %v2250, %v2249
    %v2328 = vpack.c.b16 %v2252, %v2251
    %v2329 = vpack.c.b16 %v2254, %v2253
    %v2330 = vpack.c.b16 %v2256, %v2255
    %v2331 = vpack.c.b16 %v2258, %v2257
    %v2332 = vpack.c.b16 %v2260, %v2259
    %v2333 = vpack.c.b16 %v2262, %v2261
    %v2334 = vpack.c.b16 %v2264, %v2263
    %v2335 = vpack.c.b16 %v2266, %v2265
    %v2336 = vpack.c.b16 %v2268, %v2267
    %v2337 = vpack.c.b16 %v2270, %v2269
    %v2338 = vpack.c.b16 %v2272, %v2271
    %v2339 = vpack.c.b16 %v2274, %v2273
    %v2340 = vpack.c.b16 %v2276, %v2275
    %v2341 = vpack.c.b16 %v2278, %v2277
    %v2342 = vpack.c.b16 %v2280, %v2279
    %v2343 = vpack.c.b16 %v2282, %v2281
    %v2344 = vpack.c.b16 %v2284, %v2283
    %v2345 = vpack.c.b16 %v2286, %v2285
    %v2346 = vpack.c.b16 %v2288, %v2287
    %v2347 = vpack.c.b16 %v2290, %v2289
    %v2348 = vpack.c.b16 %v2292, %v2291
    %v2349 = vpack.c.b16 %v2294, %v2293
    %v2350 = vpack.c.b16 %v2296, %v2295
    %v2351 = vpack.c.b16 %v2298, %v2297
    %v2352 = vpack.c.b16 %v2300, %v2299
    %v2353 = vpack.c.b16 %v2302, %v2301
    %v2354 = vpack.c.b16 %v2304, %v2303
    %v2355 = vpack.c.b16 %v2306, %v2305
    %v2356 = vpack.c.b16 %v2308, %v2307
    %2405 = vmatprep.subr.bf16.mxu0 0
    %2406 = vmatpush1.bf16.msra.mxu0 %v2316
    %2407 = vmatprep.subr.bf16.mxu0 0
    %2408 = vmatpush1.bf16.msra.mxu0 %v2315
    %2409 = vmatprep.subr.bf16.mxu0 0
    %2410 = vmatpush1.bf16.msra.mxu0 %v2314
    %2411 = vmatprep.subr.bf16.mxu0 0
    %2412 = vmatpush1.bf16.msra.mxu0 %v2313
    %2413 = vmatprep.subr.bf16.mxu0 0
    %2414 = vmatpush1.bf16.msra.mxu0 %v2312
    %2415 = vmatprep.subr.bf16.mxu0 0
    %2416 = vmatpush1.bf16.msra.mxu0 %v2311
    %2417 = vmatprep.subr.bf16.mxu0 0
    %2418 = vmatpush1.bf16.msra.mxu0 %v2310
    %2419 = vmatprep.subr.bf16.mxu0 0
    %2420 = vmatpush1.bf16.msra.mxu0 %v2309
    %2421 = vmatprep.subr.bf16.mxu0 0
    %2422 = vmatpush2.bf16.msra.mxu0 %v2324
    %2423 = vmatprep.subr.bf16.mxu0 0
    %2424 = vmatpush2.bf16.msra.mxu0 %v2323
    %2425 = vmatprep.subr.bf16.mxu0 0
    %2426 = vmatpush2.bf16.msra.mxu0 %v2322
    %2427 = vmatprep.subr.bf16.mxu0 0
    %2428 = vmatpush2.bf16.msra.mxu0 %v2321
    %2429 = vmatprep.subr.bf16.mxu0 0
    %2430 = vmatpush2.bf16.msra.mxu0 %v2320
    %2431 = vmatprep.subr.bf16.mxu0 0
    %2432 = vmatpush2.bf16.msra.mxu0 %v2319
    %2433 = vmatprep.subr.bf16.mxu0 0
    %2434 = vmatpush2.bf16.msra.mxu0 %v2318
    %2435 = vmatprep.subr.bf16.mxu0 0
    %2436 = vmatpush2.bf16.msra.mxu0 %v2317
    %2437 = vmatprep.mubr.bf16.mxu0 %v2009
    %2438 = vmatmul.mubr.bf16.gmra.mxu0 %v2008
    %v2439 = vpop.f32.mrf.mxu0
    %v2440 = vadd.f32 %v2115, %v2439
    %v2441 = vpop.f32.mrf.mxu0
    %v2442 = vpop.f32.mrf.mxu0
    %v2443 = vpop.f32.mrf.mxu0
    %2444 = vdwg.mxu0
    %2445 = vmatprep.subr.bf16.mxu0 0
    %2446 = vmatpush1.bf16.msra.mxu0 %v2332
    %2447 = vmatprep.subr.bf16.mxu0 0
    %2448 = vmatpush1.bf16.msra.mxu0 %v2331
    %2449 = vmatprep.subr.bf16.mxu0 0
    %2450 = vmatpush1.bf16.msra.mxu0 %v2330
    %2451 = vmatprep.subr.bf16.mxu0 0
    %2452 = vmatpush1.bf16.msra.mxu0 %v2329
    %2453 = vmatprep.subr.bf16.mxu0 0
    %2454 = vmatpush1.bf16.msra.mxu0 %v2328
    %2455 = vmatprep.subr.bf16.mxu0 0
    %2456 = vmatpush1.bf16.msra.mxu0 %v2327
    %2457 = vmatprep.subr.bf16.mxu0 0
    %2458 = vmatpush1.bf16.msra.mxu0 %v2326
    %2459 = vmatprep.subr.bf16.mxu0 0
    %2460 = vmatpush1.bf16.msra.mxu0 %v2325
    %2461 = vmatprep.subr.bf16.mxu0 0
    %2462 = vmatpush2.bf16.msra.mxu0 %v2340
    %2463 = vmatprep.subr.bf16.mxu0 0
    %2464 = vmatpush2.bf16.msra.mxu0 %v2339
    %2465 = vmatprep.subr.bf16.mxu0 0
    %2466 = vmatpush2.bf16.msra.mxu0 %v2338
    %2467 = vmatprep.subr.bf16.mxu0 0
    %2468 = vmatpush2.bf16.msra.mxu0 %v2337
    %2469 = vmatprep.subr.bf16.mxu0 0
    %2470 = vmatpush2.bf16.msra.mxu0 %v2336
    %2471 = vmatprep.subr.bf16.mxu0 0
    %2472 = vmatpush2.bf16.msra.mxu0 %v2335
    %2473 = vmatprep.subr.bf16.mxu0 0
    %2474 = vmatpush2.bf16.msra.mxu0 %v2334
    %2475 = vmatprep.subr.bf16.mxu0 0
    %2476 = vmatpush2.bf16.msra.mxu0 %v2333
    %2477 = vmatprep.mubr.bf16.mxu0 %v2011
    %2478 = vmatmul.mubr.bf16.gmra.mxu0 %v2010
    %v2479 = vpop.f32.mrf.mxu0
    %v2480 = vadd.f32 %v2440, %v2479
    %v2481 = vpop.f32.mrf.mxu0
    %v2482 = vpop.f32.mrf.mxu0
    %v2483 = vpop.f32.mrf.mxu0
    %2484 = vdwg.mxu0
    %2485 = vmatprep.subr.bf16.mxu0 0
    %2486 = vmatpush1.bf16.msra.mxu0 %v2348
    %2487 = vmatprep.subr.bf16.mxu0 0
    %2488 = vmatpush1.bf16.msra.mxu0 %v2347
    %2489 = vmatprep.subr.bf16.mxu0 0
    %2490 = vmatpush1.bf16.msra.mxu0 %v2346
    %2491 = vmatprep.subr.bf16.mxu0 0
    %2492 = vmatpush1.bf16.msra.mxu0 %v2345
    %2493 = vmatprep.subr.bf16.mxu0 0
    %2494 = vmatpush1.bf16.msra.mxu0 %v2344
    %2495 = vmatprep.subr.bf16.mxu0 0
    %2496 = vmatpush1.bf16.msra.mxu0 %v2343
    %2497 = vmatprep.subr.bf16.mxu0 0
    %2498 = vmatpush1.bf16.msra.mxu0 %v2342
    %2499 = vmatprep.subr.bf16.mxu0 0
    %2500 = vmatpush1.bf16.msra.mxu0 %v2341
    %2501 = vmatprep.subr.bf16.mxu0 0
    %2502 = vmatpush2.bf16.msra.mxu0 %v2356
    %2503 = vmatprep.subr.bf16.mxu0 0
    %2504 = vmatpush2.bf16.msra.mxu0 %v2355
    %2505 = vmatprep.subr.bf16.mxu0 0
    %2506 = vmatpush2.bf16.msra.mxu0 %v2354
    %2507 = vmatprep.subr.bf16.mxu0 0
    %2508 = vmatpush2.bf16.msra.mxu0 %v2353
    %2509 = vmatprep.subr.bf16.mxu0 0
    %2510 = vmatpush2.bf16.msra.mxu0 %v2352
    %2511 = vmatprep.subr.bf16.mxu0 0
    %2512 = vmatpush2.bf16.msra.mxu0 %v2351
    %2513 = vmatprep.subr.bf16.mxu0 0
    %2514 = vmatpush2.bf16.msra.mxu0 %v2350
    %2515 = vmatprep.subr.bf16.mxu0 0
    %2516 = vmatpush2.bf16.msra.mxu0 %v2349
    %2517 = vmatprep.mubr.bf16.mxu0 %v2013
    %2518 = vmatmul.mubr.bf16.gmra.mxu0 %v2012
    %v2519 = vpop.f32.mrf.mxu0
    %v2520 = vadd.f32 %v2480, %v2519
    %v2521 = vpop.f32.mrf.mxu0
    %v2522 = vpop.f32.mrf.mxu0
    %v2523 = vpop.f32.mrf.mxu0
    %2524 = vdwg.mxu0
    %v2525 = vld [vmem:[%s1] sm:$0xff]
    %v2526 = vmul.f32 %v2520, 0.5
    %v2527 = vmul.f32 %v2526, 1.442695
    %v2528 = vpow.pop %v2527
    %2530 = vrot.lane.b32.xlu0 %v2528, 125
    %v2531 = vpop.permute.xlu0 %2530
    %v2533 = vmul.f32 %v2525, %v2531
    %v2534 = vadd.f32 %v2520, %v2533
    %v2535 = vpack.c.bf16 %v2534, %v2534
    %v2536 = vld [vmem:[%s10] sm:$0xff]
    %v2537 = vld [vmem:[%s10 + $0x8] sm:$0xf]
    %v2538 = vld [vmem:[%s11] sm:$0x3f]
    %v2540 = vlaneseq
    %v2541 = vshrl.u32 %v2540, 7
    %v2542 = vsub.s32 0, %v2541
    %v2543 = vrot.slane %v2538, %v2542
    %v2544 = vlaneseq
    %v2545 = vshrl.u32 %v2544, 7
    %v2546 = vsub.s32 1, %v2545
    %v2547 = vrot.slane %v2538, %v2546
    %v2548 = vlaneseq
    %v2549 = vshrl.u32 %v2548, 7
    %v2550 = vsub.s32 2, %v2549
    %v2551 = vrot.slane %v2538, %v2550
    %v2552 = vlaneseq
    %v2553 = vshrl.u32 %v2552, 7
    %v2554 = vsub.s32 3, %v2553
    %v2555 = vrot.slane %v2538, %v2554
    %v2556 = vlaneseq
    %v2557 = vshrl.u32 %v2556, 7
    %v2558 = vsub.s32 4, %v2557
    %v2559 = vrot.slane %v2538, %v2558
    %v2560 = vlaneseq
    %v2561 = vshrl.u32 %v2560, 7
    %v2562 = vsub.s32 5, %v2561
    %v2563 = vrot.slane %v2538, %v2562
    %v2572 = vcombine.high %v2536, %v2536
    %v2574 = vunpack.c.l.s4 1983009808
    %v2575 = vunpack.c.0.s8 %v2574
    %v2576 = vlaneseq
    %v2577 = vshrl.u32 %v2576, 7
    %v2578 = vsub.s32 %v2575, %v2577
    %v2579 = vrot.slane %v2536, %v2578
    %v2581 = vunpack.c.l.s4 1983009808
    %v2582 = vunpack.c.0.s8 %v2581
    %v2583 = vlaneseq
    %v2584 = vshrl.u32 %v2583, 7
    %v2585 = vsub.s32 %v2582, %v2584
    %v2586 = vrot.slane %v2572, %v2585
    %v2587 = vcombine.high %v2579, %v2579
    %v2588 = vcombine.high %v2586, %v2586
    %v2590 = vunpack.c.l.s4 1983009808
    %v2591 = vunpack.c.0.s8 %v2590
    %v2592 = vlaneseq
    %v2593 = vshrl.u32 %v2592, 7
    %v2594 = vsub.s32 %v2591, %v2593
    %v2595 = vrot.slane %v2537, %v2594
    %v2596 = vcombine.high %v2595, %v2595
    %vm2597 = vcmask 23552
    %v2599 = vsel %vm2597, %v2535, 0
    %vm2601 = vcmask 1040384
    %vm2602 = vcmask 1041408
    %v2603 = vsel %vm2601, 4294967295, 65535
    %v2604 = vsel %vm2602, %v2603, 0
    %v2606 = vand.u32 %v2579, %v2604
    %v2609 = vand.u32 %v2587, %v2604
    %v2612 = vand.u32 %v2586, %v2604
    %v2615 = vand.u32 %v2588, %v2604
    %v2618 = vand.u32 %v2595, %v2604
    %v2621 = vand.u32 %v2596, %v2604
    %2623 = vmatprep.subr.bf16.mxu0 0
    %2624 = vmatpush1.bf16.msra.mxu0 0
    %2625 = vmatprep.subr.bf16.mxu0 0
    %2626 = vmatpush1.bf16.msra.mxu0 0
    %2627 = vmatprep.subr.bf16.mxu0 0
    %2628 = vmatpush1.bf16.msra.mxu0 0
    %2629 = vmatprep.subr.bf16.mxu0 0
    %2630 = vmatpush1.bf16.msra.mxu0 0
    %2631 = vmatprep.subr.bf16.mxu0 0
    %2632 = vmatpush1.bf16.msra.mxu0 0
    %2633 = vmatprep.subr.bf16.mxu0 0
    %2634 = vmatpush1.bf16.msra.mxu0 0
    %2635 = vmatprep.subr.bf16.mxu0 0
    %2636 = vmatpush1.bf16.msra.mxu0 0
    %2637 = vmatprep.subr.bf16.mxu0 %v2609
    %2638 = vmatpush1.bf16.msra.mxu0 %v2606
    %2639 = vmatprep.subr.bf16.mxu0 0
    %2640 = vmatpush2.bf16.msra.mxu0 0
    %2641 = vmatprep.subr.bf16.mxu0 0
    %2642 = vmatpush2.bf16.msra.mxu0 0
    %2643 = vmatprep.subr.bf16.mxu0 0
    %2644 = vmatpush2.bf16.msra.mxu0 0
    %2645 = vmatprep.subr.bf16.mxu0 0
    %2646 = vmatpush2.bf16.msra.mxu0 0
    %2647 = vmatprep.subr.bf16.mxu0 0
    %2648 = vmatpush2.bf16.msra.mxu0 0
    %2649 = vmatprep.subr.bf16.mxu0 0
    %2650 = vmatpush2.bf16.msra.mxu0 0
    %2651 = vmatprep.subr.bf16.mxu0 0
    %2652 = vmatpush2.bf16.msra.mxu0 0
    %2653 = vmatprep.subr.bf16.mxu0 0
    %2654 = vmatpush2.bf16.msra.mxu0 0
    %2655 = vmatprep.mubr.bf16.mxu0 0
    %2656 = vmatmul.mubr.bf16.gmra.mxu0 %v2599
    %v2657 = vpop.f32.mrf.mxu0
    %v2658 = vadd.f32 %v2543, %v2657
    %v2659 = vpop.f32.mrf.mxu0
    %v2660 = vadd.f32 %v2547, %v2659
    %v2661 = vpop.f32.mrf.mxu0
    %v2662 = vpop.f32.mrf.mxu0
    %2663 = vdwg.mxu0
    %2664 = vmatprep.subr.bf16.mxu0 0
    %2665 = vmatpush1.bf16.msra.mxu0 0
    %2666 = vmatprep.subr.bf16.mxu0 0
    %2667 = vmatpush1.bf16.msra.mxu0 0
    %2668 = vmatprep.subr.bf16.mxu0 0
    %2669 = vmatpush1.bf16.msra.mxu0 0
    %2670 = vmatprep.subr.bf16.mxu0 0
    %2671 = vmatpush1.bf16.msra.mxu0 0
    %2672 = vmatprep.subr.bf16.mxu0 0
    %2673 = vmatpush1.bf16.msra.mxu0 0
    %2674 = vmatprep.subr.bf16.mxu0 0
    %2675 = vmatpush1.bf16.msra.mxu0 0
    %2676 = vmatprep.subr.bf16.mxu0 0
    %2677 = vmatpush1.bf16.msra.mxu0 0
    %2678 = vmatprep.subr.bf16.mxu0 %v2615
    %2679 = vmatpush1.bf16.msra.mxu0 %v2612
    %2680 = vmatprep.subr.bf16.mxu0 0
    %2681 = vmatpush2.bf16.msra.mxu0 0
    %2682 = vmatprep.subr.bf16.mxu0 0
    %2683 = vmatpush2.bf16.msra.mxu0 0
    %2684 = vmatprep.subr.bf16.mxu0 0
    %2685 = vmatpush2.bf16.msra.mxu0 0
    %2686 = vmatprep.subr.bf16.mxu0 0
    %2687 = vmatpush2.bf16.msra.mxu0 0
    %2688 = vmatprep.subr.bf16.mxu0 0
    %2689 = vmatpush2.bf16.msra.mxu0 0
    %2690 = vmatprep.subr.bf16.mxu0 0
    %2691 = vmatpush2.bf16.msra.mxu0 0
    %2692 = vmatprep.subr.bf16.mxu0 0
    %2693 = vmatpush2.bf16.msra.mxu0 0
    %2694 = vmatprep.subr.bf16.mxu0 0
    %2695 = vmatpush2.bf16.msra.mxu0 0
    %2696 = vmatprep.mubr.bf16.mxu0 0
    %2697 = vmatmul.mubr.bf16.gmra.mxu0 %v2599
    %v2698 = vpop.f32.mrf.mxu0
    %v2699 = vadd.f32 %v2551, %v2698
    %v2700 = vpop.f32.mrf.mxu0
    %v2701 = vadd.f32 %v2555, %v2700
    %v2702 = vpop.f32.mrf.mxu0
    %v2703 = vpop.f32.mrf.mxu0
    %2704 = vdwg.mxu0
    %2705 = vmatprep.subr.bf16.mxu0 0
    %2706 = vmatpush1.bf16.msra.mxu0 0
    %2707 = vmatprep.subr.bf16.mxu0 0
    %2708 = vmatpush1.bf16.msra.mxu0 0
    %2709 = vmatprep.subr.bf16.mxu0 0
    %2710 = vmatpush1.bf16.msra.mxu0 0
    %2711 = vmatprep.subr.bf16.mxu0 0
    %2712 = vmatpush1.bf16.msra.mxu0 0
    %2713 = vmatprep.subr.bf16.mxu0 0
    %2714 = vmatpush1.bf16.msra.mxu0 0
    %2715 = vmatprep.subr.bf16.mxu0 0
    %2716 = vmatpush1.bf16.msra.mxu0 0
    %2717 = vmatprep.subr.bf16.mxu0 0
    %2718 = vmatpush1.bf16.msra.mxu0 0
    %2719 = vmatprep.subr.bf16.mxu0 %v2621
    %2720 = vmatpush1.bf16.msra.mxu0 %v2618
    %2721 = vmatprep.subr.bf16.mxu0 0
    %2722 = vmatpush2.bf16.msra.mxu0 0
    %2723 = vmatprep.subr.bf16.mxu0 0
    %2724 = vmatpush2.bf16.msra.mxu0 0
    %2725 = vmatprep.subr.bf16.mxu0 0
    %2726 = vmatpush2.bf16.msra.mxu0 0
    %2727 = vmatprep.subr.bf16.mxu0 0
    %2728 = vmatpush2.bf16.msra.mxu0 0
    %2729 = vmatprep.subr.bf16.mxu0 0
    %2730 = vmatpush2.bf16.msra.mxu0 0
    %2731 = vmatprep.subr.bf16.mxu0 0
    %2732 = vmatpush2.bf16.msra.mxu0 0
    %2733 = vmatprep.subr.bf16.mxu0 0
    %2734 = vmatpush2.bf16.msra.mxu0 0
    %2735 = vmatprep.subr.bf16.mxu0 0
    %2736 = vmatpush2.bf16.msra.mxu0 0
    %2737 = vmatprep.mubr.bf16.mxu0 0
    %2738 = vmatmul.mubr.bf16.gmra.mxu0 %v2599
    %v2739 = vpop.f32.mrf.mxu0
    %v2740 = vadd.f32 %v2559, %v2739
    %v2741 = vpop.f32.mrf.mxu0
    %v2742 = vadd.f32 %v2563, %v2741
    %v2743 = vpop.f32.mrf.mxu0
    %v2744 = vpop.f32.mrf.mxu0
    %2745 = vdwg.mxu0
    %v2746 = vmax.f32 %v2658, 0.0
    %v2747 = vmax.f32 %v2660, 0.0
    %v2748 = vmax.f32 %v2699, 0.0
    %v2749 = vmax.f32 %v2701, 0.0
    %v2750 = vmax.f32 %v2740, 0.0
    %v2751 = vmax.f32 %v2742, 0.0
    %v2752 = vpack.c.bf16 %v2746, %v2746
    %v2753 = vpack.c.bf16 %v2747, %v2747
    %v2754 = vpack.c.bf16 %v2748, %v2748
    %v2755 = vpack.c.bf16 %v2749, %v2749
    %v2756 = vpack.c.bf16 %v2750, %v2750
    %v2757 = vpack.c.bf16 %v2751, %v2751
    %v2758 = vld [vmem:[%s12] sm:$0xff]
    %v2759 = vld [vmem:[%s12 + $0x8] sm:$0xff]
    %v2760 = vld [vmem:[%s12 + $0x10] sm:$0xff]
    %v2761 = vld [vmem:[%s12 + $0x18] sm:$0xff]
    %v2762 = vld [vmem:[%s12 + $0x20] sm:$0xff]
    %v2763 = vld [vmem:[%s12 + $0x28] sm:$0xff]
    %v2764 = vld [vmem:[%s12 + $0x30] sm:$0xff]
    %v2765 = vld [vmem:[%s12 + $0x38] sm:$0xff]
    %v2766 = vld [vmem:[%s12 + $0x40] sm:$0xff]
    %v2767 = vld [vmem:[%s12 + $0x48] sm:$0xff]
    %v2768 = vld [vmem:[%s12 + $0x50] sm:$0xff]
    %v2769 = vld [vmem:[%s12 + $0x58] sm:$0xff]
    %v2770 = vld [vmem:[%s12 + $0x60] sm:$0xff]
    %v2771 = vld [vmem:[%s12 + $0x68] sm:$0xff]
    %v2772 = vld [vmem:[%s12 + $0x70] sm:$0xff]
    %v2773 = vld [vmem:[%s12 + $0x78] sm:$0xff]
    %v2774 = vld [vmem:[%s12 + $0x80] sm:$0xff]
    %v2775 = vld [vmem:[%s12 + $0x88] sm:$0xff]
    %v2776 = vld [vmem:[%s12 + $0x90] sm:$0xff]
    %v2777 = vld [vmem:[%s12 + $0x98] sm:$0xff]
    %v2778 = vld [vmem:[%s12 + $0xa0] sm:$0xff]
    %v2779 = vld [vmem:[%s12 + $0xa8] sm:$0xff]
    %v2780 = vld [vmem:[%s12 + $0xb0] sm:$0xff]
    %v2781 = vld [vmem:[%s12 + $0xb8] sm:$0xff]
    %v2782 = vld [vmem:[%s12 + $0xc0] sm:$0xff]
    %v2783 = vld [vmem:[%s12 + $0xc8] sm:$0xff]
    %v2784 = vld [vmem:[%s12 + $0xd0] sm:$0xff]
    %v2785 = vld [vmem:[%s12 + $0xd8] sm:$0xff]
    %v2786 = vld [vmem:[%s12 + $0xe0] sm:$0xff]
    %v2787 = vld [vmem:[%s12 + $0xe8] sm:$0xff]
    %v2788 = vld [vmem:[%s12 + $0xf0] sm:$0xff]
    %v2789 = vld [vmem:[%s12 + $0xf8] sm:$0xff]
    %v2790 = vld [vmem:[%s12 + $0x100] sm:$0xff]
    %v2791 = vld [vmem:[%s12 + $0x108] sm:$0xff]
    %v2792 = vld [vmem:[%s12 + $0x110] sm:$0xff]
    %v2793 = vld [vmem:[%s12 + $0x118] sm:$0xff]
    %v2794 = vld [vmem:[%s12 + $0x120] sm:$0xff]
    %v2795 = vld [vmem:[%s12 + $0x128] sm:$0xff]
    %v2796 = vld [vmem:[%s12 + $0x130] sm:$0xff]
    %v2797 = vld [vmem:[%s12 + $0x138] sm:$0xff]
    %v2798 = vld [vmem:[%s12 + $0x140] sm:$0xff]
    %v2799 = vld [vmem:[%s12 + $0x148] sm:$0xff]
    %v2800 = vld [vmem:[%s12 + $0x150] sm:$0xff]
    %v2801 = vld [vmem:[%s12 + $0x158] sm:$0xff]
    %v2802 = vld [vmem:[%s12 + $0x160] sm:$0xff]
    %v2803 = vld [vmem:[%s12 + $0x168] sm:$0xff]
    %v2804 = vld [vmem:[%s12 + $0x170] sm:$0xff]
    %v2805 = vld [vmem:[%s12 + $0x178] sm:$0xff]
    %v2806 = vld [vmem:[%s12 + $0x180] sm:$0xff]
    %v2807 = vld [vmem:[%s12 + $0x188] sm:$0xff]
    %v2808 = vld [vmem:[%s12 + $0x190] sm:$0xff]
    %v2809 = vld [vmem:[%s12 + $0x198] sm:$0xff]
    %v2810 = vld [vmem:[%s12 + $0x1a0] sm:$0xff]
    %v2811 = vld [vmem:[%s12 + $0x1a8] sm:$0xff]
    %v2812 = vld [vmem:[%s12 + $0x1b0] sm:$0xff]
    %v2813 = vld [vmem:[%s12 + $0x1b8] sm:$0xff]
    %v2814 = vld [vmem:[%s12 + $0x1c0] sm:$0xff]
    %v2815 = vld [vmem:[%s12 + $0x1c8] sm:$0xff]
    %v2816 = vld [vmem:[%s12 + $0x1d0] sm:$0xff]
    %v2817 = vld [vmem:[%s12 + $0x1d8] sm:$0xff]
    %v2818 = vld [vmem:[%s12 + $0x1e0] sm:$0xff]
    %v2819 = vld [vmem:[%s12 + $0x1e8] sm:$0xff]
    %v2820 = vld [vmem:[%s12 + $0x1f0] sm:$0xff]
    %v2821 = vld [vmem:[%s12 + $0x1f8] sm:$0xff]
    %v2822 = vld [vmem:[%s12 + $0x200] sm:$0xff]
    %v2823 = vld [vmem:[%s12 + $0x208] sm:$0xff]
    %v2824 = vld [vmem:[%s12 + $0x210] sm:$0xff]
    %v2825 = vld [vmem:[%s12 + $0x218] sm:$0xff]
    %v2826 = vld [vmem:[%s12 + $0x220] sm:$0xff]
    %v2827 = vld [vmem:[%s12 + $0x228] sm:$0xff]
    %v2828 = vld [vmem:[%s12 + $0x230] sm:$0xff]
    %v2829 = vld [vmem:[%s12 + $0x238] sm:$0xff]
    %v2830 = vld [vmem:[%s12 + $0x240] sm:$0xff]
    %v2831 = vld [vmem:[%s12 + $0x248] sm:$0xff]
    %v2832 = vld [vmem:[%s12 + $0x250] sm:$0xff]
    %v2833 = vld [vmem:[%s12 + $0x258] sm:$0xff]
    %v2834 = vld [vmem:[%s12 + $0x260] sm:$0xff]
    %v2835 = vld [vmem:[%s12 + $0x268] sm:$0xff]
    %v2836 = vld [vmem:[%s12 + $0x270] sm:$0xff]
    %v2837 = vld [vmem:[%s12 + $0x278] sm:$0xff]
    %v2838 = vld [vmem:[%s12 + $0x280] sm:$0xff]
    %v2839 = vld [vmem:[%s12 + $0x288] sm:$0xff]
    %v2840 = vld [vmem:[%s12 + $0x290] sm:$0xff]
    %v2841 = vld [vmem:[%s12 + $0x298] sm:$0xff]
    %v2842 = vld [vmem:[%s12 + $0x2a0] sm:$0xff]
    %v2843 = vld [vmem:[%s12 + $0x2a8] sm:$0xff]
    %v2844 = vld [vmem:[%s12 + $0x2b0] sm:$0xff]
    %v2845 = vld [vmem:[%s12 + $0x2b8] sm:$0xff]
    %v2846 = vld [vmem:[%s12 + $0x2c0] sm:$0xff]
    %v2847 = vld [vmem:[%s12 + $0x2c8] sm:$0xff]
    %v2848 = vld [vmem:[%s12 + $0x2d0] sm:$0xff]
    %v2849 = vld [vmem:[%s12 + $0x2d8] sm:$0xff]
    %v2850 = vld [vmem:[%s12 + $0x2e0] sm:$0xff]
    %v2851 = vld [vmem:[%s12 + $0x2e8] sm:$0xff]
    %v2852 = vld [vmem:[%s12 + $0x2f0] sm:$0xff]
    %v2853 = vld [vmem:[%s12 + $0x2f8] sm:$0xff]
    %v2854 = vld [vmem:[%s12 + $0x300] sm:$0xff]
    %v2855 = vld [vmem:[%s12 + $0x308] sm:$0xff]
    %v2856 = vld [vmem:[%s12 + $0x310] sm:$0xff]
    %v2857 = vld [vmem:[%s12 + $0x318] sm:$0xff]
    %v2858 = vld [vmem:[%s12 + $0x320] sm:$0xff]
    %v2859 = vld [vmem:[%s12 + $0x328] sm:$0xff]
    %v2860 = vld [vmem:[%s12 + $0x330] sm:$0xff]
    %v2861 = vld [vmem:[%s12 + $0x338] sm:$0xff]
    %v2862 = vld [vmem:[%s12 + $0x340] sm:$0xff]
    %v2863 = vld [vmem:[%s12 + $0x348] sm:$0xff]
    %v2864 = vld [vmem:[%s12 + $0x350] sm:$0xff]
    %v2865 = vld [vmem:[%s12 + $0x358] sm:$0xff]
    %v2866 = vld [vmem:[%s12 + $0x360] sm:$0xff]
    %v2867 = vld [vmem:[%s12 + $0x368] sm:$0xff]
    %v2868 = vld [vmem:[%s12 + $0x370] sm:$0xff]
    %v2869 = vld [vmem:[%s12 + $0x378] sm:$0xff]
    %v2870 = vld [vmem:[%s12 + $0x380] sm:$0xff]
    %v2871 = vld [vmem:[%s12 + $0x388] sm:$0xff]
    %v2872 = vld [vmem:[%s12 + $0x390] sm:$0xff]
    %v2873 = vld [vmem:[%s12 + $0x398] sm:$0xff]
    %v2874 = vld [vmem:[%s12 + $0x3a0] sm:$0xff]
    %v2875 = vld [vmem:[%s12 + $0x3a8] sm:$0xff]
    %v2876 = vld [vmem:[%s12 + $0x3b0] sm:$0xff]
    %v2877 = vld [vmem:[%s12 + $0x3b8] sm:$0xff]
    %v2878 = vld [vmem:[%s12 + $0x3c0] sm:$0xff]
    %v2879 = vld [vmem:[%s12 + $0x3c8] sm:$0xff]
    %v2880 = vld [vmem:[%s12 + $0x3d0] sm:$0xff]
    %v2881 = vld [vmem:[%s12 + $0x3d8] sm:$0xff]
    %v2882 = vld [vmem:[%s12 + $0x3e0] sm:$0xff]
    %v2883 = vld [vmem:[%s12 + $0x3e8] sm:$0xff]
    %v2884 = vld [vmem:[%s12 + $0x3f0] sm:$0xff]
    %v2885 = vld [vmem:[%s12 + $0x3f8] sm:$0xff]
    %v2886 = vld [vmem:[%s12 + $0x400] sm:$0xff]
    %v2887 = vld [vmem:[%s12 + $0x408] sm:$0xff]
    %v2888 = vld [vmem:[%s12 + $0x410] sm:$0xff]
    %v2889 = vld [vmem:[%s12 + $0x418] sm:$0xff]
    %v2890 = vld [vmem:[%s12 + $0x420] sm:$0xff]
    %v2891 = vld [vmem:[%s12 + $0x428] sm:$0xff]
    %v2892 = vld [vmem:[%s12 + $0x430] sm:$0xff]
    %v2893 = vld [vmem:[%s12 + $0x438] sm:$0xff]
    %v2894 = vld [vmem:[%s12 + $0x440] sm:$0xff]
    %v2895 = vld [vmem:[%s12 + $0x448] sm:$0xff]
    %v2896 = vld [vmem:[%s12 + $0x450] sm:$0xff]
    %v2897 = vld [vmem:[%s12 + $0x458] sm:$0xff]
    %v2898 = vld [vmem:[%s12 + $0x460] sm:$0xff]
    %v2899 = vld [vmem:[%s12 + $0x468] sm:$0xff]
    %v2900 = vld [vmem:[%s12 + $0x470] sm:$0xff]
    %v2901 = vld [vmem:[%s12 + $0x478] sm:$0xff]
    %v2902 = vld [vmem:[%s12 + $0x480] sm:$0xff]
    %v2903 = vld [vmem:[%s12 + $0x488] sm:$0xff]
    %v2904 = vld [vmem:[%s12 + $0x490] sm:$0xff]
    %v2905 = vld [vmem:[%s12 + $0x498] sm:$0xff]
    %v2906 = vld [vmem:[%s12 + $0x4a0] sm:$0xff]
    %v2907 = vld [vmem:[%s12 + $0x4a8] sm:$0xff]
    %v2908 = vld [vmem:[%s12 + $0x4b0] sm:$0xff]
    %v2909 = vld [vmem:[%s12 + $0x4b8] sm:$0xff]
    %v2910 = vld [vmem:[%s12 + $0x4c0] sm:$0xff]
    %v2911 = vld [vmem:[%s12 + $0x4c8] sm:$0xff]
    %v2912 = vld [vmem:[%s12 + $0x4d0] sm:$0xff]
    %v2913 = vld [vmem:[%s12 + $0x4d8] sm:$0xff]
    %v2914 = vld [vmem:[%s12 + $0x4e0] sm:$0xff]
    %v2915 = vld [vmem:[%s12 + $0x4e8] sm:$0xff]
    %v2916 = vld [vmem:[%s12 + $0x4f0] sm:$0xff]
    %v2917 = vld [vmem:[%s12 + $0x4f8] sm:$0xff]
    %v2918 = vld [vmem:[%s12 + $0x500] sm:$0xff]
    %v2919 = vld [vmem:[%s12 + $0x508] sm:$0xff]
    %v2920 = vld [vmem:[%s12 + $0x510] sm:$0xff]
    %v2921 = vld [vmem:[%s12 + $0x518] sm:$0xff]
    %v2922 = vld [vmem:[%s12 + $0x520] sm:$0xff]
    %v2923 = vld [vmem:[%s12 + $0x528] sm:$0xff]
    %v2924 = vld [vmem:[%s12 + $0x530] sm:$0xff]
    %v2925 = vld [vmem:[%s12 + $0x538] sm:$0xff]
    %v2926 = vld [vmem:[%s12 + $0x540] sm:$0xff]
    %v2927 = vld [vmem:[%s12 + $0x548] sm:$0xff]
    %v2928 = vld [vmem:[%s12 + $0x550] sm:$0xff]
    %v2929 = vld [vmem:[%s12 + $0x558] sm:$0xff]
    %v2930 = vld [vmem:[%s12 + $0x560] sm:$0xff]
    %v2931 = vld [vmem:[%s12 + $0x568] sm:$0xff]
    %v2932 = vld [vmem:[%s12 + $0x570] sm:$0xff]
    %v2933 = vld [vmem:[%s12 + $0x578] sm:$0xff]
    %v2934 = vld [vmem:[%s12 + $0x580] sm:$0xff]
    %v2935 = vld [vmem:[%s12 + $0x588] sm:$0xff]
    %v2936 = vld [vmem:[%s12 + $0x590] sm:$0xff]
    %v2937 = vld [vmem:[%s12 + $0x598] sm:$0xff]
    %v2938 = vld [vmem:[%s12 + $0x5a0] sm:$0xff]
    %v2939 = vld [vmem:[%s12 + $0x5a8] sm:$0xff]
    %v2940 = vld [vmem:[%s12 + $0x5b0] sm:$0xff]
    %v2941 = vld [vmem:[%s12 + $0x5b8] sm:$0xff]
    %v2942 = vld [vmem:[%s12 + $0x5c0] sm:$0xff]
    %v2943 = vld [vmem:[%s12 + $0x5c8] sm:$0xff]
    %v2944 = vld [vmem:[%s12 + $0x5d0] sm:$0xff]
    %v2945 = vld [vmem:[%s12 + $0x5d8] sm:$0xff]
    %v2946 = vld [vmem:[%s12 + $0x5e0] sm:$0xff]
    %v2947 = vld [vmem:[%s12 + $0x5e8] sm:$0xff]
    %v2948 = vld [vmem:[%s12 + $0x5f0] sm:$0xff]
    %v2949 = vld [vmem:[%s12 + $0x5f8] sm:$0xff]
    %v2950 = vld [vmem:[%s12 + $0x600] sm:$0xff]
    %v2951 = vld [vmem:[%s12 + $0x608] sm:$0xff]
    %v2952 = vld [vmem:[%s12 + $0x610] sm:$0xff]
    %v2953 = vld [vmem:[%s12 + $0x618] sm:$0xff]
    %v2954 = vld [vmem:[%s12 + $0x620] sm:$0xff]
    %v2955 = vld [vmem:[%s12 + $0x628] sm:$0xff]
    %v2956 = vld [vmem:[%s12 + $0x630] sm:$0xff]
    %v2957 = vld [vmem:[%s12 + $0x638] sm:$0xff]
    %v2958 = vld [vmem:[%s12 + $0x640] sm:$0xff]
    %v2959 = vld [vmem:[%s12 + $0x648] sm:$0xff]
    %v2960 = vld [vmem:[%s12 + $0x650] sm:$0xff]
    %v2961 = vld [vmem:[%s12 + $0x658] sm:$0xff]
    %v2962 = vld [vmem:[%s12 + $0x660] sm:$0xff]
    %v2963 = vld [vmem:[%s12 + $0x668] sm:$0xff]
    %v2964 = vld [vmem:[%s12 + $0x670] sm:$0xff]
    %v2965 = vld [vmem:[%s12 + $0x678] sm:$0xff]
    %v2966 = vld [vmem:[%s12 + $0x680] sm:$0xff]
    %v2967 = vld [vmem:[%s12 + $0x688] sm:$0xff]
    %v2968 = vld [vmem:[%s12 + $0x690] sm:$0xff]
    %v2969 = vld [vmem:[%s12 + $0x698] sm:$0xff]
    %v2970 = vld [vmem:[%s12 + $0x6a0] sm:$0xff]
    %v2971 = vld [vmem:[%s12 + $0x6a8] sm:$0xff]
    %v2972 = vld [vmem:[%s12 + $0x6b0] sm:$0xff]
    %v2973 = vld [vmem:[%s12 + $0x6b8] sm:$0xff]
    %v2974 = vld [vmem:[%s12 + $0x6c0] sm:$0xff]
    %v2975 = vld [vmem:[%s12 + $0x6c8] sm:$0xff]
    %v2976 = vld [vmem:[%s12 + $0x6d0] sm:$0xff]
    %v2977 = vld [vmem:[%s12 + $0x6d8] sm:$0xff]
    %v2978 = vld [vmem:[%s12 + $0x6e0] sm:$0xff]
    %v2979 = vld [vmem:[%s12 + $0x6e8] sm:$0xff]
    %v2980 = vld [vmem:[%s12 + $0x6f0] sm:$0xff]
    %v2981 = vld [vmem:[%s12 + $0x6f8] sm:$0xff]
    %v2982 = vld [vmem:[%s12 + $0x700] sm:$0xff]
    %v2983 = vld [vmem:[%s12 + $0x708] sm:$0xff]
    %v2984 = vld [vmem:[%s12 + $0x710] sm:$0xff]
    %v2985 = vld [vmem:[%s12 + $0x718] sm:$0xff]
    %v2986 = vld [vmem:[%s12 + $0x720] sm:$0xff]
    %v2987 = vld [vmem:[%s12 + $0x728] sm:$0xff]
    %v2988 = vld [vmem:[%s12 + $0x730] sm:$0xff]
    %v2989 = vld [vmem:[%s12 + $0x738] sm:$0xff]
    %v2990 = vld [vmem:[%s12 + $0x740] sm:$0xff]
    %v2991 = vld [vmem:[%s12 + $0x748] sm:$0xff]
    %v2992 = vld [vmem:[%s12 + $0x750] sm:$0xff]
    %v2993 = vld [vmem:[%s12 + $0x758] sm:$0xff]
    %v2994 = vld [vmem:[%s12 + $0x760] sm:$0xff]
    %v2995 = vld [vmem:[%s12 + $0x768] sm:$0xff]
    %v2996 = vld [vmem:[%s12 + $0x770] sm:$0xff]
    %v2997 = vld [vmem:[%s12 + $0x778] sm:$0xff]
    %v2998 = vld [vmem:[%s12 + $0x780] sm:$0xff]
    %v2999 = vld [vmem:[%s12 + $0x788] sm:$0xff]
    %v3000 = vld [vmem:[%s12 + $0x790] sm:$0xff]
    %v3001 = vld [vmem:[%s12 + $0x798] sm:$0xff]
    %v3002 = vld [vmem:[%s12 + $0x7a0] sm:$0xff]
    %v3003 = vld [vmem:[%s12 + $0x7a8] sm:$0xff]
    %v3004 = vld [vmem:[%s12 + $0x7b0] sm:$0xff]
    %v3005 = vld [vmem:[%s12 + $0x7b8] sm:$0xff]
    %v3006 = vld [vmem:[%s12 + $0x7c0] sm:$0xff]
    %v3007 = vld [vmem:[%s12 + $0x7c8] sm:$0xff]
    %v3008 = vld [vmem:[%s12 + $0x7d0] sm:$0xff]
    %v3009 = vld [vmem:[%s12 + $0x7d8] sm:$0xff]
    %v3010 = vld [vmem:[%s12 + $0x7e0] sm:$0xff]
    %v3011 = vld [vmem:[%s12 + $0x7e8] sm:$0xff]
    %v3012 = vld [vmem:[%s12 + $0x7f0] sm:$0xff]
    %v3013 = vld [vmem:[%s12 + $0x7f8] sm:$0xff]
    %v3014 = vld [vmem:[%s12 + $0x800] sm:$0xff]
    %v3015 = vld [vmem:[%s12 + $0x808] sm:$0xff]
    %v3016 = vld [vmem:[%s12 + $0x810] sm:$0xff]
    %v3017 = vld [vmem:[%s12 + $0x818] sm:$0xff]
    %v3018 = vld [vmem:[%s12 + $0x820] sm:$0xff]
    %v3019 = vld [vmem:[%s12 + $0x828] sm:$0xff]
    %v3020 = vld [vmem:[%s12 + $0x830] sm:$0xff]
    %v3021 = vld [vmem:[%s12 + $0x838] sm:$0xff]
    %v3022 = vld [vmem:[%s12 + $0x840] sm:$0xff]
    %v3023 = vld [vmem:[%s12 + $0x848] sm:$0xff]
    %v3024 = vld [vmem:[%s12 + $0x850] sm:$0xff]
    %v3025 = vld [vmem:[%s12 + $0x858] sm:$0xff]
    %v3026 = vld [vmem:[%s12 + $0x860] sm:$0xff]
    %v3027 = vld [vmem:[%s12 + $0x868] sm:$0xff]
    %v3028 = vld [vmem:[%s12 + $0x870] sm:$0xff]
    %v3029 = vld [vmem:[%s12 + $0x878] sm:$0xff]
    %v3030 = vld [vmem:[%s12 + $0x880] sm:$0xff]
    %v3031 = vld [vmem:[%s12 + $0x888] sm:$0xff]
    %v3032 = vld [vmem:[%s12 + $0x890] sm:$0xff]
    %v3033 = vld [vmem:[%s12 + $0x898] sm:$0xff]
    %v3034 = vld [vmem:[%s12 + $0x8a0] sm:$0xff]
    %v3035 = vld [vmem:[%s12 + $0x8a8] sm:$0xff]
    %v3036 = vld [vmem:[%s12 + $0x8b0] sm:$0xff]
    %v3037 = vld [vmem:[%s12 + $0x8b8] sm:$0xff]
    %v3038 = vld [vmem:[%s12 + $0x8c0] sm:$0xff]
    %v3039 = vld [vmem:[%s12 + $0x8c8] sm:$0xff]
    %v3040 = vld [vmem:[%s12 + $0x8d0] sm:$0xff]
    %v3041 = vld [vmem:[%s12 + $0x8d8] sm:$0xff]
    %v3042 = vld [vmem:[%s12 + $0x8e0] sm:$0xff]
    %v3043 = vld [vmem:[%s12 + $0x8e8] sm:$0xff]
    %v3044 = vld [vmem:[%s12 + $0x8f0] sm:$0xff]
    %v3045 = vld [vmem:[%s12 + $0x8f8] sm:$0xff]
    %v3046 = vld [vmem:[%s13] sm:$0x3f]
    %v3048 = vlaneseq
    %v3049 = vshrl.u32 %v3048, 7
    %v3050 = vsub.s32 0, %v3049
    %v3051 = vrot.slane %v3046, %v3050
    %v3052 = vlaneseq
    %v3053 = vshrl.u32 %v3052, 7
    %v3054 = vsub.s32 1, %v3053
    %v3055 = vrot.slane %v3046, %v3054
    %v3056 = vlaneseq
    %v3057 = vshrl.u32 %v3056, 7
    %v3058 = vsub.s32 2, %v3057
    %v3059 = vrot.slane %v3046, %v3058
    %v3060 = vlaneseq
    %v3061 = vshrl.u32 %v3060, 7
    %v3062 = vsub.s32 3, %v3061
    %v3063 = vrot.slane %v3046, %v3062
    %v3064 = vlaneseq
    %v3065 = vshrl.u32 %v3064, 7
    %v3066 = vsub.s32 4, %v3065
    %v3067 = vrot.slane %v3046, %v3066
    %v3068 = vlaneseq
    %v3069 = vshrl.u32 %v3068, 7
    %v3070 = vsub.s32 5, %v3069
    %v3071 = vrot.slane %v3046, %v3070
    %v3366 = vunpack.c.l.b16 %v2758
    %v3367 = vunpack.c.h.b16 %v2758
    %v3368 = vunpack.c.l.b16 %v2759
    %v3369 = vunpack.c.h.b16 %v2759
    %v3370 = vunpack.c.l.b16 %v2760
    %v3371 = vunpack.c.h.b16 %v2760
    %v3372 = vunpack.c.l.b16 %v2761
    %v3373 = vunpack.c.h.b16 %v2761
    %v3374 = vunpack.c.l.b16 %v2762
    %v3375 = vunpack.c.h.b16 %v2762
    %v3376 = vunpack.c.l.b16 %v2763
    %v3377 = vunpack.c.h.b16 %v2763
    %v3378 = vunpack.c.l.b16 %v2764
    %v3379 = vunpack.c.h.b16 %v2764
    %v3380 = vunpack.c.l.b16 %v2765
    %v3381 = vunpack.c.h.b16 %v2765
    %v3382 = vunpack.c.l.b16 %v2766
    %v3383 = vunpack.c.h.b16 %v2766
    %v3384 = vunpack.c.l.b16 %v2767
    %v3385 = vunpack.c.h.b16 %v2767
    %v3386 = vunpack.c.l.b16 %v2768
    %v3387 = vunpack.c.h.b16 %v2768
    %v3388 = vunpack.c.l.b16 %v2769
    %v3389 = vunpack.c.h.b16 %v2769
    %v3390 = vunpack.c.l.b16 %v2770
    %v3391 = vunpack.c.h.b16 %v2770
    %v3392 = vunpack.c.l.b16 %v2771
    %v3393 = vunpack.c.h.b16 %v2771
    %v3394 = vunpack.c.l.b16 %v2772
    %v3395 = vunpack.c.h.b16 %v2772
    %v3396 = vunpack.c.l.b16 %v2773
    %v3397 = vunpack.c.h.b16 %v2773
    %v3398 = vunpack.c.l.b16 %v2774
    %v3399 = vunpack.c.h.b16 %v2774
    %v3400 = vunpack.c.l.b16 %v2775
    %v3401 = vunpack.c.h.b16 %v2775
    %v3402 = vunpack.c.l.b16 %v2776
    %v3403 = vunpack.c.h.b16 %v2776
    %v3404 = vunpack.c.l.b16 %v2777
    %v3405 = vunpack.c.h.b16 %v2777
    %v3406 = vunpack.c.l.b16 %v2778
    %v3407 = vunpack.c.h.b16 %v2778
    %v3408 = vunpack.c.l.b16 %v2779
    %v3409 = vunpack.c.h.b16 %v2779
    %v3410 = vunpack.c.l.b16 %v2780
    %v3411 = vunpack.c.h.b16 %v2780
    %v3412 = vunpack.c.l.b16 %v2781
    %v3413 = vunpack.c.h.b16 %v2781
    %v3414 = vunpack.c.l.b16 %v2782
    %v3415 = vunpack.c.h.b16 %v2782
    %v3416 = vunpack.c.l.b16 %v2783
    %v3417 = vunpack.c.h.b16 %v2783
    %v3418 = vunpack.c.l.b16 %v2784
    %v3419 = vunpack.c.h.b16 %v2784
    %v3420 = vunpack.c.l.b16 %v2785
    %v3421 = vunpack.c.h.b16 %v2785
    %v3422 = vunpack.c.l.b16 %v2786
    %v3423 = vunpack.c.h.b16 %v2786
    %v3424 = vunpack.c.l.b16 %v2787
    %v3425 = vunpack.c.h.b16 %v2787
    %v3426 = vunpack.c.l.b16 %v2788
    %v3427 = vunpack.c.h.b16 %v2788
    %v3428 = vunpack.c.l.b16 %v2789
    %v3429 = vunpack.c.h.b16 %v2789
    %v3430 = vunpack.c.l.b16 %v2790
    %v3431 = vunpack.c.h.b16 %v2790
    %v3432 = vunpack.c.l.b16 %v2791
    %v3433 = vunpack.c.h.b16 %v2791
    %v3434 = vunpack.c.l.b16 %v2792
    %v3435 = vunpack.c.h.b16 %v2792
    %v3436 = vunpack.c.l.b16 %v2793
    %v3437 = vunpack.c.h.b16 %v2793
    %v3438 = vunpack.c.l.b16 %v2794
    %v3439 = vunpack.c.h.b16 %v2794
    %v3440 = vunpack.c.l.b16 %v2795
    %v3441 = vunpack.c.h.b16 %v2795
    %v3442 = vunpack.c.l.b16 %v2796
    %v3443 = vunpack.c.h.b16 %v2796
    %v3444 = vunpack.c.l.b16 %v2797
    %v3445 = vunpack.c.h.b16 %v2797
    %v3446 = vunpack.c.l.b16 %v2798
    %v3447 = vunpack.c.h.b16 %v2798
    %v3448 = vunpack.c.l.b16 %v2799
    %v3449 = vunpack.c.h.b16 %v2799
    %v3450 = vunpack.c.l.b16 %v2800
    %v3451 = vunpack.c.h.b16 %v2800
    %v3452 = vunpack.c.l.b16 %v2801
    %v3453 = vunpack.c.h.b16 %v2801
    %v3454 = vunpack.c.l.b16 %v2802
    %v3455 = vunpack.c.h.b16 %v2802
    %v3456 = vunpack.c.l.b16 %v2803
    %v3457 = vunpack.c.h.b16 %v2803
    %v3458 = vunpack.c.l.b16 %v2804
    %v3459 = vunpack.c.h.b16 %v2804
    %v3460 = vunpack.c.l.b16 %v2805
    %v3461 = vunpack.c.h.b16 %v2805
    %v3462 = vunpack.c.l.b16 %v2806
    %v3463 = vunpack.c.h.b16 %v2806
    %v3464 = vunpack.c.l.b16 %v2807
    %v3465 = vunpack.c.h.b16 %v2807
    %v3466 = vunpack.c.l.b16 %v2808
    %v3467 = vunpack.c.h.b16 %v2808
    %v3468 = vunpack.c.l.b16 %v2809
    %v3469 = vunpack.c.h.b16 %v2809
    %v3470 = vunpack.c.l.b16 %v2810
    %v3471 = vunpack.c.h.b16 %v2810
    %v3472 = vunpack.c.l.b16 %v2811
    %v3473 = vunpack.c.h.b16 %v2811
    %v3474 = vunpack.c.l.b16 %v2812
    %v3475 = vunpack.c.h.b16 %v2812
    %v3476 = vunpack.c.l.b16 %v2813
    %v3477 = vunpack.c.h.b16 %v2813
    %v3478 = vunpack.c.l.b16 %v2814
    %v3479 = vunpack.c.h.b16 %v2814
    %v3480 = vunpack.c.l.b16 %v2815
    %v3481 = vunpack.c.h.b16 %v2815
    %v3482 = vunpack.c.l.b16 %v2816
    %v3483 = vunpack.c.h.b16 %v2816
    %v3484 = vunpack.c.l.b16 %v2817
    %v3485 = vunpack.c.h.b16 %v2817
    %v3486 = vunpack.c.l.b16 %v2818
    %v3487 = vunpack.c.h.b16 %v2818
    %v3488 = vunpack.c.l.b16 %v2819
    %v3489 = vunpack.c.h.b16 %v2819
    %v3490 = vunpack.c.l.b16 %v2820
    %v3491 = vunpack.c.h.b16 %v2820
    %v3492 = vunpack.c.l.b16 %v2821
    %v3493 = vunpack.c.h.b16 %v2821
    %v3494 = vunpack.c.l.b16 %v2822
    %v3495 = vunpack.c.h.b16 %v2822
    %v3496 = vunpack.c.l.b16 %v2823
    %v3497 = vunpack.c.h.b16 %v2823
    %v3498 = vunpack.c.l.b16 %v2824
    %v3499 = vunpack.c.h.b16 %v2824
    %v3500 = vunpack.c.l.b16 %v2825
    %v3501 = vunpack.c.h.b16 %v2825
    %v3502 = vunpack.c.l.b16 %v2826
    %v3503 = vunpack.c.h.b16 %v2826
    %v3504 = vunpack.c.l.b16 %v2827
    %v3505 = vunpack.c.h.b16 %v2827
    %v3506 = vunpack.c.l.b16 %v2828
    %v3507 = vunpack.c.h.b16 %v2828
    %v3508 = vunpack.c.l.b16 %v2829
    %v3509 = vunpack.c.h.b16 %v2829
    %v3510 = vunpack.c.l.b16 %v2830
    %v3511 = vunpack.c.h.b16 %v2830
    %v3512 = vunpack.c.l.b16 %v2831
    %v3513 = vunpack.c.h.b16 %v2831
    %v3514 = vunpack.c.l.b16 %v2832
    %v3515 = vunpack.c.h.b16 %v2832
    %v3516 = vunpack.c.l.b16 %v2833
    %v3517 = vunpack.c.h.b16 %v2833
    %v3518 = vunpack.c.l.b16 %v2834
    %v3519 = vunpack.c.h.b16 %v2834
    %v3520 = vunpack.c.l.b16 %v2835
    %v3521 = vunpack.c.h.b16 %v2835
    %v3522 = vunpack.c.l.b16 %v2836
    %v3523 = vunpack.c.h.b16 %v2836
    %v3524 = vunpack.c.l.b16 %v2837
    %v3525 = vunpack.c.h.b16 %v2837
    %v3526 = vunpack.c.l.b16 %v2838
    %v3527 = vunpack.c.h.b16 %v2838
    %v3528 = vunpack.c.l.b16 %v2839
    %v3529 = vunpack.c.h.b16 %v2839
    %v3530 = vunpack.c.l.b16 %v2840
    %v3531 = vunpack.c.h.b16 %v2840
    %v3532 = vunpack.c.l.b16 %v2841
    %v3533 = vunpack.c.h.b16 %v2841
    %v3534 = vunpack.c.l.b16 %v2842
    %v3535 = vunpack.c.h.b16 %v2842
    %v3536 = vunpack.c.l.b16 %v2843
    %v3537 = vunpack.c.h.b16 %v2843
    %v3538 = vunpack.c.l.b16 %v2844
    %v3539 = vunpack.c.h.b16 %v2844
    %v3540 = vunpack.c.l.b16 %v2845
    %v3541 = vunpack.c.h.b16 %v2845
    %v3542 = vunpack.c.l.b16 %v2846
    %v3543 = vunpack.c.h.b16 %v2846
    %v3544 = vunpack.c.l.b16 %v2847
    %v3545 = vunpack.c.h.b16 %v2847
    %v3546 = vunpack.c.l.b16 %v2848
    %v3547 = vunpack.c.h.b16 %v2848
    %v3548 = vunpack.c.l.b16 %v2849
    %v3549 = vunpack.c.h.b16 %v2849
    %v3550 = vunpack.c.l.b16 %v2850
    %v3551 = vunpack.c.h.b16 %v2850
    %v3552 = vunpack.c.l.b16 %v2851
    %v3553 = vunpack.c.h.b16 %v2851
    %v3554 = vunpack.c.l.b16 %v2852
    %v3555 = vunpack.c.h.b16 %v2852
    %v3556 = vunpack.c.l.b16 %v2853
    %v3557 = vunpack.c.h.b16 %v2853
    %v3558 = vunpack.c.l.b16 %v2854
    %v3559 = vunpack.c.h.b16 %v2854
    %v3560 = vunpack.c.l.b16 %v2855
    %v3561 = vunpack.c.h.b16 %v2855
    %v3562 = vunpack.c.l.b16 %v2856
    %v3563 = vunpack.c.h.b16 %v2856
    %v3564 = vunpack.c.l.b16 %v2857
    %v3565 = vunpack.c.h.b16 %v2857
    %v3566 = vunpack.c.l.b16 %v2858
    %v3567 = vunpack.c.h.b16 %v2858
    %v3568 = vunpack.c.l.b16 %v2859
    %v3569 = vunpack.c.h.b16 %v2859
    %v3570 = vunpack.c.l.b16 %v2860
    %v3571 = vunpack.c.h.b16 %v2860
    %v3572 = vunpack.c.l.b16 %v2861
    %v3573 = vunpack.c.h.b16 %v2861
    %v3574 = vunpack.c.l.b16 %v2862
    %v3575 = vunpack.c.h.b16 %v2862
    %v3576 = vunpack.c.l.b16 %v2863
    %v3577 = vunpack.c.h.b16 %v2863
    %v3578 = vunpack.c.l.b16 %v2864
    %v3579 = vunpack.c.h.b16 %v2864
    %v3580 = vunpack.c.l.b16 %v2865
    %v3581 = vunpack.c.h.b16 %v2865
    %v3582 = vunpack.c.l.b16 %v2866
    %v3583 = vunpack.c.h.b16 %v2866
    %v3584 = vunpack.c.l.b16 %v2867
    %v3585 = vunpack.c.h.b16 %v2867
    %v3586 = vunpack.c.l.b16 %v2868
    %v3587 = vunpack.c.h.b16 %v2868
    %v3588 = vunpack.c.l.b16 %v2869
    %v3589 = vunpack.c.h.b16 %v2869
    %v3590 = vunpack.c.l.b16 %v2870
    %v3591 = vunpack.c.h.b16 %v2870
    %v3592 = vunpack.c.l.b16 %v2871
    %v3593 = vunpack.c.h.b16 %v2871
    %v3594 = vunpack.c.l.b16 %v2872
    %v3595 = vunpack.c.h.b16 %v2872
    %v3596 = vunpack.c.l.b16 %v2873
    %v3597 = vunpack.c.h.b16 %v2873
    %v3598 = vunpack.c.l.b16 %v2874
    %v3599 = vunpack.c.h.b16 %v2874
    %v3600 = vunpack.c.l.b16 %v2875
    %v3601 = vunpack.c.h.b16 %v2875
    %v3602 = vunpack.c.l.b16 %v2876
    %v3603 = vunpack.c.h.b16 %v2876
    %v3604 = vunpack.c.l.b16 %v2877
    %v3605 = vunpack.c.h.b16 %v2877
    %v3606 = vunpack.c.l.b16 %v2878
    %v3607 = vunpack.c.h.b16 %v2878
    %v3608 = vunpack.c.l.b16 %v2879
    %v3609 = vunpack.c.h.b16 %v2879
    %v3610 = vunpack.c.l.b16 %v2880
    %v3611 = vunpack.c.h.b16 %v2880
    %v3612 = vunpack.c.l.b16 %v2881
    %v3613 = vunpack.c.h.b16 %v2881
    %v3614 = vunpack.c.l.b16 %v2882
    %v3615 = vunpack.c.h.b16 %v2882
    %v3616 = vunpack.c.l.b16 %v2883
    %v3617 = vunpack.c.h.b16 %v2883
    %v3618 = vunpack.c.l.b16 %v2884
    %v3619 = vunpack.c.h.b16 %v2884
    %v3620 = vunpack.c.l.b16 %v2885
    %v3621 = vunpack.c.h.b16 %v2885
    %v3622 = vunpack.c.l.b16 %v2886
    %v3623 = vunpack.c.h.b16 %v2886
    %v3624 = vunpack.c.l.b16 %v2887
    %v3625 = vunpack.c.h.b16 %v2887
    %v3626 = vunpack.c.l.b16 %v2888
    %v3627 = vunpack.c.h.b16 %v2888
    %v3628 = vunpack.c.l.b16 %v2889
    %v3629 = vunpack.c.h.b16 %v2889
    %v3630 = vunpack.c.l.b16 %v2890
    %v3631 = vunpack.c.h.b16 %v2890
    %v3632 = vunpack.c.l.b16 %v2891
    %v3633 = vunpack.c.h.b16 %v2891
    %v3634 = vunpack.c.l.b16 %v2892
    %v3635 = vunpack.c.h.b16 %v2892
    %v3636 = vunpack.c.l.b16 %v2893
    %v3637 = vunpack.c.h.b16 %v2893
    %v3638 = vunpack.c.l.b16 %v2894
    %v3639 = vunpack.c.h.b16 %v2894
    %v3640 = vunpack.c.l.b16 %v2895
    %v3641 = vunpack.c.h.b16 %v2895
    %v3642 = vunpack.c.l.b16 %v2896
    %v3643 = vunpack.c.h.b16 %v2896
    %v3644 = vunpack.c.l.b16 %v2897
    %v3645 = vunpack.c.h.b16 %v2897
    %v3646 = vunpack.c.l.b16 %v2898
    %v3647 = vunpack.c.h.b16 %v2898
    %v3648 = vunpack.c.l.b16 %v2899
    %v3649 = vunpack.c.h.b16 %v2899
    %v3650 = vunpack.c.l.b16 %v2900
    %v3651 = vunpack.c.h.b16 %v2900
    %v3652 = vunpack.c.l.b16 %v2901
    %v3653 = vunpack.c.h.b16 %v2901
    %v3654 = vunpack.c.l.b16 %v2902
    %v3655 = vunpack.c.h.b16 %v2902
    %v3656 = vunpack.c.l.b16 %v2903
    %v3657 = vunpack.c.h.b16 %v2903
    %v3658 = vunpack.c.l.b16 %v2904
    %v3659 = vunpack.c.h.b16 %v2904
    %v3660 = vunpack.c.l.b16 %v2905
    %v3661 = vunpack.c.h.b16 %v2905
    %v3662 = vunpack.c.l.b16 %v2906
    %v3663 = vunpack.c.h.b16 %v2906
    %v3664 = vunpack.c.l.b16 %v2907
    %v3665 = vunpack.c.h.b16 %v2907
    %v3666 = vunpack.c.l.b16 %v2908
    %v3667 = vunpack.c.h.b16 %v2908
    %v3668 = vunpack.c.l.b16 %v2909
    %v3669 = vunpack.c.h.b16 %v2909
    %v3670 = vunpack.c.l.b16 %v2910
    %v3671 = vunpack.c.h.b16 %v2910
    %v3672 = vunpack.c.l.b16 %v2911
    %v3673 = vunpack.c.h.b16 %v2911
    %v3674 = vunpack.c.l.b16 %v2912
    %v3675 = vunpack.c.h.b16 %v2912
    %v3676 = vunpack.c.l.b16 %v2913
    %v3677 = vunpack.c.h.b16 %v2913
    %v3678 = vunpack.c.l.b16 %v2914
    %v3679 = vunpack.c.h.b16 %v2914
    %v3680 = vunpack.c.l.b16 %v2915
    %v3681 = vunpack.c.h.b16 %v2915
    %v3682 = vunpack.c.l.b16 %v2916
    %v3683 = vunpack.c.h.b16 %v2916
    %v3684 = vunpack.c.l.b16 %v2917
    %v3685 = vunpack.c.h.b16 %v2917
    %v3686 = vunpack.c.l.b16 %v2918
    %v3687 = vunpack.c.h.b16 %v2918
    %v3688 = vunpack.c.l.b16 %v2919
    %v3689 = vunpack.c.h.b16 %v2919
    %v3690 = vunpack.c.l.b16 %v2920
    %v3691 = vunpack.c.h.b16 %v2920
    %v3692 = vunpack.c.l.b16 %v2921
    %v3693 = vunpack.c.h.b16 %v2921
    %v3694 = vunpack.c.l.b16 %v2922
    %v3695 = vunpack.c.h.b16 %v2922
    %v3696 = vunpack.c.l.b16 %v2923
    %v3697 = vunpack.c.h.b16 %v2923
    %v3698 = vunpack.c.l.b16 %v2924
    %v3699 = vunpack.c.h.b16 %v2924
    %v3700 = vunpack.c.l.b16 %v2925
    %v3701 = vunpack.c.h.b16 %v2925
    %v3702 = vunpack.c.l.b16 %v2926
    %v3703 = vunpack.c.h.b16 %v2926
    %v3704 = vunpack.c.l.b16 %v2927
    %v3705 = vunpack.c.h.b16 %v2927
    %v3706 = vunpack.c.l.b16 %v2928
    %v3707 = vunpack.c.h.b16 %v2928
    %v3708 = vunpack.c.l.b16 %v2929
    %v3709 = vunpack.c.h.b16 %v2929
    %v3710 = vunpack.c.l.b16 %v2930
    %v3711 = vunpack.c.h.b16 %v2930
    %v3712 = vunpack.c.l.b16 %v2931
    %v3713 = vunpack.c.h.b16 %v2931
    %v3714 = vunpack.c.l.b16 %v2932
    %v3715 = vunpack.c.h.b16 %v2932
    %v3716 = vunpack.c.l.b16 %v2933
    %v3717 = vunpack.c.h.b16 %v2933
    %v3718 = vunpack.c.l.b16 %v2934
    %v3719 = vunpack.c.h.b16 %v2934
    %v3720 = vunpack.c.l.b16 %v2935
    %v3721 = vunpack.c.h.b16 %v2935
    %v3722 = vunpack.c.l.b16 %v2936
    %v3723 = vunpack.c.h.b16 %v2936
    %v3724 = vunpack.c.l.b16 %v2937
    %v3725 = vunpack.c.h.b16 %v2937
    %v3726 = vunpack.c.l.b16 %v2938
    %v3727 = vunpack.c.h.b16 %v2938
    %v3728 = vunpack.c.l.b16 %v2939
    %v3729 = vunpack.c.h.b16 %v2939
    %v3730 = vunpack.c.l.b16 %v2940
    %v3731 = vunpack.c.h.b16 %v2940
    %v3732 = vunpack.c.l.b16 %v2941
    %v3733 = vunpack.c.h.b16 %v2941
    %v3734 = vunpack.c.l.b16 %v2942
    %v3735 = vunpack.c.h.b16 %v2942
    %v3736 = vunpack.c.l.b16 %v2943
    %v3737 = vunpack.c.h.b16 %v2943
    %v3738 = vunpack.c.l.b16 %v2944
    %v3739 = vunpack.c.h.b16 %v2944
    %v3740 = vunpack.c.l.b16 %v2945
    %v3741 = vunpack.c.h.b16 %v2945
    %v3742 = vunpack.c.l.b16 %v2946
    %v3743 = vunpack.c.h.b16 %v2946
    %v3744 = vunpack.c.l.b16 %v2947
    %v3745 = vunpack.c.h.b16 %v2947
    %v3746 = vunpack.c.l.b16 %v2948
    %v3747 = vunpack.c.h.b16 %v2948
    %v3748 = vunpack.c.l.b16 %v2949
    %v3749 = vunpack.c.h.b16 %v2949
    %v3750 = vunpack.c.l.b16 %v2950
    %v3751 = vunpack.c.h.b16 %v2950
    %v3752 = vunpack.c.l.b16 %v2951
    %v3753 = vunpack.c.h.b16 %v2951
    %v3754 = vunpack.c.l.b16 %v2952
    %v3755 = vunpack.c.h.b16 %v2952
    %v3756 = vunpack.c.l.b16 %v2953
    %v3757 = vunpack.c.h.b16 %v2953
    %v3758 = vunpack.c.l.b16 %v2954
    %v3759 = vunpack.c.h.b16 %v2954
    %v3760 = vunpack.c.l.b16 %v2955
    %v3761 = vunpack.c.h.b16 %v2955
    %v3762 = vunpack.c.l.b16 %v2956
    %v3763 = vunpack.c.h.b16 %v2956
    %v3764 = vunpack.c.l.b16 %v2957
    %v3765 = vunpack.c.h.b16 %v2957
    %v3766 = vunpack.c.l.b16 %v2958
    %v3767 = vunpack.c.h.b16 %v2958
    %v3768 = vunpack.c.l.b16 %v2959
    %v3769 = vunpack.c.h.b16 %v2959
    %v3770 = vunpack.c.l.b16 %v2960
    %v3771 = vunpack.c.h.b16 %v2960
    %v3772 = vunpack.c.l.b16 %v2961
    %v3773 = vunpack.c.h.b16 %v2961
    %v3774 = vunpack.c.l.b16 %v2962
    %v3775 = vunpack.c.h.b16 %v2962
    %v3776 = vunpack.c.l.b16 %v2963
    %v3777 = vunpack.c.h.b16 %v2963
    %v3778 = vunpack.c.l.b16 %v2964
    %v3779 = vunpack.c.h.b16 %v2964
    %v3780 = vunpack.c.l.b16 %v2965
    %v3781 = vunpack.c.h.b16 %v2965
    %v3782 = vunpack.c.l.b16 %v2966
    %v3783 = vunpack.c.h.b16 %v2966
    %v3784 = vunpack.c.l.b16 %v2967
    %v3785 = vunpack.c.h.b16 %v2967
    %v3786 = vunpack.c.l.b16 %v2968
    %v3787 = vunpack.c.h.b16 %v2968
    %v3788 = vunpack.c.l.b16 %v2969
    %v3789 = vunpack.c.h.b16 %v2969
    %v3790 = vunpack.c.l.b16 %v2970
    %v3791 = vunpack.c.h.b16 %v2970
    %v3792 = vunpack.c.l.b16 %v2971
    %v3793 = vunpack.c.h.b16 %v2971
    %v3794 = vunpack.c.l.b16 %v2972
    %v3795 = vunpack.c.h.b16 %v2972
    %v3796 = vunpack.c.l.b16 %v2973
    %v3797 = vunpack.c.h.b16 %v2973
    %v3798 = vunpack.c.l.b16 %v2974
    %v3799 = vunpack.c.h.b16 %v2974
    %v3800 = vunpack.c.l.b16 %v2975
    %v3801 = vunpack.c.h.b16 %v2975
    %v3802 = vunpack.c.l.b16 %v2976
    %v3803 = vunpack.c.h.b16 %v2976
    %v3804 = vunpack.c.l.b16 %v2977
    %v3805 = vunpack.c.h.b16 %v2977
    %v3806 = vunpack.c.l.b16 %v2978
    %v3807 = vunpack.c.h.b16 %v2978
    %v3808 = vunpack.c.l.b16 %v2979
    %v3809 = vunpack.c.h.b16 %v2979
    %v3810 = vunpack.c.l.b16 %v2980
    %v3811 = vunpack.c.h.b16 %v2980
    %v3812 = vunpack.c.l.b16 %v2981
    %v3813 = vunpack.c.h.b16 %v2981
    %v3814 = vunpack.c.l.b16 %v2982
    %v3815 = vunpack.c.h.b16 %v2982
    %v3816 = vunpack.c.l.b16 %v2983
    %v3817 = vunpack.c.h.b16 %v2983
    %v3818 = vunpack.c.l.b16 %v2984
    %v3819 = vunpack.c.h.b16 %v2984
    %v3820 = vunpack.c.l.b16 %v2985
    %v3821 = vunpack.c.h.b16 %v2985
    %v3822 = vunpack.c.l.b16 %v2986
    %v3823 = vunpack.c.h.b16 %v2986
    %v3824 = vunpack.c.l.b16 %v2987
    %v3825 = vunpack.c.h.b16 %v2987
    %v3826 = vunpack.c.l.b16 %v2988
    %v3827 = vunpack.c.h.b16 %v2988
    %v3828 = vunpack.c.l.b16 %v2989
    %v3829 = vunpack.c.h.b16 %v2989
    %v3830 = vunpack.c.l.b16 %v2990
    %v3831 = vunpack.c.h.b16 %v2990
    %v3832 = vunpack.c.l.b16 %v2991
    %v3833 = vunpack.c.h.b16 %v2991
    %v3834 = vunpack.c.l.b16 %v2992
    %v3835 = vunpack.c.h.b16 %v2992
    %v3836 = vunpack.c.l.b16 %v2993
    %v3837 = vunpack.c.h.b16 %v2993
    %v3838 = vunpack.c.l.b16 %v2994
    %v3839 = vunpack.c.h.b16 %v2994
    %v3840 = vunpack.c.l.b16 %v2995
    %v3841 = vunpack.c.h.b16 %v2995
    %v3842 = vunpack.c.l.b16 %v2996
    %v3843 = vunpack.c.h.b16 %v2996
    %v3844 = vunpack.c.l.b16 %v2997
    %v3845 = vunpack.c.h.b16 %v2997
    %v3846 = vunpack.c.l.b16 %v2998
    %v3847 = vunpack.c.h.b16 %v2998
    %v3848 = vunpack.c.l.b16 %v2999
    %v3849 = vunpack.c.h.b16 %v2999
    %v3850 = vunpack.c.l.b16 %v3000
    %v3851 = vunpack.c.h.b16 %v3000
    %v3852 = vunpack.c.l.b16 %v3001
    %v3853 = vunpack.c.h.b16 %v3001
    %v3854 = vunpack.c.l.b16 %v3002
    %v3855 = vunpack.c.h.b16 %v3002
    %v3856 = vunpack.c.l.b16 %v3003
    %v3857 = vunpack.c.h.b16 %v3003
    %v3858 = vunpack.c.l.b16 %v3004
    %v3859 = vunpack.c.h.b16 %v3004
    %v3860 = vunpack.c.l.b16 %v3005
    %v3861 = vunpack.c.h.b16 %v3005
    %v3862 = vunpack.c.l.b16 %v3006
    %v3863 = vunpack.c.h.b16 %v3006
    %v3864 = vunpack.c.l.b16 %v3007
    %v3865 = vunpack.c.h.b16 %v3007
    %v3866 = vunpack.c.l.b16 %v3008
    %v3867 = vunpack.c.h.b16 %v3008
    %v3868 = vunpack.c.l.b16 %v3009
    %v3869 = vunpack.c.h.b16 %v3009
    %v3870 = vunpack.c.l.b16 %v3010
    %v3871 = vunpack.c.h.b16 %v3010
    %v3872 = vunpack.c.l.b16 %v3011
    %v3873 = vunpack.c.h.b16 %v3011
    %v3874 = vunpack.c.l.b16 %v3012
    %v3875 = vunpack.c.h.b16 %v3012
    %v3876 = vunpack.c.l.b16 %v3013
    %v3877 = vunpack.c.h.b16 %v3013
    %v3878 = vunpack.c.l.b16 %v3014
    %v3879 = vunpack.c.h.b16 %v3014
    %v3880 = vunpack.c.l.b16 %v3015
    %v3881 = vunpack.c.h.b16 %v3015
    %v3882 = vunpack.c.l.b16 %v3016
    %v3883 = vunpack.c.h.b16 %v3016
    %v3884 = vunpack.c.l.b16 %v3017
    %v3885 = vunpack.c.h.b16 %v3017
    %v3886 = vunpack.c.l.b16 %v3018
    %v3887 = vunpack.c.h.b16 %v3018
    %v3888 = vunpack.c.l.b16 %v3019
    %v3889 = vunpack.c.h.b16 %v3019
    %v3890 = vunpack.c.l.b16 %v3020
    %v3891 = vunpack.c.h.b16 %v3020
    %v3892 = vunpack.c.l.b16 %v3021
    %v3893 = vunpack.c.h.b16 %v3021
    %v3894 = vunpack.c.l.b16 %v3022
    %v3895 = vunpack.c.h.b16 %v3022
    %v3896 = vunpack.c.l.b16 %v3023
    %v3897 = vunpack.c.h.b16 %v3023
    %v3898 = vunpack.c.l.b16 %v3024
    %v3899 = vunpack.c.h.b16 %v3024
    %v3900 = vunpack.c.l.b16 %v3025
    %v3901 = vunpack.c.h.b16 %v3025
    %v3902 = vunpack.c.l.b16 %v3026
    %v3903 = vunpack.c.h.b16 %v3026
    %v3904 = vunpack.c.l.b16 %v3027
    %v3905 = vunpack.c.h.b16 %v3027
    %v3906 = vunpack.c.l.b16 %v3028
    %v3907 = vunpack.c.h.b16 %v3028
    %v3908 = vunpack.c.l.b16 %v3029
    %v3909 = vunpack.c.h.b16 %v3029
    %v3910 = vunpack.c.l.b16 %v3030
    %v3911 = vunpack.c.h.b16 %v3030
    %v3912 = vunpack.c.l.b16 %v3031
    %v3913 = vunpack.c.h.b16 %v3031
    %v3914 = vunpack.c.l.b16 %v3032
    %v3915 = vunpack.c.h.b16 %v3032
    %v3916 = vunpack.c.l.b16 %v3033
    %v3917 = vunpack.c.h.b16 %v3033
    %v3918 = vunpack.c.l.b16 %v3034
    %v3919 = vunpack.c.h.b16 %v3034
    %v3920 = vunpack.c.l.b16 %v3035
    %v3921 = vunpack.c.h.b16 %v3035
    %v3922 = vunpack.c.l.b16 %v3036
    %v3923 = vunpack.c.h.b16 %v3036
    %v3924 = vunpack.c.l.b16 %v3037
    %v3925 = vunpack.c.h.b16 %v3037
    %v3926 = vunpack.c.l.b16 %v3038
    %v3927 = vunpack.c.h.b16 %v3038
    %v3928 = vunpack.c.l.b16 %v3039
    %v3929 = vunpack.c.h.b16 %v3039
    %v3930 = vunpack.c.l.b16 %v3040
    %v3931 = vunpack.c.h.b16 %v3040
    %v3932 = vunpack.c.l.b16 %v3041
    %v3933 = vunpack.c.h.b16 %v3041
    %v3934 = vunpack.c.l.b16 %v3042
    %v3935 = vunpack.c.h.b16 %v3042
    %v3936 = vunpack.c.l.b16 %v3043
    %v3937 = vunpack.c.h.b16 %v3043
    %v3938 = vunpack.c.l.b16 %v3044
    %v3939 = vunpack.c.h.b16 %v3044
    %v3940 = vunpack.c.l.b16 %v3045
    %v3941 = vunpack.c.h.b16 %v3045
    %v3942 = vpack.c.b16 %v3372, %v3366
    %v3943 = vpack.c.b16 %v3373, %v3367
    %v3944 = vpack.c.b16 %v3374, %v3368
    %v3945 = vpack.c.b16 %v3375, %v3369
    %v3946 = vpack.c.b16 %v3376, %v3370
    %v3947 = vpack.c.b16 %v3377, %v3371
    %v3948 = vpack.c.b16 %v3384, %v3378
    %v3949 = vpack.c.b16 %v3385, %v3379
    %v3950 = vpack.c.b16 %v3386, %v3380
    %v3951 = vpack.c.b16 %v3387, %v3381
    %v3952 = vpack.c.b16 %v3388, %v3382
    %v3953 = vpack.c.b16 %v3389, %v3383
    %v3954 = vpack.c.b16 %v3396, %v3390
    %v3955 = vpack.c.b16 %v3397, %v3391
    %v3956 = vpack.c.b16 %v3398, %v3392
    %v3957 = vpack.c.b16 %v3399, %v3393
    %v3958 = vpack.c.b16 %v3400, %v3394
    %v3959 = vpack.c.b16 %v3401, %v3395
    %v3960 = vpack.c.b16 %v3408, %v3402
    %v3961 = vpack.c.b16 %v3409, %v3403
    %v3962 = vpack.c.b16 %v3410, %v3404
    %v3963 = vpack.c.b16 %v3411, %v3405
    %v3964 = vpack.c.b16 %v3412, %v3406
    %v3965 = vpack.c.b16 %v3413, %v3407
    %v3966 = vpack.c.b16 %v3420, %v3414
    %v3967 = vpack.c.b16 %v3421, %v3415
    %v3968 = vpack.c.b16 %v3422, %v3416
    %v3969 = vpack.c.b16 %v3423, %v3417
    %v3970 = vpack.c.b16 %v3424, %v3418
    %v3971 = vpack.c.b16 %v3425, %v3419
    %v3972 = vpack.c.b16 %v3432, %v3426
    %v3973 = vpack.c.b16 %v3433, %v3427
    %v3974 = vpack.c.b16 %v3434, %v3428
    %v3975 = vpack.c.b16 %v3435, %v3429
    %v3976 = vpack.c.b16 %v3436, %v3430
    %v3977 = vpack.c.b16 %v3437, %v3431
    %v3978 = vpack.c.b16 %v3444, %v3438
    %v3979 = vpack.c.b16 %v3445, %v3439
    %v3980 = vpack.c.b16 %v3446, %v3440
    %v3981 = vpack.c.b16 %v3447, %v3441
    %v3982 = vpack.c.b16 %v3448, %v3442
    %v3983 = vpack.c.b16 %v3449, %v3443
    %v3984 = vpack.c.b16 %v3456, %v3450
    %v3985 = vpack.c.b16 %v3457, %v3451
    %v3986 = vpack.c.b16 %v3458, %v3452
    %v3987 = vpack.c.b16 %v3459, %v3453
    %v3988 = vpack.c.b16 %v3460, %v3454
    %v3989 = vpack.c.b16 %v3461, %v3455
    %v3990 = vpack.c.b16 %v3468, %v3462
    %v3991 = vpack.c.b16 %v3469, %v3463
    %v3992 = vpack.c.b16 %v3470, %v3464
    %v3993 = vpack.c.b16 %v3471, %v3465
    %v3994 = vpack.c.b16 %v3472, %v3466
    %v3995 = vpack.c.b16 %v3473, %v3467
    %v3996 = vpack.c.b16 %v3480, %v3474
    %v3997 = vpack.c.b16 %v3481, %v3475
    %v3998 = vpack.c.b16 %v3482, %v3476
    %v3999 = vpack.c.b16 %v3483, %v3477
    %v4000 = vpack.c.b16 %v3484, %v3478
    %v4001 = vpack.c.b16 %v3485, %v3479
    %v4002 = vpack.c.b16 %v3492, %v3486
    %v4003 = vpack.c.b16 %v3493, %v3487
    %v4004 = vpack.c.b16 %v3494, %v3488
    %v4005 = vpack.c.b16 %v3495, %v3489
    %v4006 = vpack.c.b16 %v3496, %v3490
    %v4007 = vpack.c.b16 %v3497, %v3491
    %v4008 = vpack.c.b16 %v3504, %v3498
    %v4009 = vpack.c.b16 %v3505, %v3499
    %v4010 = vpack.c.b16 %v3506, %v3500
    %v4011 = vpack.c.b16 %v3507, %v3501
    %v4012 = vpack.c.b16 %v3508, %v3502
    %v4013 = vpack.c.b16 %v3509, %v3503
    %v4014 = vpack.c.b16 %v3516, %v3510
    %v4015 = vpack.c.b16 %v3517, %v3511
    %v4016 = vpack.c.b16 %v3518, %v3512
    %v4017 = vpack.c.b16 %v3519, %v3513
    %v4018 = vpack.c.b16 %v3520, %v3514
    %v4019 = vpack.c.b16 %v3521, %v3515
    %v4020 = vpack.c.b16 %v3528, %v3522
    %v4021 = vpack.c.b16 %v3529, %v3523
    %v4022 = vpack.c.b16 %v3530, %v3524
    %v4023 = vpack.c.b16 %v3531, %v3525
    %v4024 = vpack.c.b16 %v3532, %v3526
    %v4025 = vpack.c.b16 %v3533, %v3527
    %v4026 = vpack.c.b16 %v3540, %v3534
    %v4027 = vpack.c.b16 %v3541, %v3535
    %v4028 = vpack.c.b16 %v3542, %v3536
    %v4029 = vpack.c.b16 %v3543, %v3537
    %v4030 = vpack.c.b16 %v3544, %v3538
    %v4031 = vpack.c.b16 %v3545, %v3539
    %v4032 = vpack.c.b16 %v3552, %v3546
    %v4033 = vpack.c.b16 %v3553, %v3547
    %v4034 = vpack.c.b16 %v3554, %v3548
    %v4035 = vpack.c.b16 %v3555, %v3549
    %v4036 = vpack.c.b16 %v3556, %v3550
    %v4037 = vpack.c.b16 %v3557, %v3551
    %v4038 = vpack.c.b16 %v3564, %v3558
    %v4039 = vpack.c.b16 %v3565, %v3559
    %v4040 = vpack.c.b16 %v3566, %v3560
    %v4041 = vpack.c.b16 %v3567, %v3561
    %v4042 = vpack.c.b16 %v3568, %v3562
    %v4043 = vpack.c.b16 %v3569, %v3563
    %v4044 = vpack.c.b16 %v3576, %v3570
    %v4045 = vpack.c.b16 %v3577, %v3571
    %v4046 = vpack.c.b16 %v3578, %v3572
    %v4047 = vpack.c.b16 %v3579, %v3573
    %v4048 = vpack.c.b16 %v3580, %v3574
    %v4049 = vpack.c.b16 %v3581, %v3575
    %v4050 = vpack.c.b16 %v3588, %v3582
    %v4051 = vpack.c.b16 %v3589, %v3583
    %v4052 = vpack.c.b16 %v3590, %v3584
    %v4053 = vpack.c.b16 %v3591, %v3585
    %v4054 = vpack.c.b16 %v3592, %v3586
    %v4055 = vpack.c.b16 %v3593, %v3587
    %v4056 = vpack.c.b16 %v3600, %v3594
    %v4057 = vpack.c.b16 %v3601, %v3595
    %v4058 = vpack.c.b16 %v3602, %v3596
    %v4059 = vpack.c.b16 %v3603, %v3597
    %v4060 = vpack.c.b16 %v3604, %v3598
    %v4061 = vpack.c.b16 %v3605, %v3599
    %v4062 = vpack.c.b16 %v3612, %v3606
    %v4063 = vpack.c.b16 %v3613, %v3607
    %v4064 = vpack.c.b16 %v3614, %v3608
    %v4065 = vpack.c.b16 %v3615, %v3609
    %v4066 = vpack.c.b16 %v3616, %v3610
    %v4067 = vpack.c.b16 %v3617, %v3611
    %v4068 = vpack.c.b16 %v3624, %v3618
    %v4069 = vpack.c.b16 %v3625, %v3619
    %v4070 = vpack.c.b16 %v3626, %v3620
    %v4071 = vpack.c.b16 %v3627, %v3621
    %v4072 = vpack.c.b16 %v3628, %v3622
    %v4073 = vpack.c.b16 %v3629, %v3623
    %v4074 = vpack.c.b16 %v3636, %v3630
    %v4075 = vpack.c.b16 %v3637, %v3631
    %v4076 = vpack.c.b16 %v3638, %v3632
    %v4077 = vpack.c.b16 %v3639, %v3633
    %v4078 = vpack.c.b16 %v3640, %v3634
    %v4079 = vpack.c.b16 %v3641, %v3635
    %v4080 = vpack.c.b16 %v3648, %v3642
    %v4081 = vpack.c.b16 %v3649, %v3643
    %v4082 = vpack.c.b16 %v3650, %v3644
    %v4083 = vpack.c.b16 %v3651, %v3645
    %v4084 = vpack.c.b16 %v3652, %v3646
    %v4085 = vpack.c.b16 %v3653, %v3647
    %v4086 = vpack.c.b16 %v3660, %v3654
    %v4087 = vpack.c.b16 %v3661, %v3655
    %v4088 = vpack.c.b16 %v3662, %v3656
    %v4089 = vpack.c.b16 %v3663, %v3657
    %v4090 = vpack.c.b16 %v3664, %v3658
    %v4091 = vpack.c.b16 %v3665, %v3659
    %v4092 = vpack.c.b16 %v3672, %v3666
    %v4093 = vpack.c.b16 %v3673, %v3667
    %v4094 = vpack.c.b16 %v3674, %v3668
    %v4095 = vpack.c.b16 %v3675, %v3669
    %v4096 = vpack.c.b16 %v3676, %v3670
    %v4097 = vpack.c.b16 %v3677, %v3671
    %v4098 = vpack.c.b16 %v3684, %v3678
    %v4099 = vpack.c.b16 %v3685, %v3679
    %v4100 = vpack.c.b16 %v3686, %v3680
    %v4101 = vpack.c.b16 %v3687, %v3681
    %v4102 = vpack.c.b16 %v3688, %v3682
    %v4103 = vpack.c.b16 %v3689, %v3683
    %v4104 = vpack.c.b16 %v3696, %v3690
    %v4105 = vpack.c.b16 %v3697, %v3691
    %v4106 = vpack.c.b16 %v3698, %v3692
    %v4107 = vpack.c.b16 %v3699, %v3693
    %v4108 = vpack.c.b16 %v3700, %v3694
    %v4109 = vpack.c.b16 %v3701, %v3695
    %v4110 = vpack.c.b16 %v3708, %v3702
    %v4111 = vpack.c.b16 %v3709, %v3703
    %v4112 = vpack.c.b16 %v3710, %v3704
    %v4113 = vpack.c.b16 %v3711, %v3705
    %v4114 = vpack.c.b16 %v3712, %v3706
    %v4115 = vpack.c.b16 %v3713, %v3707
    %v4116 = vpack.c.b16 %v3720, %v3714
    %v4117 = vpack.c.b16 %v3721, %v3715
    %v4118 = vpack.c.b16 %v3722, %v3716
    %v4119 = vpack.c.b16 %v3723, %v3717
    %v4120 = vpack.c.b16 %v3724, %v3718
    %v4121 = vpack.c.b16 %v3725, %v3719
    %v4122 = vpack.c.b16 %v3732, %v3726
    %v4123 = vpack.c.b16 %v3733, %v3727
    %v4124 = vpack.c.b16 %v3734, %v3728
    %v4125 = vpack.c.b16 %v3735, %v3729
    %v4126 = vpack.c.b16 %v3736, %v3730
    %v4127 = vpack.c.b16 %v3737, %v3731
    %v4128 = vpack.c.b16 %v3744, %v3738
    %v4129 = vpack.c.b16 %v3745, %v3739
    %v4130 = vpack.c.b16 %v3746, %v3740
    %v4131 = vpack.c.b16 %v3747, %v3741
    %v4132 = vpack.c.b16 %v3748, %v3742
    %v4133 = vpack.c.b16 %v3749, %v3743
    %v4134 = vpack.c.b16 %v3756, %v3750
    %v4135 = vpack.c.b16 %v3757, %v3751
    %v4136 = vpack.c.b16 %v3758, %v3752
    %v4137 = vpack.c.b16 %v3759, %v3753
    %v4138 = vpack.c.b16 %v3760, %v3754
    %v4139 = vpack.c.b16 %v3761, %v3755
    %v4140 = vpack.c.b16 %v3768, %v3762
    %v4141 = vpack.c.b16 %v3769, %v3763
    %v4142 = vpack.c.b16 %v3770, %v3764
    %v4143 = vpack.c.b16 %v3771, %v3765
    %v4144 = vpack.c.b16 %v3772, %v3766
    %v4145 = vpack.c.b16 %v3773, %v3767
    %v4146 = vpack.c.b16 %v3780, %v3774
    %v4147 = vpack.c.b16 %v3781, %v3775
    %v4148 = vpack.c.b16 %v3782, %v3776
    %v4149 = vpack.c.b16 %v3783, %v3777
    %v4150 = vpack.c.b16 %v3784, %v3778
    %v4151 = vpack.c.b16 %v3785, %v3779
    %v4152 = vpack.c.b16 %v3792, %v3786
    %v4153 = vpack.c.b16 %v3793, %v3787
    %v4154 = vpack.c.b16 %v3794, %v3788
    %v4155 = vpack.c.b16 %v3795, %v3789
    %v4156 = vpack.c.b16 %v3796, %v3790
    %v4157 = vpack.c.b16 %v3797, %v3791
    %v4158 = vpack.c.b16 %v3804, %v3798
    %v4159 = vpack.c.b16 %v3805, %v3799
    %v4160 = vpack.c.b16 %v3806, %v3800
    %v4161 = vpack.c.b16 %v3807, %v3801
    %v4162 = vpack.c.b16 %v3808, %v3802
    %v4163 = vpack.c.b16 %v3809, %v3803
    %v4164 = vpack.c.b16 %v3816, %v3810
    %v4165 = vpack.c.b16 %v3817, %v3811
    %v4166 = vpack.c.b16 %v3818, %v3812
    %v4167 = vpack.c.b16 %v3819, %v3813
    %v4168 = vpack.c.b16 %v3820, %v3814
    %v4169 = vpack.c.b16 %v3821, %v3815
    %v4170 = vpack.c.b16 %v3828, %v3822
    %v4171 = vpack.c.b16 %v3829, %v3823
    %v4172 = vpack.c.b16 %v3830, %v3824
    %v4173 = vpack.c.b16 %v3831, %v3825
    %v4174 = vpack.c.b16 %v3832, %v3826
    %v4175 = vpack.c.b16 %v3833, %v3827
    %v4176 = vpack.c.b16 %v3840, %v3834
    %v4177 = vpack.c.b16 %v3841, %v3835
    %v4178 = vpack.c.b16 %v3842, %v3836
    %v4179 = vpack.c.b16 %v3843, %v3837
    %v4180 = vpack.c.b16 %v3844, %v3838
    %v4181 = vpack.c.b16 %v3845, %v3839
    %v4182 = vpack.c.b16 %v3852, %v3846
    %v4183 = vpack.c.b16 %v3853, %v3847
    %v4184 = vpack.c.b16 %v3854, %v3848
    %v4185 = vpack.c.b16 %v3855, %v3849
    %v4186 = vpack.c.b16 %v3856, %v3850
    %v4187 = vpack.c.b16 %v3857, %v3851
    %v4188 = vpack.c.b16 %v3864, %v3858
    %v4189 = vpack.c.b16 %v3865, %v3859
    %v4190 = vpack.c.b16 %v3866, %v3860
    %v4191 = vpack.c.b16 %v3867, %v3861
    %v4192 = vpack.c.b16 %v3868, %v3862
    %v4193 = vpack.c.b16 %v3869, %v3863
    %v4194 = vpack.c.b16 %v3876, %v3870
    %v4195 = vpack.c.b16 %v3877, %v3871
    %v4196 = vpack.c.b16 %v3878, %v3872
    %v4197 = vpack.c.b16 %v3879, %v3873
    %v4198 = vpack.c.b16 %v3880, %v3874
    %v4199 = vpack.c.b16 %v3881, %v3875
    %v4200 = vpack.c.b16 %v3888, %v3882
    %v4201 = vpack.c.b16 %v3889, %v3883
    %v4202 = vpack.c.b16 %v3890, %v3884
    %v4203 = vpack.c.b16 %v3891, %v3885
    %v4204 = vpack.c.b16 %v3892, %v3886
    %v4205 = vpack.c.b16 %v3893, %v3887
    %v4206 = vpack.c.b16 %v3900, %v3894
    %v4207 = vpack.c.b16 %v3901, %v3895
    %v4208 = vpack.c.b16 %v3902, %v3896
    %v4209 = vpack.c.b16 %v3903, %v3897
    %v4210 = vpack.c.b16 %v3904, %v3898
    %v4211 = vpack.c.b16 %v3905, %v3899
    %v4212 = vpack.c.b16 %v3912, %v3906
    %v4213 = vpack.c.b16 %v3913, %v3907
    %v4214 = vpack.c.b16 %v3914, %v3908
    %v4215 = vpack.c.b16 %v3915, %v3909
    %v4216 = vpack.c.b16 %v3916, %v3910
    %v4217 = vpack.c.b16 %v3917, %v3911
    %v4218 = vpack.c.b16 %v3924, %v3918
    %v4219 = vpack.c.b16 %v3925, %v3919
    %v4220 = vpack.c.b16 %v3926, %v3920
    %v4221 = vpack.c.b16 %v3927, %v3921
    %v4222 = vpack.c.b16 %v3928, %v3922
    %v4223 = vpack.c.b16 %v3929, %v3923
    %v4224 = vpack.c.b16 %v3936, %v3930
    %v4225 = vpack.c.b16 %v3937, %v3931
    %v4226 = vpack.c.b16 %v3938, %v3932
    %v4227 = vpack.c.b16 %v3939, %v3933
    %v4228 = vpack.c.b16 %v3940, %v3934
    %v4229 = vpack.c.b16 %v3941, %v3935
    %4518 = vmatprep.subr.bf16.mxu0 %v3985
    %4519 = vmatpush1.bf16.msra.mxu0 %v3984
    %4520 = vmatprep.subr.bf16.mxu0 %v3979
    %4521 = vmatpush1.bf16.msra.mxu0 %v3978
    %4522 = vmatprep.subr.bf16.mxu0 %v3973
    %4523 = vmatpush1.bf16.msra.mxu0 %v3972
    %4524 = vmatprep.subr.bf16.mxu0 %v3967
    %4525 = vmatpush1.bf16.msra.mxu0 %v3966
    %4526 = vmatprep.subr.bf16.mxu0 %v3961
    %4527 = vmatpush1.bf16.msra.mxu0 %v3960
    %4528 = vmatprep.subr.bf16.mxu0 %v3955
    %4529 = vmatpush1.bf16.msra.mxu0 %v3954
    %4530 = vmatprep.subr.bf16.mxu0 %v3949
    %4531 = vmatpush1.bf16.msra.mxu0 %v3948
    %4532 = vmatprep.subr.bf16.mxu0 %v3943
    %4533 = vmatpush1.bf16.msra.mxu0 %v3942
    %4534 = vmatprep.subr.bf16.mxu0 %v4033
    %4535 = vmatpush2.bf16.msra.mxu0 %v4032
    %4536 = vmatprep.subr.bf16.mxu0 %v4027
    %4537 = vmatpush2.bf16.msra.mxu0 %v4026
    %4538 = vmatprep.subr.bf16.mxu0 %v4021
    %4539 = vmatpush2.bf16.msra.mxu0 %v4020
    %4540 = vmatprep.subr.bf16.mxu0 %v4015
    %4541 = vmatpush2.bf16.msra.mxu0 %v4014
    %4542 = vmatprep.subr.bf16.mxu0 %v4009
    %4543 = vmatpush2.bf16.msra.mxu0 %v4008
    %4544 = vmatprep.subr.bf16.mxu0 %v4003
    %4545 = vmatpush2.bf16.msra.mxu0 %v4002
    %4546 = vmatprep.subr.bf16.mxu0 %v3997
    %4547 = vmatpush2.bf16.msra.mxu0 %v3996
    %4548 = vmatprep.subr.bf16.mxu0 %v3991
    %4549 = vmatpush2.bf16.msra.mxu0 %v3990
    %4550 = vmatprep.mubr.bf16.mxu0 %v2753
    %4551 = vmatmul.mubr.bf16.gmra.mxu0 %v2752
    %v4552 = vpop.f32.mrf.mxu0
    %v4553 = vadd.f32 %v3051, %v4552
    %v4554 = vpop.f32.mrf.mxu0
    %v4555 = vadd.f32 %v3055, %v4554
    %v4556 = vpop.f32.mrf.mxu0
    %v4557 = vpop.f32.mrf.mxu0
    %4558 = vdwg.mxu0
    %4559 = vmatprep.subr.bf16.mxu0 %v4081
    %4560 = vmatpush1.bf16.msra.mxu0 %v4080
    %4561 = vmatprep.subr.bf16.mxu0 %v4075
    %4562 = vmatpush1.bf16.msra.mxu0 %v4074
    %4563 = vmatprep.subr.bf16.mxu0 %v4069
    %4564 = vmatpush1.bf16.msra.mxu0 %v4068
    %4565 = vmatprep.subr.bf16.mxu0 %v4063
    %4566 = vmatpush1.bf16.msra.mxu0 %v4062
    %4567 = vmatprep.subr.bf16.mxu0 %v4057
    %4568 = vmatpush1.bf16.msra.mxu0 %v4056
    %4569 = vmatprep.subr.bf16.mxu0 %v4051
    %4570 = vmatpush1.bf16.msra.mxu0 %v4050
    %4571 = vmatprep.subr.bf16.mxu0 %v4045
    %4572 = vmatpush1.bf16.msra.mxu0 %v4044
    %4573 = vmatprep.subr.bf16.mxu0 %v4039
    %4574 = vmatpush1.bf16.msra.mxu0 %v4038
    %4575 = vmatprep.subr.bf16.mxu0 %v4129
    %4576 = vmatpush2.bf16.msra.mxu0 %v4128
    %4577 = vmatprep.subr.bf16.mxu0 %v4123
    %4578 = vmatpush2.bf16.msra.mxu0 %v4122
    %4579 = vmatprep.subr.bf16.mxu0 %v4117
    %4580 = vmatpush2.bf16.msra.mxu0 %v4116
    %4581 = vmatprep.subr.bf16.mxu0 %v4111
    %4582 = vmatpush2.bf16.msra.mxu0 %v4110
    %4583 = vmatprep.subr.bf16.mxu0 %v4105
    %4584 = vmatpush2.bf16.msra.mxu0 %v4104
    %4585 = vmatprep.subr.bf16.mxu0 %v4099
    %4586 = vmatpush2.bf16.msra.mxu0 %v4098
    %4587 = vmatprep.subr.bf16.mxu0 %v4093
    %4588 = vmatpush2.bf16.msra.mxu0 %v4092
    %4589 = vmatprep.subr.bf16.mxu0 %v4087
    %4590 = vmatpush2.bf16.msra.mxu0 %v4086
    %4591 = vmatprep.mubr.bf16.mxu0 %v2755
    %4592 = vmatmul.mubr.bf16.gmra.mxu0 %v2754
    %v4593 = vpop.f32.mrf.mxu0
    %v4594 = vadd.f32 %v4553, %v4593
    %v4595 = vpop.f32.mrf.mxu0
    %v4596 = vadd.f32 %v4555, %v4595
    %v4597 = vpop.f32.mrf.mxu0
    %v4598 = vpop.f32.mrf.mxu0
    %4599 = vdwg.mxu0
    %4600 = vmatprep.subr.bf16.mxu0 %v4177
    %4601 = vmatpush1.bf16.msra.mxu0 %v4176
    %4602 = vmatprep.subr.bf16.mxu0 %v4171
    %4603 = vmatpush1.bf16.msra.mxu0 %v4170
    %4604 = vmatprep.subr.bf16.mxu0 %v4165
    %4605 = vmatpush1.bf16.msra.mxu0 %v4164
    %4606 = vmatprep.subr.bf16.mxu0 %v4159
    %4607 = vmatpush1.bf16.msra.mxu0 %v4158
    %4608 = vmatprep.subr.bf16.mxu0 %v4153
    %4609 = vmatpush1.bf16.msra.mxu0 %v4152
    %4610 = vmatprep.subr.bf16.mxu0 %v4147
    %4611 = vmatpush1.bf16.msra.mxu0 %v4146
    %4612 = vmatprep.subr.bf16.mxu0 %v4141
    %4613 = vmatpush1.bf16.msra.mxu0 %v4140
    %4614 = vmatprep.subr.bf16.mxu0 %v4135
    %4615 = vmatpush1.bf16.msra.mxu0 %v4134
    %4616 = vmatprep.subr.bf16.mxu0 %v4225
    %4617 = vmatpush2.bf16.msra.mxu0 %v4224
    %4618 = vmatprep.subr.bf16.mxu0 %v4219
    %4619 = vmatpush2.bf16.msra.mxu0 %v4218
    %4620 = vmatprep.subr.bf16.mxu0 %v4213
    %4621 = vmatpush2.bf16.msra.mxu0 %v4212
    %4622 = vmatprep.subr.bf16.mxu0 %v4207
    %4623 = vmatpush2.bf16.msra.mxu0 %v4206
    %4624 = vmatprep.subr.bf16.mxu0 %v4201
    %4625 = vmatpush2.bf16.msra.mxu0 %v4200
    %4626 = vmatprep.subr.bf16.mxu0 %v4195
    %4627 = vmatpush2.bf16.msra.mxu0 %v4194
    %4628 = vmatprep.subr.bf16.mxu0 %v4189
    %4629 = vmatpush2.bf16.msra.mxu0 %v4188
    %4630 = vmatprep.subr.bf16.mxu0 %v4183
    %4631 = vmatpush2.bf16.msra.mxu0 %v4182
    %4632 = vmatprep.mubr.bf16.mxu0 %v2757
    %4633 = vmatmul.mubr.bf16.gmra.mxu0 %v2756
    %v4634 = vpop.f32.mrf.mxu0
    %v4635 = vadd.f32 %v4594, %v4634
    %v4636 = vpop.f32.mrf.mxu0
    %v4637 = vadd.f32 %v4596, %v4636
    %v4638 = vpop.f32.mrf.mxu0
    %v4639 = vpop.f32.mrf.mxu0
    %4640 = vdwg.mxu0
    %4641 = vmatprep.subr.bf16.mxu0 %v3987
    %4642 = vmatpush1.bf16.msra.mxu0 %v3986
    %4643 = vmatprep.subr.bf16.mxu0 %v3981
    %4644 = vmatpush1.bf16.msra.mxu0 %v3980
    %4645 = vmatprep.subr.bf16.mxu0 %v3975
    %4646 = vmatpush1.bf16.msra.mxu0 %v3974
    %4647 = vmatprep.subr.bf16.mxu0 %v3969
    %4648 = vmatpush1.bf16.msra.mxu0 %v3968
    %4649 = vmatprep.subr.bf16.mxu0 %v3963
    %4650 = vmatpush1.bf16.msra.mxu0 %v3962
    %4651 = vmatprep.subr.bf16.mxu0 %v3957
    %4652 = vmatpush1.bf16.msra.mxu0 %v3956
    %4653 = vmatprep.subr.bf16.mxu0 %v3951
    %4654 = vmatpush1.bf16.msra.mxu0 %v3950
    %4655 = vmatprep.subr.bf16.mxu0 %v3945
    %4656 = vmatpush1.bf16.msra.mxu0 %v3944
    %4657 = vmatprep.subr.bf16.mxu0 %v4035
    %4658 = vmatpush2.bf16.msra.mxu0 %v4034
    %4659 = vmatprep.subr.bf16.mxu0 %v4029
    %4660 = vmatpush2.bf16.msra.mxu0 %v4028
    %4661 = vmatprep.subr.bf16.mxu0 %v4023
    %4662 = vmatpush2.bf16.msra.mxu0 %v4022
    %4663 = vmatprep.subr.bf16.mxu0 %v4017
    %4664 = vmatpush2.bf16.msra.mxu0 %v4016
    %4665 = vmatprep.subr.bf16.mxu0 %v4011
    %4666 = vmatpush2.bf16.msra.mxu0 %v4010
    %4667 = vmatprep.subr.bf16.mxu0 %v4005
    %4668 = vmatpush2.bf16.msra.mxu0 %v4004
    %4669 = vmatprep.subr.bf16.mxu0 %v3999
    %4670 = vmatpush2.bf16.msra.mxu0 %v3998
    %4671 = vmatprep.subr.bf16.mxu0 %v3993
    %4672 = vmatpush2.bf16.msra.mxu0 %v3992
    %4673 = vmatprep.mubr.bf16.mxu0 %v2753
    %4674 = vmatmul.mubr.bf16.gmra.mxu0 %v2752
    %v4675 = vpop.f32.mrf.mxu0
    %v4676 = vadd.f32 %v3059, %v4675
    %v4677 = vpop.f32.mrf.mxu0
    %v4678 = vadd.f32 %v3063, %v4677
    %v4679 = vpop.f32.mrf.mxu0
    %v4680 = vpop.f32.mrf.mxu0
    %4681 = vdwg.mxu0
    %4682 = vmatprep.subr.bf16.mxu0 %v4083
    %4683 = vmatpush1.bf16.msra.mxu0 %v4082
    %4684 = vmatprep.subr.bf16.mxu0 %v4077
    %4685 = vmatpush1.bf16.msra.mxu0 %v4076
    %4686 = vmatprep.subr.bf16.mxu0 %v4071
    %4687 = vmatpush1.bf16.msra.mxu0 %v4070
    %4688 = vmatprep.subr.bf16.mxu0 %v4065
    %4689 = vmatpush1.bf16.msra.mxu0 %v4064
    %4690 = vmatprep.subr.bf16.mxu0 %v4059
    %4691 = vmatpush1.bf16.msra.mxu0 %v4058
    %4692 = vmatprep.subr.bf16.mxu0 %v4053
    %4693 = vmatpush1.bf16.msra.mxu0 %v4052
    %4694 = vmatprep.subr.bf16.mxu0 %v4047
    %4695 = vmatpush1.bf16.msra.mxu0 %v4046
    %4696 = vmatprep.subr.bf16.mxu0 %v4041
    %4697 = vmatpush1.bf16.msra.mxu0 %v4040
    %4698 = vmatprep.subr.bf16.mxu0 %v4131
    %4699 = vmatpush2.bf16.msra.mxu0 %v4130
    %4700 = vmatprep.subr.bf16.mxu0 %v4125
    %4701 = vmatpush2.bf16.msra.mxu0 %v4124
    %4702 = vmatprep.subr.bf16.mxu0 %v4119
    %4703 = vmatpush2.bf16.msra.mxu0 %v4118
    %4704 = vmatprep.subr.bf16.mxu0 %v4113
    %4705 = vmatpush2.bf16.msra.mxu0 %v4112
    %4706 = vmatprep.subr.bf16.mxu0 %v4107
    %4707 = vmatpush2.bf16.msra.mxu0 %v4106
    %4708 = vmatprep.subr.bf16.mxu0 %v4101
    %4709 = vmatpush2.bf16.msra.mxu0 %v4100
    %4710 = vmatprep.subr.bf16.mxu0 %v4095
    %4711 = vmatpush2.bf16.msra.mxu0 %v4094
    %4712 = vmatprep.subr.bf16.mxu0 %v4089
    %4713 = vmatpush2.bf16.msra.mxu0 %v4088
    %4714 = vmatprep.mubr.bf16.mxu0 %v2755
    %4715 = vmatmul.mubr.bf16.gmra.mxu0 %v2754
    %v4716 = vpop.f32.mrf.mxu0
    %v4717 = vadd.f32 %v4676, %v4716
    %v4718 = vpop.f32.mrf.mxu0
    %v4719 = vadd.f32 %v4678, %v4718
    %v4720 = vpop.f32.mrf.mxu0
    %v4721 = vpop.f32.mrf.mxu0
    %4722 = vdwg.mxu0
    %4723 = vmatprep.subr.bf16.mxu0 %v4179
    %4724 = vmatpush1.bf16.msra.mxu0 %v4178
    %4725 = vmatprep.subr.bf16.mxu0 %v4173
    %4726 = vmatpush1.bf16.msra.mxu0 %v4172
    %4727 = vmatprep.subr.bf16.mxu0 %v4167
    %4728 = vmatpush1.bf16.msra.mxu0 %v4166
    %4729 = vmatprep.subr.bf16.mxu0 %v4161
    %4730 = vmatpush1.bf16.msra.mxu0 %v4160
    %4731 = vmatprep.subr.bf16.mxu0 %v4155
    %4732 = vmatpush1.bf16.msra.mxu0 %v4154
    %4733 = vmatprep.subr.bf16.mxu0 %v4149
    %4734 = vmatpush1.bf16.msra.mxu0 %v4148
    %4735 = vmatprep.subr.bf16.mxu0 %v4143
    %4736 = vmatpush1.bf16.msra.mxu0 %v4142
    %4737 = vmatprep.subr.bf16.mxu0 %v4137
    %4738 = vmatpush1.bf16.msra.mxu0 %v4136
    %4739 = vmatprep.subr.bf16.mxu0 %v4227
    %4740 = vmatpush2.bf16.msra.mxu0 %v4226
    %4741 = vmatprep.subr.bf16.mxu0 %v4221
    %4742 = vmatpush2.bf16.msra.mxu0 %v4220
    %4743 = vmatprep.subr.bf16.mxu0 %v4215
    %4744 = vmatpush2.bf16.msra.mxu0 %v4214
    %4745 = vmatprep.subr.bf16.mxu0 %v4209
    %4746 = vmatpush2.bf16.msra.mxu0 %v4208
    %4747 = vmatprep.subr.bf16.mxu0 %v4203
    %4748 = vmatpush2.bf16.msra.mxu0 %v4202
    %4749 = vmatprep.subr.bf16.mxu0 %v4197
    %4750 = vmatpush2.bf16.msra.mxu0 %v4196
    %4751 = vmatprep.subr.bf16.mxu0 %v4191
    %4752 = vmatpush2.bf16.msra.mxu0 %v4190
    %4753 = vmatprep.subr.bf16.mxu0 %v4185
    %4754 = vmatpush2.bf16.msra.mxu0 %v4184
    %4755 = vmatprep.mubr.bf16.mxu0 %v2757
    %4756 = vmatmul.mubr.bf16.gmra.mxu0 %v2756
    %v4757 = vpop.f32.mrf.mxu0
    %v4758 = vadd.f32 %v4717, %v4757
    %v4759 = vpop.f32.mrf.mxu0
    %v4760 = vadd.f32 %v4719, %v4759
    %v4761 = vpop.f32.mrf.mxu0
    %v4762 = vpop.f32.mrf.mxu0
    %4763 = vdwg.mxu0
    %4764 = vmatprep.subr.bf16.mxu0 %v3989
    %4765 = vmatpush1.bf16.msra.mxu0 %v3988
    %4766 = vmatprep.subr.bf16.mxu0 %v3983
    %4767 = vmatpush1.bf16.msra.mxu0 %v3982
    %4768 = vmatprep.subr.bf16.mxu0 %v3977
    %4769 = vmatpush1.bf16.msra.mxu0 %v3976
    %4770 = vmatprep.subr.bf16.mxu0 %v3971
    %4771 = vmatpush1.bf16.msra.mxu0 %v3970
    %4772 = vmatprep.subr.bf16.mxu0 %v3965
    %4773 = vmatpush1.bf16.msra.mxu0 %v3964
    %4774 = vmatprep.subr.bf16.mxu0 %v3959
    %4775 = vmatpush1.bf16.msra.mxu0 %v3958
    %4776 = vmatprep.subr.bf16.mxu0 %v3953
    %4777 = vmatpush1.bf16.msra.mxu0 %v3952
    %4778 = vmatprep.subr.bf16.mxu0 %v3947
    %4779 = vmatpush1.bf16.msra.mxu0 %v3946
    %4780 = vmatprep.subr.bf16.mxu0 %v4037
    %4781 = vmatpush2.bf16.msra.mxu0 %v4036
    %4782 = vmatprep.subr.bf16.mxu0 %v4031
    %4783 = vmatpush2.bf16.msra.mxu0 %v4030
    %4784 = vmatprep.subr.bf16.mxu0 %v4025
    %4785 = vmatpush2.bf16.msra.mxu0 %v4024
    %4786 = vmatprep.subr.bf16.mxu0 %v4019
    %4787 = vmatpush2.bf16.msra.mxu0 %v4018
    %4788 = vmatprep.subr.bf16.mxu0 %v4013
    %4789 = vmatpush2.bf16.msra.mxu0 %v4012
    %4790 = vmatprep.subr.bf16.mxu0 %v4007
    %4791 = vmatpush2.bf16.msra.mxu0 %v4006
    %4792 = vmatprep.subr.bf16.mxu0 %v4001
    %4793 = vmatpush2.bf16.msra.mxu0 %v4000
    %4794 = vmatprep.subr.bf16.mxu0 %v3995
    %4795 = vmatpush2.bf16.msra.mxu0 %v3994
    %4796 = vmatprep.mubr.bf16.mxu0 %v2753
    %4797 = vmatmul.mubr.bf16.gmra.mxu0 %v2752
    %v4798 = vpop.f32.mrf.mxu0
    %v4799 = vadd.f32 %v3067, %v4798
    %v4800 = vpop.f32.mrf.mxu0
    %v4801 = vadd.f32 %v3071, %v4800
    %v4802 = vpop.f32.mrf.mxu0
    %v4803 = vpop.f32.mrf.mxu0
    %4804 = vdwg.mxu0
    %4805 = vmatprep.subr.bf16.mxu0 %v4085
    %4806 = vmatpush1.bf16.msra.mxu0 %v4084
    %4807 = vmatprep.subr.bf16.mxu0 %v4079
    %4808 = vmatpush1.bf16.msra.mxu0 %v4078
    %4809 = vmatprep.subr.bf16.mxu0 %v4073
    %4810 = vmatpush1.bf16.msra.mxu0 %v4072
    %4811 = vmatprep.subr.bf16.mxu0 %v4067
    %4812 = vmatpush1.bf16.msra.mxu0 %v4066
    %4813 = vmatprep.subr.bf16.mxu0 %v4061
    %4814 = vmatpush1.bf16.msra.mxu0 %v4060
    %4815 = vmatprep.subr.bf16.mxu0 %v4055
    %4816 = vmatpush1.bf16.msra.mxu0 %v4054
    %4817 = vmatprep.subr.bf16.mxu0 %v4049
    %4818 = vmatpush1.bf16.msra.mxu0 %v4048
    %4819 = vmatprep.subr.bf16.mxu0 %v4043
    %4820 = vmatpush1.bf16.msra.mxu0 %v4042
    %4821 = vmatprep.subr.bf16.mxu0 %v4133
    %4822 = vmatpush2.bf16.msra.mxu0 %v4132
    %4823 = vmatprep.subr.bf16.mxu0 %v4127
    %4824 = vmatpush2.bf16.msra.mxu0 %v4126
    %4825 = vmatprep.subr.bf16.mxu0 %v4121
    %4826 = vmatpush2.bf16.msra.mxu0 %v4120
    %4827 = vmatprep.subr.bf16.mxu0 %v4115
    %4828 = vmatpush2.bf16.msra.mxu0 %v4114
    %4829 = vmatprep.subr.bf16.mxu0 %v4109
    %4830 = vmatpush2.bf16.msra.mxu0 %v4108
    %4831 = vmatprep.subr.bf16.mxu0 %v4103
    %4832 = vmatpush2.bf16.msra.mxu0 %v4102
    %4833 = vmatprep.subr.bf16.mxu0 %v4097
    %4834 = vmatpush2.bf16.msra.mxu0 %v4096
    %4835 = vmatprep.subr.bf16.mxu0 %v4091
    %4836 = vmatpush2.bf16.msra.mxu0 %v4090
    %4837 = vmatprep.mubr.bf16.mxu0 %v2755
    %4838 = vmatmul.mubr.bf16.gmra.mxu0 %v2754
    %v4839 = vpop.f32.mrf.mxu0
    %v4840 = vadd.f32 %v4799, %v4839
    %v4841 = vpop.f32.mrf.mxu0
    %v4842 = vadd.f32 %v4801, %v4841
    %v4843 = vpop.f32.mrf.mxu0
    %v4844 = vpop.f32.mrf.mxu0
    %4845 = vdwg.mxu0
    %4846 = vmatprep.subr.bf16.mxu0 %v4181
    %4847 = vmatpush1.bf16.msra.mxu0 %v4180
    %4848 = vmatprep.subr.bf16.mxu0 %v4175
    %4849 = vmatpush1.bf16.msra.mxu0 %v4174
    %4850 = vmatprep.subr.bf16.mxu0 %v4169
    %4851 = vmatpush1.bf16.msra.mxu0 %v4168
    %4852 = vmatprep.subr.bf16.mxu0 %v4163
    %4853 = vmatpush1.bf16.msra.mxu0 %v4162
    %4854 = vmatprep.subr.bf16.mxu0 %v4157
    %4855 = vmatpush1.bf16.msra.mxu0 %v4156
    %4856 = vmatprep.subr.bf16.mxu0 %v4151
    %4857 = vmatpush1.bf16.msra.mxu0 %v4150
    %4858 = vmatprep.subr.bf16.mxu0 %v4145
    %4859 = vmatpush1.bf16.msra.mxu0 %v4144
    %4860 = vmatprep.subr.bf16.mxu0 %v4139
    %4861 = vmatpush1.bf16.msra.mxu0 %v4138
    %4862 = vmatprep.subr.bf16.mxu0 %v4229
    %4863 = vmatpush2.bf16.msra.mxu0 %v4228
    %4864 = vmatprep.subr.bf16.mxu0 %v4223
    %4865 = vmatpush2.bf16.msra.mxu0 %v4222
    %4866 = vmatprep.subr.bf16.mxu0 %v4217
    %4867 = vmatpush2.bf16.msra.mxu0 %v4216
    %4868 = vmatprep.subr.bf16.mxu0 %v4211
    %4869 = vmatpush2.bf16.msra.mxu0 %v4210
    %4870 = vmatprep.subr.bf16.mxu0 %v4205
    %4871 = vmatpush2.bf16.msra.mxu0 %v4204
    %4872 = vmatprep.subr.bf16.mxu0 %v4199
    %4873 = vmatpush2.bf16.msra.mxu0 %v4198
    %4874 = vmatprep.subr.bf16.mxu0 %v4193
    %4875 = vmatpush2.bf16.msra.mxu0 %v4192
    %4876 = vmatprep.subr.bf16.mxu0 %v4187
    %4877 = vmatpush2.bf16.msra.mxu0 %v4186
    %4878 = vmatprep.mubr.bf16.mxu0 %v2757
    %4879 = vmatmul.mubr.bf16.gmra.mxu0 %v2756
    %v4880 = vpop.f32.mrf.mxu0
    %v4881 = vadd.f32 %v4840, %v4880
    %v4882 = vpop.f32.mrf.mxu0
    %v4883 = vadd.f32 %v4842, %v4882
    %v4884 = vpop.f32.mrf.mxu0
    %v4885 = vpop.f32.mrf.mxu0
    %4886 = vdwg.mxu0
    %v4887 = vmax.f32 %v4635, 0.0
    %v4888 = vmax.f32 %v4637, 0.0
    %v4889 = vmax.f32 %v4758, 0.0
    %v4890 = vmax.f32 %v4760, 0.0
    %v4891 = vmax.f32 %v4881, 0.0
    %v4892 = vmax.f32 %v4883, 0.0
    %v4893 = vpack.c.bf16 %v4887, %v4887
    %v4894 = vpack.c.bf16 %v4888, %v4888
    %v4895 = vpack.c.bf16 %v4889, %v4889
    %v4896 = vpack.c.bf16 %v4890, %v4890
    %v4897 = vpack.c.bf16 %v4891, %v4891
    %v4898 = vpack.c.bf16 %v4892, %v4892
    %v4899 = vld [vmem:[%s14] sm:$0xf]
    %v4900 = vld [vmem:[%s14 + $0x4] sm:$0xf]
    %v4901 = vld [vmem:[%s14 + $0x8] sm:$0xf]
    %v4902 = vld [vmem:[%s14 + $0xc] sm:$0xf]
    %v4903 = vld [vmem:[%s14 + $0x10] sm:$0xf]
    %v4904 = vld [vmem:[%s14 + $0x14] sm:$0xf]
    %v4905 = vld [vmem:[%s14 + $0x18] sm:$0xf]
    %v4906 = vld [vmem:[%s14 + $0x1c] sm:$0xf]
    %v4907 = vld [vmem:[%s14 + $0x20] sm:$0xf]
    %v4908 = vld [vmem:[%s14 + $0x24] sm:$0xf]
    %v4909 = vld [vmem:[%s14 + $0x28] sm:$0xf]
    %v4910 = vld [vmem:[%s14 + $0x2c] sm:$0xf]
    %v4911 = vld [vmem:[%s14 + $0x30] sm:$0xf]
    %v4912 = vld [vmem:[%s14 + $0x34] sm:$0xf]
    %v4913 = vld [vmem:[%s14 + $0x38] sm:$0xf]
    %v4914 = vld [vmem:[%s14 + $0x3c] sm:$0xf]
    %v4915 = vld [vmem:[%s14 + $0x40] sm:$0xf]
    %v4916 = vld [vmem:[%s14 + $0x44] sm:$0xf]
    %v4917 = vld [vmem:[%s14 + $0x48] sm:$0xf]
    %v4918 = vld [vmem:[%s14 + $0x4c] sm:$0xf]
    %v4919 = vld [vmem:[%s14 + $0x50] sm:$0xf]
    %v4920 = vld [vmem:[%s14 + $0x54] sm:$0xf]
    %v4921 = vld [vmem:[%s14 + $0x58] sm:$0xf]
    %v4922 = vld [vmem:[%s14 + $0x5c] sm:$0xf]
    %v4923 = vld [vmem:[%s14 + $0x60] sm:$0xf]
    %v4924 = vld [vmem:[%s14 + $0x64] sm:$0xf]
    %v4925 = vld [vmem:[%s14 + $0x68] sm:$0xf]
    %v4926 = vld [vmem:[%s14 + $0x6c] sm:$0xf]
    %v4927 = vld [vmem:[%s14 + $0x70] sm:$0xf]
    %v4928 = vld [vmem:[%s14 + $0x74] sm:$0xf]
    %v4929 = vld [vmem:[%s14 + $0x78] sm:$0xf]
    %v4930 = vld [vmem:[%s14 + $0x7c] sm:$0xf]
    %v4931 = vld [vmem:[%s14 + $0x80] sm:$0xf]
    %v4932 = vld [vmem:[%s14 + $0x84] sm:$0xf]
    %v4933 = vld [vmem:[%s14 + $0x88] sm:$0xf]
    %v4934 = vld [vmem:[%s14 + $0x8c] sm:$0xf]
    %v4935 = vld [vmem:[%s14 + $0x90] sm:$0xf]
    %v4936 = vld [vmem:[%s14 + $0x94] sm:$0xf]
    %v4937 = vld [vmem:[%s14 + $0x98] sm:$0xf]
    %v4938 = vld [vmem:[%s14 + $0x9c] sm:$0xf]
    %v4939 = vld [vmem:[%s14 + $0xa0] sm:$0xf]
    %v4940 = vld [vmem:[%s14 + $0xa4] sm:$0xf]
    %v4941 = vld [vmem:[%s14 + $0xa8] sm:$0xf]
    %v4942 = vld [vmem:[%s14 + $0xac] sm:$0xf]
    %v4943 = vld [vmem:[%s14 + $0xb0] sm:$0xf]
    %v4944 = vld [vmem:[%s14 + $0xb4] sm:$0xf]
    %v4945 = vld [vmem:[%s14 + $0xb8] sm:$0xf]
    %v4946 = vld [vmem:[%s14 + $0xbc] sm:$0xf]
    %v4947 = vld [vmem:[%s14 + $0xc0] sm:$0xf]
    %v4948 = vld [vmem:[%s14 + $0xc4] sm:$0xf]
    %v4949 = vld [vmem:[%s14 + $0xc8] sm:$0xf]
    %v4950 = vld [vmem:[%s14 + $0xcc] sm:$0xf]
    %v4951 = vld [vmem:[%s14 + $0xd0] sm:$0xf]
    %v4952 = vld [vmem:[%s14 + $0xd4] sm:$0xf]
    %v4953 = vld [vmem:[%s14 + $0xd8] sm:$0xf]
    %v4954 = vld [vmem:[%s14 + $0xdc] sm:$0xf]
    %v4955 = vld [vmem:[%s14 + $0xe0] sm:$0xf]
    %v4956 = vld [vmem:[%s14 + $0xe4] sm:$0xf]
    %v4957 = vld [vmem:[%s14 + $0xe8] sm:$0xf]
    %v4958 = vld [vmem:[%s14 + $0xec] sm:$0xf]
    %v4959 = vld [vmem:[%s14 + $0xf0] sm:$0xf]
    %v4960 = vld [vmem:[%s14 + $0xf4] sm:$0xf]
    %v4961 = vld [vmem:[%s14 + $0xf8] sm:$0xf]
    %v4962 = vld [vmem:[%s14 + $0xfc] sm:$0xf]
    %v4963 = vld [vmem:[%s14 + $0x100] sm:$0xf]
    %v4964 = vld [vmem:[%s14 + $0x104] sm:$0xf]
    %v4965 = vld [vmem:[%s14 + $0x108] sm:$0xf]
    %v4966 = vld [vmem:[%s14 + $0x10c] sm:$0xf]
    %v4967 = vld [vmem:[%s14 + $0x110] sm:$0xf]
    %v4968 = vld [vmem:[%s14 + $0x114] sm:$0xf]
    %v4969 = vld [vmem:[%s14 + $0x118] sm:$0xf]
    %v4970 = vld [vmem:[%s14 + $0x11c] sm:$0xf]
    %v4971 = vld [vmem:[%s14 + $0x120] sm:$0xf]
    %v4972 = vld [vmem:[%s14 + $0x124] sm:$0xf]
    %v4973 = vld [vmem:[%s14 + $0x128] sm:$0xf]
    %v4974 = vld [vmem:[%s14 + $0x12c] sm:$0xf]
    %v4975 = vld [vmem:[%s14 + $0x130] sm:$0xf]
    %v4976 = vld [vmem:[%s14 + $0x134] sm:$0xf]
    %v4977 = vld [vmem:[%s14 + $0x138] sm:$0xf]
    %v4978 = vld [vmem:[%s14 + $0x13c] sm:$0xf]
    %v4979 = vld [vmem:[%s14 + $0x140] sm:$0xf]
    %v4980 = vld [vmem:[%s14 + $0x144] sm:$0xf]
    %v4981 = vld [vmem:[%s14 + $0x148] sm:$0xf]
    %v4982 = vld [vmem:[%s14 + $0x14c] sm:$0xf]
    %v4983 = vld [vmem:[%s14 + $0x150] sm:$0xf]
    %v4984 = vld [vmem:[%s14 + $0x154] sm:$0xf]
    %v4985 = vld [vmem:[%s14 + $0x158] sm:$0xf]
    %v4986 = vld [vmem:[%s14 + $0x15c] sm:$0xf]
    %v4987 = vld [vmem:[%s14 + $0x160] sm:$0xf]
    %v4988 = vld [vmem:[%s14 + $0x164] sm:$0xf]
    %v4989 = vld [vmem:[%s14 + $0x168] sm:$0xf]
    %v4990 = vld [vmem:[%s14 + $0x16c] sm:$0xf]
    %v4991 = vld [vmem:[%s15] sm:$0x1]
    %v4993 = vlaneseq
    %v4994 = vshrl.u32 %v4993, 7
    %v4995 = vsub.s32 0, %v4994
    %v4996 = vrot.slane %v4991, %v4995
    %v5090 = vunpack.c.l.b16 %v4899
    %v5091 = vunpack.c.l.b16 %v4900
    %v5092 = vunpack.c.l.b16 %v4901
    %v5093 = vunpack.c.l.b16 %v4902
    %v5094 = vunpack.c.l.b16 %v4903
    %v5095 = vunpack.c.l.b16 %v4904
    %v5096 = vunpack.c.l.b16 %v4905
    %v5097 = vunpack.c.l.b16 %v4906
    %v5098 = vunpack.c.l.b16 %v4907
    %v5099 = vunpack.c.l.b16 %v4908
    %v5100 = vunpack.c.l.b16 %v4909
    %v5101 = vunpack.c.l.b16 %v4910
    %v5102 = vunpack.c.l.b16 %v4911
    %v5103 = vunpack.c.l.b16 %v4912
    %v5104 = vunpack.c.l.b16 %v4913
    %v5105 = vunpack.c.l.b16 %v4914
    %v5106 = vunpack.c.l.b16 %v4915
    %v5107 = vunpack.c.l.b16 %v4916
    %v5108 = vunpack.c.l.b16 %v4917
    %v5109 = vunpack.c.l.b16 %v4918
    %v5110 = vunpack.c.l.b16 %v4919
    %v5111 = vunpack.c.l.b16 %v4920
    %v5112 = vunpack.c.l.b16 %v4921
    %v5113 = vunpack.c.l.b16 %v4922
    %v5114 = vunpack.c.l.b16 %v4923
    %v5115 = vunpack.c.l.b16 %v4924
    %v5116 = vunpack.c.l.b16 %v4925
    %v5117 = vunpack.c.l.b16 %v4926
    %v5118 = vunpack.c.l.b16 %v4927
    %v5119 = vunpack.c.l.b16 %v4928
    %v5120 = vunpack.c.l.b16 %v4929
    %v5121 = vunpack.c.l.b16 %v4930
    %v5122 = vunpack.c.l.b16 %v4931
    %v5123 = vunpack.c.l.b16 %v4932
    %v5124 = vunpack.c.l.b16 %v4933
    %v5125 = vunpack.c.l.b16 %v4934
    %v5126 = vunpack.c.l.b16 %v4935
    %v5127 = vunpack.c.l.b16 %v4936
    %v5128 = vunpack.c.l.b16 %v4937
    %v5129 = vunpack.c.l.b16 %v4938
    %v5130 = vunpack.c.l.b16 %v4939
    %v5131 = vunpack.c.l.b16 %v4940
    %v5132 = vunpack.c.l.b16 %v4941
    %v5133 = vunpack.c.l.b16 %v4942
    %v5134 = vunpack.c.l.b16 %v4943
    %v5135 = vunpack.c.l.b16 %v4944
    %v5136 = vunpack.c.l.b16 %v4945
    %v5137 = vunpack.c.l.b16 %v4946
    %v5138 = vunpack.c.l.b16 %v4947
    %v5139 = vunpack.c.l.b16 %v4948
    %v5140 = vunpack.c.l.b16 %v4949
    %v5141 = vunpack.c.l.b16 %v4950
    %v5142 = vunpack.c.l.b16 %v4951
    %v5143 = vunpack.c.l.b16 %v4952
    %v5144 = vunpack.c.l.b16 %v4953
    %v5145 = vunpack.c.l.b16 %v4954
    %v5146 = vunpack.c.l.b16 %v4955
    %v5147 = vunpack.c.l.b16 %v4956
    %v5148 = vunpack.c.l.b16 %v4957
    %v5149 = vunpack.c.l.b16 %v4958
    %v5150 = vunpack.c.l.b16 %v4959
    %v5151 = vunpack.c.l.b16 %v4960
    %v5152 = vunpack.c.l.b16 %v4961
    %v5153 = vunpack.c.l.b16 %v4962
    %v5154 = vunpack.c.l.b16 %v4963
    %v5155 = vunpack.c.l.b16 %v4964
    %v5156 = vunpack.c.l.b16 %v4965
    %v5157 = vunpack.c.l.b16 %v4966
    %v5158 = vunpack.c.l.b16 %v4967
    %v5159 = vunpack.c.l.b16 %v4968
    %v5160 = vunpack.c.l.b16 %v4969
    %v5161 = vunpack.c.l.b16 %v4970
    %v5162 = vunpack.c.l.b16 %v4971
    %v5163 = vunpack.c.l.b16 %v4972
    %v5164 = vunpack.c.l.b16 %v4973
    %v5165 = vunpack.c.l.b16 %v4974
    %v5166 = vunpack.c.l.b16 %v4975
    %v5167 = vunpack.c.l.b16 %v4976
    %v5168 = vunpack.c.l.b16 %v4977
    %v5169 = vunpack.c.l.b16 %v4978
    %v5170 = vunpack.c.l.b16 %v4979
    %v5171 = vunpack.c.l.b16 %v4980
    %v5172 = vunpack.c.l.b16 %v4981
    %v5173 = vunpack.c.l.b16 %v4982
    %v5174 = vunpack.c.l.b16 %v4983
    %v5175 = vunpack.c.l.b16 %v4984
    %v5176 = vunpack.c.l.b16 %v4985
    %v5177 = vunpack.c.l.b16 %v4986
    %v5178 = vunpack.c.l.b16 %v4987
    %v5179 = vunpack.c.l.b16 %v4988
    %v5180 = vunpack.c.l.b16 %v4989
    %v5181 = vunpack.c.l.b16 %v4990
    %v5182 = vpack.c.b16 %v5091, %v5090
    %v5183 = vpack.c.b16 %v5093, %v5092
    %v5184 = vpack.c.b16 %v5095, %v5094
    %v5185 = vpack.c.b16 %v5097, %v5096
    %v5186 = vpack.c.b16 %v5099, %v5098
    %v5187 = vpack.c.b16 %v5101, %v5100
    %v5188 = vpack.c.b16 %v5103, %v5102
    %v5189 = vpack.c.b16 %v5105, %v5104
    %v5190 = vpack.c.b16 %v5107, %v5106
    %v5191 = vpack.c.b16 %v5109, %v5108
    %v5192 = vpack.c.b16 %v5111, %v5110
    %v5193 = vpack.c.b16 %v5113, %v5112
    %v5194 = vpack.c.b16 %v5115, %v5114
    %v5195 = vpack.c.b16 %v5117, %v5116
    %v5196 = vpack.c.b16 %v5119, %v5118
    %v5197 = vpack.c.b16 %v5121, %v5120
    %v5198 = vpack.c.b16 %v5123, %v5122
    %v5199 = vpack.c.b16 %v5125, %v5124
    %v5200 = vpack.c.b16 %v5127, %v5126
    %v5201 = vpack.c.b16 %v5129, %v5128
    %v5202 = vpack.c.b16 %v5131, %v5130
    %v5203 = vpack.c.b16 %v5133, %v5132
    %v5204 = vpack.c.b16 %v5135, %v5134
    %v5205 = vpack.c.b16 %v5137, %v5136
    %v5206 = vpack.c.b16 %v5139, %v5138
    %v5207 = vpack.c.b16 %v5141, %v5140
    %v5208 = vpack.c.b16 %v5143, %v5142
    %v5209 = vpack.c.b16 %v5145, %v5144
    %v5210 = vpack.c.b16 %v5147, %v5146
    %v5211 = vpack.c.b16 %v5149, %v5148
    %v5212 = vpack.c.b16 %v5151, %v5150
    %v5213 = vpack.c.b16 %v5153, %v5152
    %v5214 = vpack.c.b16 %v5155, %v5154
    %v5215 = vpack.c.b16 %v5157, %v5156
    %v5216 = vpack.c.b16 %v5159, %v5158
    %v5217 = vpack.c.b16 %v5161, %v5160
    %v5218 = vpack.c.b16 %v5163, %v5162
    %v5219 = vpack.c.b16 %v5165, %v5164
    %v5220 = vpack.c.b16 %v5167, %v5166
    %v5221 = vpack.c.b16 %v5169, %v5168
    %v5222 = vpack.c.b16 %v5171, %v5170
    %v5223 = vpack.c.b16 %v5173, %v5172
    %v5224 = vpack.c.b16 %v5175, %v5174
    %v5225 = vpack.c.b16 %v5177, %v5176
    %v5226 = vpack.c.b16 %v5179, %v5178
    %v5227 = vpack.c.b16 %v5181, %v5180
    %vm5274 = vcmask 785408
    %v5276 = vsel %vm5274, %v4898, 0
    %5278 = vmatprep.subr.bf16.mxu0 0
    %5279 = vmatpush1.bf16.msra.mxu0 %v5189
    %5280 = vmatprep.subr.bf16.mxu0 0
    %5281 = vmatpush1.bf16.msra.mxu0 %v5188
    %5282 = vmatprep.subr.bf16.mxu0 0
    %5283 = vmatpush1.bf16.msra.mxu0 %v5187
    %5284 = vmatprep.subr.bf16.mxu0 0
    %5285 = vmatpush1.bf16.msra.mxu0 %v5186
    %5286 = vmatprep.subr.bf16.mxu0 0
    %5287 = vmatpush1.bf16.msra.mxu0 %v5185
    %5288 = vmatprep.subr.bf16.mxu0 0
    %5289 = vmatpush1.bf16.msra.mxu0 %v5184
    %5290 = vmatprep.subr.bf16.mxu0 0
    %5291 = vmatpush1.bf16.msra.mxu0 %v5183
    %5292 = vmatprep.subr.bf16.mxu0 0
    %5293 = vmatpush1.bf16.msra.mxu0 %v5182
    %5294 = vmatprep.subr.bf16.mxu0 0
    %5295 = vmatpush2.bf16.msra.mxu0 %v5197
    %5296 = vmatprep.subr.bf16.mxu0 0
    %5297 = vmatpush2.bf16.msra.mxu0 %v5196
    %5298 = vmatprep.subr.bf16.mxu0 0
    %5299 = vmatpush2.bf16.msra.mxu0 %v5195
    %5300 = vmatprep.subr.bf16.mxu0 0
    %5301 = vmatpush2.bf16.msra.mxu0 %v5194
    %5302 = vmatprep.subr.bf16.mxu0 0
    %5303 = vmatpush2.bf16.msra.mxu0 %v5193
    %5304 = vmatprep.subr.bf16.mxu0 0
    %5305 = vmatpush2.bf16.msra.mxu0 %v5192
    %5306 = vmatprep.subr.bf16.mxu0 0
    %5307 = vmatpush2.bf16.msra.mxu0 %v5191
    %5308 = vmatprep.subr.bf16.mxu0 0
    %5309 = vmatpush2.bf16.msra.mxu0 %v5190
    %5310 = vmatprep.mubr.bf16.mxu0 %v4894
    %5311 = vmatmul.mubr.bf16.gmra.mxu0 %v4893
    %v5312 = vpop.f32.mrf.mxu0
    %v5313 = vadd.f32 %v4996, %v5312
    %v5314 = vpop.f32.mrf.mxu0
    %v5315 = vpop.f32.mrf.mxu0
    %v5316 = vpop.f32.mrf.mxu0
    %5317 = vdwg.mxu0
    %5318 = vmatprep.subr.bf16.mxu0 0
    %5319 = vmatpush1.bf16.msra.mxu0 %v5205
    %5320 = vmatprep.subr.bf16.mxu0 0
    %5321 = vmatpush1.bf16.msra.mxu0 %v5204
    %5322 = vmatprep.subr.bf16.mxu0 0
    %5323 = vmatpush1.bf16.msra.mxu0 %v5203
    %5324 = vmatprep.subr.bf16.mxu0 0
    %5325 = vmatpush1.bf16.msra.mxu0 %v5202
    %5326 = vmatprep.subr.bf16.mxu0 0
    %5327 = vmatpush1.bf16.msra.mxu0 %v5201
    %5328 = vmatprep.subr.bf16.mxu0 0
    %5329 = vmatpush1.bf16.msra.mxu0 %v5200
    %5330 = vmatprep.subr.bf16.mxu0 0
    %5331 = vmatpush1.bf16.msra.mxu0 %v5199
    %5332 = vmatprep.subr.bf16.mxu0 0
    %5333 = vmatpush1.bf16.msra.mxu0 %v5198
    %5334 = vmatprep.subr.bf16.mxu0 0
    %5335 = vmatpush2.bf16.msra.mxu0 %v5213
    %5336 = vmatprep.subr.bf16.mxu0 0
    %5337 = vmatpush2.bf16.msra.mxu0 %v5212
    %5338 = vmatprep.subr.bf16.mxu0 0
    %5339 = vmatpush2.bf16.msra.mxu0 %v5211
    %5340 = vmatprep.subr.bf16.mxu0 0
    %5341 = vmatpush2.bf16.msra.mxu0 %v5210
    %5342 = vmatprep.subr.bf16.mxu0 0
    %5343 = vmatpush2.bf16.msra.mxu0 %v5209
    %5344 = vmatprep.subr.bf16.mxu0 0
    %5345 = vmatpush2.bf16.msra.mxu0 %v5208
    %5346 = vmatprep.subr.bf16.mxu0 0
    %5347 = vmatpush2.bf16.msra.mxu0 %v5207
    %5348 = vmatprep.subr.bf16.mxu0 0
    %5349 = vmatpush2.bf16.msra.mxu0 %v5206
    %5350 = vmatprep.mubr.bf16.mxu0 %v4896
    %5351 = vmatmul.mubr.bf16.gmra.mxu0 %v4895
    %v5352 = vpop.f32.mrf.mxu0
    %v5353 = vadd.f32 %v5313, %v5352
    %v5354 = vpop.f32.mrf.mxu0
    %v5355 = vpop.f32.mrf.mxu0
    %v5356 = vpop.f32.mrf.mxu0
    %5357 = vdwg.mxu0
    %5358 = vmatprep.subr.bf16.mxu0 0
    %5359 = vmatpush1.bf16.msra.mxu0 %v5221
    %5360 = vmatprep.subr.bf16.mxu0 0
    %5361 = vmatpush1.bf16.msra.mxu0 %v5220
    %5362 = vmatprep.subr.bf16.mxu0 0
    %5363 = vmatpush1.bf16.msra.mxu0 %v5219
    %5364 = vmatprep.subr.bf16.mxu0 0
    %5365 = vmatpush1.bf16.msra.mxu0 %v5218
    %5366 = vmatprep.subr.bf16.mxu0 0
    %5367 = vmatpush1.bf16.msra.mxu0 %v5217
    %5368 = vmatprep.subr.bf16.mxu0 0
    %5369 = vmatpush1.bf16.msra.mxu0 %v5216
    %5370 = vmatprep.subr.bf16.mxu0 0
    %5371 = vmatpush1.bf16.msra.mxu0 %v5215
    %5372 = vmatprep.subr.bf16.mxu0 0
    %5373 = vmatpush1.bf16.msra.mxu0 %v5214
    %5374 = vmatprep.subr.bf16.mxu0 0
    %5375 = vmatpush2.bf16.msra.mxu0 0
    %5376 = vmatprep.subr.bf16.mxu0 0
    %5377 = vmatpush2.bf16.msra.mxu0 0
    %5378 = vmatprep.subr.bf16.mxu0 0
    %5379 = vmatpush2.bf16.msra.mxu0 %v5227
    %5380 = vmatprep.subr.bf16.mxu0 0
    %5381 = vmatpush2.bf16.msra.mxu0 %v5226
    %5382 = vmatprep.subr.bf16.mxu0 0
    %5383 = vmatpush2.bf16.msra.mxu0 %v5225
    %5384 = vmatprep.subr.bf16.mxu0 0
    %5385 = vmatpush2.bf16.msra.mxu0 %v5224
    %5386 = vmatprep.subr.bf16.mxu0 0
    %5387 = vmatpush2.bf16.msra.mxu0 %v5223
    %5388 = vmatprep.subr.bf16.mxu0 0
    %5389 = vmatpush2.bf16.msra.mxu0 %v5222
    %5390 = vmatprep.mubr.bf16.mxu0 %v5276
    %5391 = vmatmul.mubr.bf16.gmra.mxu0 %v4897
    %v5392 = vpop.f32.mrf.mxu0
    %v5393 = vadd.f32 %v5353, %v5392
    %v5394 = vpop.f32.mrf.mxu0
    %v5395 = vpop.f32.mrf.mxu0
    %v5396 = vpop.f32.mrf.mxu0
    %5397 = vdwg.mxu0
    %5398 = vst [vmem:[#allocation2] sm:$0xff] %v5393
    %5399 = vst [vmem:[#allocation4] sm:$0xff] %v2520
    // Predicated region
    $region66: #{tpu_custom_call.1} parent=1 // pred_check
      _
    $region67: #{tpu_custom_call.1} parent=1 // pred_check_branch
      %5401 = sbr.rel (0) target = $region69
    $region68: #{tpu_custom_call.1} parent=1 // pred_region
      %s5403 = ssub.s32 128, 128
      %5404 = vsyncadd [#allocation3], %s5403
      %s5406 = sshll.u32 [#allocation2], 4
      %s5407 = int_to_ptr.vmem [resolvable:$true] %s5406
      %5409 = dma.vmem_to_hbm [thread:$0]  %s5407, 128, %s16, [#allocation3]
    $region69: #{tpu_custom_call.1} parent=1 // pred_fallthru
      _
    // Predicated region
    $region70: #{tpu_custom_call.1} parent=1 // pred_check
      _
    $region71: #{tpu_custom_call.1} parent=1 // pred_check_branch
      %5411 = sbr.rel (0) target = $region73
    $region72: #{tpu_custom_call.1} parent=1 // pred_region
      %s5413 = ssub.s32 128, 128
      %5414 = vsyncadd [#allocation5], %s5413
      %s5416 = sshll.u32 [#allocation4], 4
      %s5417 = int_to_ptr.vmem [resolvable:$true] %s5416
      %5419 = dma.vmem_to_hbm [thread:$0]  %s5417, 128, %s17, [#allocation5]
    $region73: #{tpu_custom_call.1} parent=1 // pred_fallthru
      _
    // Predicated region
    $region74: #{tpu_custom_call.1} parent=1 // pred_check
      _
    $region75: #{tpu_custom_call.1} parent=1 // pred_check_branch
      %5421 = sbr.rel (0) target = $region77
    $region76: #{tpu_custom_call.1} parent=1 // pred_region
      %5422 = dma.done [#allocation3], 128
    $region77: #{tpu_custom_call.1} parent=1 // pred_fallthru
      _
    // Predicated region
    $region78: #{tpu_custom_call.1} parent=1 // pred_check
      _
    $region79: #{tpu_custom_call.1} parent=1 // pred_check_branch
      %5424 = sbr.rel (0) target = $region81
    $region80: #{tpu_custom_call.1} parent=1 // pred_region
      %5425 = dma.done [#allocation5], 128
    $region81: #{tpu_custom_call.1} parent=1 // pred_fallthru
      _
    %5426 = vsyncpa [#allocation3], 1
    %5427 = vsyncpa [#allocation5], 1

</llo_original>
